<compile_context>
chip_gen: v5e
topology: v5e:2x2
jax: 0.10.0
libtpu: 0.0.40
codegen_flags: <defaults>
</compile_context>

<pallas_src>
import math
from functools import partial

import jax
import jax.numpy as jnp
from jax.experimental import pallas as pl
from jax.experimental.pallas import tpu as pltpu


# ----------------------------- fused Pallas kernel -------------------------

def fused_kernel(p_ref, wc_ref, bc_ref, w1_ref, b1_ref, w2_ref, b2_ref,
                 out_ref, act_ref, acc_ref, *, tp, n):
    """One grid step = one tile of `tp` pixels of the fc1 reduction axis."""
    k = pl.program_id(0)
    c = wc_ref.shape[1]                      # conv output channels (64)

    # --- stage 1 (first step only): conv3x3 + bias + ReLU -------------------
    # im2col patches rows are ordered (pixel, batch); the matmul output is
    # stored as-is in VMEM scratch, so no value reshape is ever needed.
    @pl.when(k == 0)
    def _():
        conv = jnp.dot(p_ref[...], wc_ref[...],
                       preferred_element_type=jnp.float32)      # (HW*N, C)
        conv = jnp.maximum(conv + bc_ref[...], 0.0)
        act_ref[...] = conv.astype(act_ref.dtype)                # bf16, VMEM-resident
        acc_ref[...] = jnp.zeros_like(acc_ref)

    # --- stage 2: partial fc1 over the `tp` pixels owned by this step -------
    tpn = tp * n
    base = pl.multiple_of(k * tpn, tpn)
    a_blk = act_ref[pl.ds(base, tpn), :]     # (tp*n, C) bf16, aligned slice
    acc = acc_ref[...]                       # (n, 512) f32
    for p in range(tp):                      # unrolled small MXU matmuls
        a_p = a_blk[p * n:(p + 1) * n, :]    # (n, C)   bf16
        w_p = w1_ref[p]                      # (C, 512) bf16  (leading-dim index)
        acc = acc + jnp.dot(a_p, w_p, preferred_element_type=jnp.float32)
    acc_ref[...] = acc

    # --- stage 3 (last step): bias + leaky_relu + dropout(eval) + fc2 -------
    @pl.when(k == pl.num_programs(0) - 1)
    def _():
        h = acc + b1_ref[...]                           # (n, 512) f32
        h = jnp.where(h >= 0.0, h, 0.01 * h)            # F.leaky_relu, slope 0.01
        # dropout (eval mode) == identity
        # TODO(synk): training-mode dropout mask (p=0.1) not implemented.
        out = jnp.dot(h, w2_ref[...], preferred_element_type=jnp.float32)
        out_ref[...] = (out + b2_ref[0, 0]).astype(out_ref.dtype)


# ----------------------------- weight prep (one time) ----------------------

def prep_params(params):
    """Fold PyTorch's NCHW channel-major flatten into a static permutation of
    fc1's weight (done once, zero runtime cost) and cast it to bf16."""
    wc, bc, w1, b1, w2, b2 = params           # wc (64,1,3,3), w1 (512,F), w2 (1,512)
    C = wc.shape[0]
    H1, F = w1.shape
    HW = F // C
    wc_mat = wc.reshape(C, 9).T.astype(jnp.float32)              # (9, C)
    bc_row = bc.reshape(1, C).astype(jnp.float32)                # (1, C)
    # w1p3[pix, c, j] == w1[j, c*HW + pix]  (flatten permutation folded in)
    w1p3 = (w1.reshape(H1, C, HW).transpose(2, 1, 0)
              .astype(jnp.bfloat16))                             # (HW, C, H1) bf16
    b1_row = b1.reshape(1, H1).astype(jnp.float32)               # (1, H1)
    w2_col = w2.T.astype(jnp.float32)                            # (H1, 1)
    b2_sc = b2.reshape(1, 1).astype(jnp.float32)                 # (1, 1) -> SMEM
    return (wc_mat, bc_row, w1p3, b1_row, w2_col, b2_sc)


# ----------------------------- forward wrapper -----------------------------

@partial(jax.jit, static_argnames=("H", "W", "tp"))
def net_cnn_simp_forward(x, prepped, *, H, W, tp=16):
    """Fused forward of Net_CNN_simp (eval mode). x: (N, 1, H, W) float32."""
    wc_mat, bc_row, w1p3, b1_row, w2_col, b2_sc = prepped
    N = x.shape[0]
    HW = H * W
    C = wc_mat.shape[1]
    H1 = w1p3.shape[2]
    assert HW % tp == 0
    grid_k = HW // tp

    # im2col stays outside the kernel: a handful of tiny HLO ops on the padded
    # (N, H+2, W+2) input.  Rows are ordered (pixel, batch) so the kernel never
    # reshapes values.
    # TODO(synk): fold im2col into the kernel (pltpu.roll + iota masks) to drop this glue.
    xp = jnp.pad(x[:, 0], ((0, 0), (1, 1), (1, 1)))               # (N, H+2, W+2)
    cols = [xp[:, ky:ky + H, kx:kx + W] for ky in range(3) for kx in range(3)]
    patches = jnp.stack(cols, axis=-1)                            # (N, H, W, 9)
    patches = patches.transpose(1, 2, 0, 3).reshape(HW * N, 9)    # (HW*N, 9)

    kernel = partial(fused_kernel, tp=tp, n=N)
    return pl.pallas_call(
        kernel,
        out_shape=jax.ShapeDtypeStruct((N, 1), jnp.float32),
        grid=(grid_k,),
        in_specs=[
            pl.BlockSpec((HW * N, 9), lambda k: (0, 0)),          # patches (resident)
            pl.BlockSpec((9, C), lambda k: (0, 0)),               # conv weight
            pl.BlockSpec((1, C), lambda k: (0, 0)),               # conv bias
            pl.BlockSpec((tp, C, H1), lambda k: (k, 0, 0)),       # fc1 weight tile (bf16)
            pl.BlockSpec((1, H1), lambda k: (0, 0)),              # fc1 bias
            pl.BlockSpec((H1, 1), lambda k: (0, 0)),              # fc2 weight
            pl.BlockSpec(memory_space=pltpu.MemorySpace.SMEM),    # fc2 bias (scalar)
        ],
        out_specs=pl.BlockSpec((N, 1), lambda k: (0, 0)),
        scratch_shapes=[
            pltpu.VMEM((HW * N, C), jnp.bfloat16),    # conv activation (VMEM-resident)
            pltpu.VMEM((N, H1), jnp.float32),         # fc1 accumulator
        ],
        compiler_params=pltpu.CompilerParams(
            dimension_semantics=("arbitrary",)),
    )(patches, wc_mat, bc_row, w1p3, b1_row, w2_col, b2_sc)


# ----------------------------- reference (pure JAX) ------------------------

def ref_forward(x, params):
    wc, bc, w1, b1, w2, b2 = params
    conv = jax.lax.conv_general_dilated(
        x, wc, window_strides=(1, 1), padding="SAME",
        dimension_numbers=("NCHW", "OIHW", "NCHW"))
    conv = jnp.maximum(conv + bc.reshape(1, -1, 1, 1), 0.0)
    flat = conv.reshape(x.shape[0], -1)
    h = flat @ w1.T + b1
    h = jnp.where(h >= 0.0, h, 0.01 * h)
    return h @ w2.T + b2


# ----------------------------- main ----------------------------------------

if __name__ == "__main__":
    N, H, W = 2, 8, 8
    input_size = H * W              # Net_CNN_simp(inputSize=H*W)
    feat = input_size * 64          # fc1 input features

    key = jax.random.PRNGKey(0)
    k_x, k_wc, k_bc, k_w1, k_b1, k_w2, k_b2 = jax.random.split(key, 7)

    # deterministic parameter init (PyTorch-style uniform bounds)
    bc_bound = 1.0 / math.sqrt(1 * 3 * 3)
    wc = jax.random.uniform(k_wc, (64, 1, 3, 3), jnp.float32, -bc_bound, bc_bound)
    bc = jax.random.uniform(k_bc, (64,), jnp.float32, -bc_bound, bc_bound)

    b1_bound = 1.0 / math.sqrt(feat)
    w1 = jax.random.uniform(k_w1, (512, feat), jnp.float32, -b1_bound, b1_bound)
    b1 = jax.random.uniform(k_b1, (512,), jnp.float32, -b1_bound, b1_bound)

    b2_bound = 1.0 / math.sqrt(512)
    w2 = jax.random.uniform(k_w2, (1, 512), jnp.float32, -b2_bound, b2_bound)
    b2 = jax.random.uniform(k_b2, (1,), jnp.float32, -b2_bound, b2_bound)

    params = (wc, bc, w1, b1, w2, b2)
    prepped = prep_params(params)        # one-time permute + bf16 cast of w1

    x = jax.random.normal(k_x, (N, 1, H, W), jnp.float32)

    out = jax.block_until_ready(net_cnn_simp_forward(x, prepped, H=H, W=W))
    ref = jax.block_until_ready(ref_forward(x, params))

    assert out.shape == (N, 1)
    assert jnp.allclose(out, ref, rtol=2e-2, atol=1e-2), (out, ref)

    print("KERNEL_OK")
</pallas_src>

<mosaic_0001>
module attributes {stable_mosaic.version = 11 : i64} {
  func.func @fused_kernel(%arg0: i32, %arg1: memref<128x9xf32, #tpu.memory_space<vmem>>, %arg2: memref<9x64xf32, #tpu.memory_space<vmem>>, %arg3: memref<1x64xf32, #tpu.memory_space<vmem>>, %arg4: memref<16x64x512xbf16, #tpu.memory_space<vmem>>, %arg5: memref<1x512xf32, #tpu.memory_space<vmem>>, %arg6: memref<512x1xf32, #tpu.memory_space<vmem>>, %arg7: memref<1x1xf32, #tpu.memory_space<smem>>, %arg8: memref<2x1xf32, #tpu.memory_space<vmem>>, %arg9: memref<128x64xbf16, #tpu.memory_space<vmem>>, %arg10: memref<2x512xf32, #tpu.memory_space<vmem>>) attributes {dimension_semantics = [#tpu.dimension_semantics<arbitrary>], iteration_bounds = array<i64: 4>, scalar_prefetch = 0 : i64, scratch_operands = 2 : i64, tpu.core_type = #tpu.core_type<tc>, window_params = [{pipeline_mode = #tpu.pipeline_mode<synchronous>, transform_indices = @transform_0, window_bounds = array<i64: 128, 9>}, {pipeline_mode = #tpu.pipeline_mode<synchronous>, transform_indices = @transform_1, window_bounds = array<i64: 9, 64>}, {pipeline_mode = #tpu.pipeline_mode<synchronous>, transform_indices = @transform_2, window_bounds = array<i64: 1, 64>}, {transform_indices = @transform_3, window_bounds = array<i64: 16, 64, 512>}, {pipeline_mode = #tpu.pipeline_mode<synchronous>, transform_indices = @transform_4, window_bounds = array<i64: 1, 512>}, {pipeline_mode = #tpu.pipeline_mode<synchronous>, transform_indices = @transform_5, window_bounds = array<i64: 512, 1>}, {transform_indices = @transform_6, window_bounds = array<i64: 1, 1>}, {pipeline_mode = #tpu.pipeline_mode<synchronous>, transform_indices = @transform_7, window_bounds = array<i64: 2, 1>}]} {
    %c0_i32 = arith.constant 0 : i32
    %0 = arith.cmpi eq, %arg0, %c0_i32 : i32
    %1 = arith.extui %0 : i1 to i32
    %c0_i32_0 = arith.constant 0 : i32
    %2 = arith.cmpi ne, %1, %c0_i32_0 : i32
    scf.if %2 {
      %c0_54 = arith.constant 0 : index
      %c0_55 = arith.constant 0 : index
      %92 = vector.load %arg1[%c0_54, %c0_55] : memref<128x9xf32, #tpu.memory_space<vmem>>, vector<128x9xf32>
      %c0_56 = arith.constant 0 : index
      %c0_57 = arith.constant 0 : index
      %93 = vector.load %arg2[%c0_56, %c0_57] : memref<9x64xf32, #tpu.memory_space<vmem>>, vector<9x64xf32>
      %cst_58 = arith.constant dense<0.000000e+00> : vector<128x64xf32>
      %94 = tpu.matmul %92, %93, %cst_58 {dimension_numbers = #tpu.dot_dimension_numbers<[1], [0], [0], [1], [0, 0, 1, 1], [], []>} : vector<128x9xf32>, vector<9x64xf32>, vector<128x64xf32> -> vector<128x64xf32>
      %c0_59 = arith.constant 0 : index
      %c0_60 = arith.constant 0 : index
      %95 = vector.load %arg3[%c0_59, %c0_60] : memref<1x64xf32, #tpu.memory_space<vmem>>, vector<1x64xf32>
      %96 = vector.broadcast %95 : vector<1x64xf32> to vector<128x64xf32>
      %97 = arith.addf %94, %96 : vector<128x64xf32>
      %cst_61 = arith.constant 0.000000e+00 : f32
      %98 = vector.broadcast %cst_61 : f32 to vector<128x64xf32>
      %99 = arith.maximumf %97, %98 : vector<128x64xf32>
      %100 = arith.truncf %99 : vector<128x64xf32> to vector<128x64xbf16>
      %c0_62 = arith.constant 0 : index
      %c0_63 = arith.constant 0 : index
      %101 = vector.load %arg9[%c0_62, %c0_63] : memref<128x64xbf16, #tpu.memory_space<vmem>>, vector<128x64xbf16>
      tpu.vector_store %arg9[%c0_62, %c0_63], %100 {strides = array<i32>} : memref<128x64xbf16, #tpu.memory_space<vmem>>, vector<128x64xbf16>,
      %cst_64 = arith.constant 0.000000e+00 : f32
      %102 = vector.broadcast %cst_64 : f32 to vector<2x512xf32>
      %c0_65 = arith.constant 0 : index
      %c0_66 = arith.constant 0 : index
      %103 = vector.load %arg10[%c0_65, %c0_66] : memref<2x512xf32, #tpu.memory_space<vmem>>, vector<2x512xf32>
      tpu.vector_store %arg10[%c0_65, %c0_66], %102 {strides = array<i32>} : memref<2x512xf32, #tpu.memory_space<vmem>>, vector<2x512xf32>,
    } else {
    }
    %c32_i32 = arith.constant 32 : i32
    %3 = arith.muli %arg0, %c32_i32 : i32
    %4 = tpu.assume_multiple %3, 32 : i32
    %5 = arith.index_cast %4 : i32 to index
    %c0 = arith.constant 0 : index
    %6 = vector.load %arg9[%5, %c0] : memref<128x64xbf16, #tpu.memory_space<vmem>>, vector<32x64xbf16>
    %c0_1 = arith.constant 0 : index
    %c0_2 = arith.constant 0 : index
    %7 = vector.load %arg10[%c0_1, %c0_2] : memref<2x512xf32, #tpu.memory_space<vmem>>, vector<2x512xf32>
    %8 = vector.extract_strided_slice %6 {offsets = [0, 0], sizes = [2, 64], strides = [1, 1]} : vector<32x64xbf16> to vector<2x64xbf16>
    %c0_3 = arith.constant 0 : index
    %c0_4 = arith.constant 0 : index
    %c0_5 = arith.constant 0 : index
    %9 = vector.load %arg4[%c0_3, %c0_4, %c0_5] : memref<16x64x512xbf16, #tpu.memory_space<vmem>>, vector<1x64x512xbf16>
    %10 = vector.shape_cast %9 : vector<1x64x512xbf16> to vector<64x512xbf16>
    %cst = arith.constant dense<0.000000e+00> : vector<2x512xf32>
    %11 = tpu.matmul %8, %10, %cst {dimension_numbers = #tpu.dot_dimension_numbers<[1], [0], [0], [1], [0, 0, 1, 1], [], []>} : vector<2x64xbf16>, vector<64x512xbf16>, vector<2x512xf32> -> vector<2x512xf32>
    %12 = arith.addf %7, %11 : vector<2x512xf32>
    %13 = vector.extract_strided_slice %6 {offsets = [2, 0], sizes = [2, 64], strides = [1, 1]} : vector<32x64xbf16> to vector<2x64xbf16>
    %c1 = arith.constant 1 : index
    %c0_6 = arith.constant 0 : index
    %c0_7 = arith.constant 0 : index
    %14 = vector.load %arg4[%c1, %c0_6, %c0_7] : memref<16x64x512xbf16, #tpu.memory_space<vmem>>, vector<1x64x512xbf16>
    %15 = vector.shape_cast %14 : vector<1x64x512xbf16> to vector<64x512xbf16>
    %cst_8 = arith.constant dense<0.000000e+00> : vector<2x512xf32>
    %16 = tpu.matmul %13, %15, %cst_8 {dimension_numbers = #tpu.dot_dimension_numbers<[1], [0], [0], [1], [0, 0, 1, 1], [], []>} : vector<2x64xbf16>, vector<64x512xbf16>, vector<2x512xf32> -> vector<2x512xf32>
    %17 = arith.addf %12, %16 : vector<2x512xf32>
    %18 = vector.extract_strided_slice %6 {offsets = [4, 0], sizes = [2, 64], strides = [1, 1]} : vector<32x64xbf16> to vector<2x64xbf16>
    %c2 = arith.constant 2 : index
    %c0_9 = arith.constant 0 : index
    %c0_10 = arith.constant 0 : index
    %19 = vector.load %arg4[%c2, %c0_9, %c0_10] : memref<16x64x512xbf16, #tpu.memory_space<vmem>>, vector<1x64x512xbf16>
    %20 = vector.shape_cast %19 : vector<1x64x512xbf16> to vector<64x512xbf16>
    %cst_11 = arith.constant dense<0.000000e+00> : vector<2x512xf32>
    %21 = tpu.matmul %18, %20, %cst_11 {dimension_numbers = #tpu.dot_dimension_numbers<[1], [0], [0], [1], [0, 0, 1, 1], [], []>} : vector<2x64xbf16>, vector<64x512xbf16>, vector<2x512xf32> -> vector<2x512xf32>
    %22 = arith.addf %17, %21 : vector<2x512xf32>
    %23 = vector.extract_strided_slice %6 {offsets = [6, 0], sizes = [2, 64], strides = [1, 1]} : vector<32x64xbf16> to vector<2x64xbf16>
    %c3 = arith.constant 3 : index
    %c0_12 = arith.constant 0 : index
    %c0_13 = arith.constant 0 : index
    %24 = vector.load %arg4[%c3, %c0_12, %c0_13] : memref<16x64x512xbf16, #tpu.memory_space<vmem>>, vector<1x64x512xbf16>
    %25 = vector.shape_cast %24 : vector<1x64x512xbf16> to vector<64x512xbf16>
    %cst_14 = arith.constant dense<0.000000e+00> : vector<2x512xf32>
    %26 = tpu.matmul %23, %25, %cst_14 {dimension_numbers = #tpu.dot_dimension_numbers<[1], [0], [0], [1], [0, 0, 1, 1], [], []>} : vector<2x64xbf16>, vector<64x512xbf16>, vector<2x512xf32> -> vector<2x512xf32>
    %27 = arith.addf %22, %26 : vector<2x512xf32>
    %28 = vector.extract_strided_slice %6 {offsets = [8, 0], sizes = [2, 64], strides = [1, 1]} : vector<32x64xbf16> to vector<2x64xbf16>
    %c4 = arith.constant 4 : index
    %c0_15 = arith.constant 0 : index
    %c0_16 = arith.constant 0 : index
    %29 = vector.load %arg4[%c4, %c0_15, %c0_16] : memref<16x64x512xbf16, #tpu.memory_space<vmem>>, vector<1x64x512xbf16>
    %30 = vector.shape_cast %29 : vector<1x64x512xbf16> to vector<64x512xbf16>
    %cst_17 = arith.constant dense<0.000000e+00> : vector<2x512xf32>
    %31 = tpu.matmul %28, %30, %cst_17 {dimension_numbers = #tpu.dot_dimension_numbers<[1], [0], [0], [1], [0, 0, 1, 1], [], []>} : vector<2x64xbf16>, vector<64x512xbf16>, vector<2x512xf32> -> vector<2x512xf32>
    %32 = arith.addf %27, %31 : vector<2x512xf32>
    %33 = vector.extract_strided_slice %6 {offsets = [10, 0], sizes = [2, 64], strides = [1, 1]} : vector<32x64xbf16> to vector<2x64xbf16>
    %c5 = arith.constant 5 : index
    %c0_18 = arith.constant 0 : index
    %c0_19 = arith.constant 0 : index
    %34 = vector.load %arg4[%c5, %c0_18, %c0_19] : memref<16x64x512xbf16, #tpu.memory_space<vmem>>, vector<1x64x512xbf16>
    %35 = vector.shape_cast %34 : vector<1x64x512xbf16> to vector<64x512xbf16>
    %cst_20 = arith.constant dense<0.000000e+00> : vector<2x512xf32>
    %36 = tpu.matmul %33, %35, %cst_20 {dimension_numbers = #tpu.dot_dimension_numbers<[1], [0], [0], [1], [0, 0, 1, 1], [], []>} : vector<2x64xbf16>, vector<64x512xbf16>, vector<2x512xf32> -> vector<2x512xf32>
    %37 = arith.addf %32, %36 : vector<2x512xf32>
    %38 = vector.extract_strided_slice %6 {offsets = [12, 0], sizes = [2, 64], strides = [1, 1]} : vector<32x64xbf16> to vector<2x64xbf16>
    %c6 = arith.constant 6 : index
    %c0_21 = arith.constant 0 : index
    %c0_22 = arith.constant 0 : index
    %39 = vector.load %arg4[%c6, %c0_21, %c0_22] : memref<16x64x512xbf16, #tpu.memory_space<vmem>>, vector<1x64x512xbf16>
    %40 = vector.shape_cast %39 : vector<1x64x512xbf16> to vector<64x512xbf16>
    %cst_23 = arith.constant dense<0.000000e+00> : vector<2x512xf32>
    %41 = tpu.matmul %38, %40, %cst_23 {dimension_numbers = #tpu.dot_dimension_numbers<[1], [0], [0], [1], [0, 0, 1, 1], [], []>} : vector<2x64xbf16>, vector<64x512xbf16>, vector<2x512xf32> -> vector<2x512xf32>
    %42 = arith.addf %37, %41 : vector<2x512xf32>
    %43 = vector.extract_strided_slice %6 {offsets = [14, 0], sizes = [2, 64], strides = [1, 1]} : vector<32x64xbf16> to vector<2x64xbf16>
    %c7 = arith.constant 7 : index
    %c0_24 = arith.constant 0 : index
    %c0_25 = arith.constant 0 : index
    %44 = vector.load %arg4[%c7, %c0_24, %c0_25] : memref<16x64x512xbf16, #tpu.memory_space<vmem>>, vector<1x64x512xbf16>
    %45 = vector.shape_cast %44 : vector<1x64x512xbf16> to vector<64x512xbf16>
    %cst_26 = arith.constant dense<0.000000e+00> : vector<2x512xf32>
    %46 = tpu.matmul %43, %45, %cst_26 {dimension_numbers = #tpu.dot_dimension_numbers<[1], [0], [0], [1], [0, 0, 1, 1], [], []>} : vector<2x64xbf16>, vector<64x512xbf16>, vector<2x512xf32> -> vector<2x512xf32>
    %47 = arith.addf %42, %46 : vector<2x512xf32>
    %48 = vector.extract_strided_slice %6 {offsets = [16, 0], sizes = [2, 64], strides = [1, 1]} : vector<32x64xbf16> to vector<2x64xbf16>
    %c8 = arith.constant 8 : index
    %c0_27 = arith.constant 0 : index
    %c0_28 = arith.constant 0 : index
    %49 = vector.load %arg4[%c8, %c0_27, %c0_28] : memref<16x64x512xbf16, #tpu.memory_space<vmem>>, vector<1x64x512xbf16>
    %50 = vector.shape_cast %49 : vector<1x64x512xbf16> to vector<64x512xbf16>
    %cst_29 = arith.constant dense<0.000000e+00> : vector<2x512xf32>
    %51 = tpu.matmul %48, %50, %cst_29 {dimension_numbers = #tpu.dot_dimension_numbers<[1], [0], [0], [1], [0, 0, 1, 1], [], []>} : vector<2x64xbf16>, vector<64x512xbf16>, vector<2x512xf32> -> vector<2x512xf32>
    %52 = arith.addf %47, %51 : vector<2x512xf32>
    %53 = vector.extract_strided_slice %6 {offsets = [18, 0], sizes = [2, 64], strides = [1, 1]} : vector<32x64xbf16> to vector<2x64xbf16>
    %c9 = arith.constant 9 : index
    %c0_30 = arith.constant 0 : index
    %c0_31 = arith.constant 0 : index
    %54 = vector.load %arg4[%c9, %c0_30, %c0_31] : memref<16x64x512xbf16, #tpu.memory_space<vmem>>, vector<1x64x512xbf16>
    %55 = vector.shape_cast %54 : vector<1x64x512xbf16> to vector<64x512xbf16>
    %cst_32 = arith.constant dense<0.000000e+00> : vector<2x512xf32>
    %56 = tpu.matmul %53, %55, %cst_32 {dimension_numbers = #tpu.dot_dimension_numbers<[1], [0], [0], [1], [0, 0, 1, 1], [], []>} : vector<2x64xbf16>, vector<64x512xbf16>, vector<2x512xf32> -> vector<2x512xf32>
    %57 = arith.addf %52, %56 : vector<2x512xf32>
    %58 = vector.extract_strided_slice %6 {offsets = [20, 0], sizes = [2, 64], strides = [1, 1]} : vector<32x64xbf16> to vector<2x64xbf16>
    %c10 = arith.constant 10 : index
    %c0_33 = arith.constant 0 : index
    %c0_34 = arith.constant 0 : index
    %59 = vector.load %arg4[%c10, %c0_33, %c0_34] : memref<16x64x512xbf16, #tpu.memory_space<vmem>>, vector<1x64x512xbf16>
    %60 = vector.shape_cast %59 : vector<1x64x512xbf16> to vector<64x512xbf16>
    %cst_35 = arith.constant dense<0.000000e+00> : vector<2x512xf32>
    %61 = tpu.matmul %58, %60, %cst_35 {dimension_numbers = #tpu.dot_dimension_numbers<[1], [0], [0], [1], [0, 0, 1, 1], [], []>} : vector<2x64xbf16>, vector<64x512xbf16>, vector<2x512xf32> -> vector<2x512xf32>
    %62 = arith.addf %57, %61 : vector<2x512xf32>
    %63 = vector.extract_strided_slice %6 {offsets = [22, 0], sizes = [2, 64], strides = [1, 1]} : vector<32x64xbf16> to vector<2x64xbf16>
    %c11 = arith.constant 11 : index
    %c0_36 = arith.constant 0 : index
    %c0_37 = arith.constant 0 : index
    %64 = vector.load %arg4[%c11, %c0_36, %c0_37] : memref<16x64x512xbf16, #tpu.memory_space<vmem>>, vector<1x64x512xbf16>
    %65 = vector.shape_cast %64 : vector<1x64x512xbf16> to vector<64x512xbf16>
    %cst_38 = arith.constant dense<0.000000e+00> : vector<2x512xf32>
    %66 = tpu.matmul %63, %65, %cst_38 {dimension_numbers = #tpu.dot_dimension_numbers<[1], [0], [0], [1], [0, 0, 1, 1], [], []>} : vector<2x64xbf16>, vector<64x512xbf16>, vector<2x512xf32> -> vector<2x512xf32>
    %67 = arith.addf %62, %66 : vector<2x512xf32>
    %68 = vector.extract_strided_slice %6 {offsets = [24, 0], sizes = [2, 64], strides = [1, 1]} : vector<32x64xbf16> to vector<2x64xbf16>
    %c12 = arith.constant 12 : index
    %c0_39 = arith.constant 0 : index
    %c0_40 = arith.constant 0 : index
    %69 = vector.load %arg4[%c12, %c0_39, %c0_40] : memref<16x64x512xbf16, #tpu.memory_space<vmem>>, vector<1x64x512xbf16>
    %70 = vector.shape_cast %69 : vector<1x64x512xbf16> to vector<64x512xbf16>
    %cst_41 = arith.constant dense<0.000000e+00> : vector<2x512xf32>
    %71 = tpu.matmul %68, %70, %cst_41 {dimension_numbers = #tpu.dot_dimension_numbers<[1], [0], [0], [1], [0, 0, 1, 1], [], []>} : vector<2x64xbf16>, vector<64x512xbf16>, vector<2x512xf32> -> vector<2x512xf32>
    %72 = arith.addf %67, %71 : vector<2x512xf32>
    %73 = vector.extract_strided_slice %6 {offsets = [26, 0], sizes = [2, 64], strides = [1, 1]} : vector<32x64xbf16> to vector<2x64xbf16>
    %c13 = arith.constant 13 : index
    %c0_42 = arith.constant 0 : index
    %c0_43 = arith.constant 0 : index
    %74 = vector.load %arg4[%c13, %c0_42, %c0_43] : memref<16x64x512xbf16, #tpu.memory_space<vmem>>, vector<1x64x512xbf16>
    %75 = vector.shape_cast %74 : vector<1x64x512xbf16> to vector<64x512xbf16>
    %cst_44 = arith.constant dense<0.000000e+00> : vector<2x512xf32>
    %76 = tpu.matmul %73, %75, %cst_44 {dimension_numbers = #tpu.dot_dimension_numbers<[1], [0], [0], [1], [0, 0, 1, 1], [], []>} : vector<2x64xbf16>, vector<64x512xbf16>, vector<2x512xf32> -> vector<2x512xf32>
    %77 = arith.addf %72, %76 : vector<2x512xf32>
    %78 = vector.extract_strided_slice %6 {offsets = [28, 0], sizes = [2, 64], strides = [1, 1]} : vector<32x64xbf16> to vector<2x64xbf16>
    %c14 = arith.constant 14 : index
    %c0_45 = arith.constant 0 : index
    %c0_46 = arith.constant 0 : index
    %79 = vector.load %arg4[%c14, %c0_45, %c0_46] : memref<16x64x512xbf16, #tpu.memory_space<vmem>>, vector<1x64x512xbf16>
    %80 = vector.shape_cast %79 : vector<1x64x512xbf16> to vector<64x512xbf16>
    %cst_47 = arith.constant dense<0.000000e+00> : vector<2x512xf32>
    %81 = tpu.matmul %78, %80, %cst_47 {dimension_numbers = #tpu.dot_dimension_numbers<[1], [0], [0], [1], [0, 0, 1, 1], [], []>} : vector<2x64xbf16>, vector<64x512xbf16>, vector<2x512xf32> -> vector<2x512xf32>
    %82 = arith.addf %77, %81 : vector<2x512xf32>
    %83 = vector.extract_strided_slice %6 {offsets = [30, 0], sizes = [2, 64], strides = [1, 1]} : vector<32x64xbf16> to vector<2x64xbf16>
    %c15 = arith.constant 15 : index
    %c0_48 = arith.constant 0 : index
    %c0_49 = arith.constant 0 : index
    %84 = vector.load %arg4[%c15, %c0_48, %c0_49] : memref<16x64x512xbf16, #tpu.memory_space<vmem>>, vector<1x64x512xbf16>
    %85 = vector.shape_cast %84 : vector<1x64x512xbf16> to vector<64x512xbf16>
    %cst_50 = arith.constant dense<0.000000e+00> : vector<2x512xf32>
    %86 = tpu.matmul %83, %85, %cst_50 {dimension_numbers = #tpu.dot_dimension_numbers<[1], [0], [0], [1], [0, 0, 1, 1], [], []>} : vector<2x64xbf16>, vector<64x512xbf16>, vector<2x512xf32> -> vector<2x512xf32>
    %87 = arith.addf %82, %86 : vector<2x512xf32>
    %c0_51 = arith.constant 0 : index
    %c0_52 = arith.constant 0 : index
    %88 = vector.load %arg10[%c0_51, %c0_52] : memref<2x512xf32, #tpu.memory_space<vmem>>, vector<2x512xf32>
    tpu.vector_store %arg10[%c0_51, %c0_52], %87 {strides = array<i32>} : memref<2x512xf32, #tpu.memory_space<vmem>>, vector<2x512xf32>,
    %c3_i32 = arith.constant 3 : i32
    %89 = arith.cmpi eq, %arg0, %c3_i32 : i32
    %90 = arith.extui %89 : i1 to i32
    %c0_i32_53 = arith.constant 0 : i32
    %91 = arith.cmpi ne, %90, %c0_i32_53 : i32
    scf.if %91 {
      %c0_54 = arith.constant 0 : index
      %c0_55 = arith.constant 0 : index
      %92 = vector.load %arg5[%c0_54, %c0_55] : memref<1x512xf32, #tpu.memory_space<vmem>>, vector<1x512xf32>
      %93 = vector.broadcast %92 : vector<1x512xf32> to vector<2x512xf32>
      %94 = arith.addf %87, %93 : vector<2x512xf32>
      %cst_56 = arith.constant 0.000000e+00 : f32
      %95 = vector.broadcast %cst_56 : f32 to vector<2x512xf32>
      %96 = arith.cmpf oge, %94, %95 : vector<2x512xf32>
      %cst_57 = arith.constant 0.00999999977 : f32
      %97 = vector.broadcast %cst_57 : f32 to vector<2x512xf32>
      %98 = arith.mulf %97, %94 : vector<2x512xf32>
      %99 = arith.select %96, %94, %98 : vector<2x512xi1>, vector<2x512xf32>
      %c0_58 = arith.constant 0 : index
      %c0_59 = arith.constant 0 : index
      %100 = vector.load %arg6[%c0_58, %c0_59] : memref<512x1xf32, #tpu.memory_space<vmem>>, vector<512x1xf32>
      %cst_60 = arith.constant dense<0.000000e+00> : vector<2x1xf32>
      %101 = tpu.matmul %99, %100, %cst_60 {dimension_numbers = #tpu.dot_dimension_numbers<[1], [0], [0], [1], [0, 0, 1, 1], [], []>} : vector<2x512xf32>, vector<512x1xf32>, vector<2x1xf32> -> vector<2x1xf32>
      %c0_61 = arith.constant 0 : index
      %c0_62 = arith.constant 0 : index
      %102 = memref.load %arg7[%c0_61, %c0_62] : memref<1x1xf32, #tpu.memory_space<smem>>
      %103 = vector.broadcast %102 : f32 to vector<2x1xf32>
      %104 = arith.addf %101, %103 : vector<2x1xf32>
      %c0_63 = arith.constant 0 : index
      %c0_64 = arith.constant 0 : index
      %105 = vector.load %arg8[%c0_63, %c0_64] : memref<2x1xf32, #tpu.memory_space<vmem>>, vector<2x1xf32>
      tpu.vector_store %arg8[%c0_63, %c0_64], %104 {strides = array<i32>} : memref<2x1xf32, #tpu.memory_space<vmem>>, vector<2x1xf32>,
    } else {
    }
    return
  }
  func.func @transform_0(%arg0: i32) -> (i32, i32) {
    %c0_i32 = arith.constant 0 : i32
    %c0_i32_0 = arith.constant 0 : i32
    %c0_i32_1 = arith.constant 0 : i32
    return %c0_i32, %c0_i32_0 : i32, i32
  }
  func.func @transform_1(%arg0: i32) -> (i32, i32) {
    %c0_i32 = arith.constant 0 : i32
    %c0_i32_0 = arith.constant 0 : i32
    %c0_i32_1 = arith.constant 0 : i32
    return %c0_i32, %c0_i32_0 : i32, i32
  }
  func.func @transform_2(%arg0: i32) -> (i32, i32) {
    %c0_i32 = arith.constant 0 : i32
    %c0_i32_0 = arith.constant 0 : i32
    %c0_i32_1 = arith.constant 0 : i32
    return %c0_i32, %c0_i32_0 : i32, i32
  }
  func.func @transform_3(%arg0: i32) -> (i32, i32, i32) {
    %c0_i32 = arith.constant 0 : i32
    %c0_i32_0 = arith.constant 0 : i32
    %c0_i32_1 = arith.constant 0 : i32
    return %arg0, %c0_i32, %c0_i32_0 : i32, i32, i32
  }
  func.func @transform_4(%arg0: i32) -> (i32, i32) {
    %c0_i32 = arith.constant 0 : i32
    %c0_i32_0 = arith.constant 0 : i32
    %c0_i32_1 = arith.constant 0 : i32
    return %c0_i32, %c0_i32_0 : i32, i32
  }
  func.func @transform_5(%arg0: i32) -> (i32, i32) {
    %c0_i32 = arith.constant 0 : i32
    %c0_i32_0 = arith.constant 0 : i32
    %c0_i32_1 = arith.constant 0 : i32
    return %c0_i32, %c0_i32_0 : i32, i32
  }
  func.func @transform_6(%arg0: i32) -> (i32, i32) {
    %c0_i32 = arith.constant 0 : i32
    %c0_i32_0 = arith.constant 0 : i32
    %c0_i32_1 = arith.constant 0 : i32
    return %c0_i32, %c0_i32_0 : i32, i32
  }
  func.func @transform_7(%arg0: i32) -> (i32, i32) {
    %c0_i32 = arith.constant 0 : i32
    %c0_i32_0 = arith.constant 0 : i32
    %c0_i32_1 = arith.constant 0 : i32
    return %c0_i32, %c0_i32_0 : i32, i32
  }
}

</mosaic_0001>

<llo_original>
// kernel: net_cnn_simp_forward.1
$region0: #{net_cnn_simp_forward.1}
  #allocation0 [shape = 'u32[]', space=smem, size = 0x4, offset = 0x4, fixed_abs, tag = 'smem constant byte address 0x4 - core index']
  #allocation1 [shape = 'u32[72,128]{1,0:T(1,128)}', space=vmem, size = 0x9000, scoped, tag = 'internal scratch']
  #allocation2 [shape = 'bf16[128,64]{1,0:T(8,128)(2,1)}', space=vmem, size = 0x8000, scoped, tag = 'scratch operand']
  #allocation3 [shape = 'f32[2,512]{1,0:T(2,128)}', space=vmem, size = 0x1000, scoped, tag = 'scratch operand']
  #allocation4 [shape = 'f32[1,1]{1,0:T(1,128)S(6)}', space=smem, size = 0x200, scoped, tag = 'scoped memory for net_cnn_simp_forward.1']
  %s0 = inlined_call_operand.vmem [shape: f32[128,9], index: 0, kind: input, shape index: {}]
  %s1 = inlined_call_operand.hbm [shape: f32[9,64], index: 1, kind: input, shape index: {}]
  %s2 = inlined_call_operand.hbm [shape: f32[1,64], index: 2, kind: input, shape index: {}]
  %s3 = inlined_call_operand.hbm [shape: bf16[64,64,512], index: 3, kind: input, shape index: {}]
  %s4 = inlined_call_operand.hbm [shape: f32[1,512], index: 4, kind: input, shape index: {}]
  %s5 = inlined_call_operand.vmem [shape: f32[512,1], index: 5, kind: input, shape index: {}]
  %s6 = inlined_call_operand.<no memory space> [shape: f32[1,1], index: 6, kind: input, shape index: {}]
  %s7 = inlined_call_operand.vmem [shape: f32[2,1], index: 7, kind: output, shape index: {}]
  %s8 = sld [smem:[#allocation0]]
  $region85: #{net_cnn_simp_forward.1} parent=0
    _
  %s10 = ssub.s32 1, %s8
  %s11 = scalar_select 0, %s10, %s8
  %12 = sst [smem:[#allocation4]] %s6
  $region1: #{net_cnn_simp_forward.1} parent=0
    #allocation5 [shape = 'u8[8192]{0}', space=vmem, size = 0x2000, scoped, tag = 'input window, operand 1, single buffered']
    #allocation6 [shape = 's32[2]{0}', space=sflag, size = 0x8, scoped, tag = 'scoped memory for net_cnn_simp_forward.1']
    #allocation7 [shape = 'u8[512]{0}', space=vmem, size = 0x400, scoped, tag = 'input window, operand 2, single buffered']
    #allocation8 [shape = 's32[1]{0}', space=sflag, size = 0x4, scoped, tag = 'scoped memory for net_cnn_simp_forward.1']
    #allocation9 [shape = 'u8[2097152]{0}', space=vmem, size = 0x200000, scoped, tag = 'input window, operand 3']
    #allocation10 [shape = 'u8[2048]{0}', space=vmem, size = 0x800, scoped, tag = 'input window, operand 4, single buffered']
    %13 = vsyncpa [#allocation6], 0
    %14 = vsyncpa [#allocation8], 0
    loop: start=0, step=1, limit=6
    $region2: #{net_cnn_simp_forward.1} parent=1 // loop_pre_header
      _
    $region3: #{net_cnn_simp_forward.1} parent=1 // loop_header
      %s16 = sphi 0, %s20
      %p17 = scmp.ge.s32.totalorder %s16, 6
      %s24 = sphi 0, %s24
      %s26 = sphi 0, %s24
      %s27 = sphi 0, %s26
      %s41 = sphi 0, %s27
      %s45 = sphi 0, %s45
      %s47 = sphi 0, %s45
      %s48 = sphi 0, %s47
      %s62 = sphi 0, %s48
      %s66 = sphi 0, %s66
      %s68 = sphi 0, %s66
      %s69 = sphi 0, %s68
      %s83 = sphi 0, %s69
      %s89 = sphi 0, %s91
      %s92 = sphi 0, %s89
      %s93 = sphi 0, %s92
      %s109 = sphi 0, %s93
      %s113 = sphi 0, %s113
      %s115 = sphi 0, %s113
      %s116 = sphi 0, %s115
      %s130 = sphi 0, %s116
      %s134 = sphi 0, %s134
      %s136 = sphi 0, %s134
      %s137 = sphi 0, %s136
      %s151 = sphi 0, %s137
      %s155 = sphi 0, %s155
      %s157 = sphi 0, %s155
      %s158 = sphi 0, %s157
      %s172 = sphi 0, %s158
      %s176 = sphi 0, %s176
      %s178 = sphi 0, %s176
      %s179 = sphi 0, %s178
      %s193 = sphi 0, %s179
    $region4: #{net_cnn_simp_forward.1} parent=1 // loop_header_branch
      %19 = sbr.rel (%p17) target = $region8
    $region5: #{net_cnn_simp_forward.1} parent=1 // loop_body
      %s21 = ssub.s32 %s16, 1
      %s22 = ssub.s32 %s16, 2
      %s23 = sadd.s32 %s16, 1
      %s25 = sadd.s32 %s24, 1
      %p28 = scmp.eq.s32.totalorder %s16, 3
      %p29 = scmp.ne.s32.totalorder %s24, %s26
      %p30 = scmp.eq.s32.totalorder %s16, 0
      %p31 = por %p29, %p30
      %p32 = scmp.ne.s32.totalorder %s24, %s26
      %p33 = scmp.eq.s32.totalorder %s21, 3
      %p34 = por %p32, %p33
      %p35 = scmp.ne.s32.totalorder %s26, %s27
      %p36 = scmp.eq.s32.totalorder %s21, 0
      %p37 = por %p35, %p36
      %p38 = scmp.ne.s32.totalorder %s26, %s27
      %p39 = scmp.eq.s32.totalorder %s22, 3
      %p40 = por %p38, %p39
      %p42 = scmp.ne.s32.totalorder %s27, %s41
      %p43 = scmp.eq.s32.totalorder %s22, 0
      %p44 = por %p42, %p43
      %s46 = sadd.s32 %s45, 1
      %p49 = scmp.eq.s32.totalorder %s16, 3
      %p50 = scmp.ne.s32.totalorder %s45, %s47
      %p51 = scmp.eq.s32.totalorder %s16, 0
      %p52 = por %p50, %p51
      %p53 = scmp.ne.s32.totalorder %s45, %s47
      %p54 = scmp.eq.s32.totalorder %s21, 3
      %p55 = por %p53, %p54
      %p56 = scmp.ne.s32.totalorder %s47, %s48
      %p57 = scmp.eq.s32.totalorder %s21, 0
      %p58 = por %p56, %p57
      %p59 = scmp.ne.s32.totalorder %s47, %s48
      %p60 = scmp.eq.s32.totalorder %s22, 3
      %p61 = por %p59, %p60
      %p63 = scmp.ne.s32.totalorder %s48, %s62
      %p64 = scmp.eq.s32.totalorder %s22, 0
      %p65 = por %p63, %p64
      %s67 = sadd.s32 %s66, 1
      %p70 = scmp.eq.s32.totalorder %s16, 3
      %p71 = scmp.ne.s32.totalorder %s66, %s68
      %p72 = scmp.eq.s32.totalorder %s16, 0
      %p73 = por %p71, %p72
      %p74 = scmp.ne.s32.totalorder %s66, %s68
      %p75 = scmp.eq.s32.totalorder %s21, 3
      %p76 = por %p74, %p75
      %p77 = scmp.ne.s32.totalorder %s68, %s69
      %p78 = scmp.eq.s32.totalorder %s21, 0
      %p79 = por %p77, %p78
      %p80 = scmp.ne.s32.totalorder %s68, %s69
      %p81 = scmp.eq.s32.totalorder %s22, 3
      %p82 = por %p80, %p81
      %p84 = scmp.ne.s32.totalorder %s69, %s83
      %p85 = scmp.eq.s32.totalorder %s22, 0
      %p86 = por %p84, %p85
      %s87 = ssub.s32 %s16, %s23
      %p88 = scmp.eq.s32.totalorder %s87, 0
      %s90 = sadd.s32 %s89, 1
      %s91 = scalar_select %p88, %s89, %s90
      %p94 = pneg %p88
      %p95 = scmp.eq.s32.totalorder %s16, 3
      %p96 = por %p94, %p95
      %p97 = scmp.ne.s32.totalorder %s89, %s92
      %p98 = scmp.eq.s32.totalorder %s16, 0
      %p99 = por %p97, %p98
      %p100 = scmp.ne.s32.totalorder %s89, %s92
      %p101 = scmp.eq.s32.totalorder %s21, 3
      %p102 = por %p100, %p101
      %p103 = scmp.ne.s32.totalorder %s92, %s93
      %p104 = scmp.eq.s32.totalorder %s21, 0
      %p105 = por %p103, %p104
      %p106 = scmp.ne.s32.totalorder %s92, %s93
      %p107 = scmp.eq.s32.totalorder %s22, 3
      %p108 = por %p106, %p107
      %p110 = scmp.ne.s32.totalorder %s93, %s109
      %p111 = scmp.eq.s32.totalorder %s22, 0
      %p112 = por %p110, %p111
      %s114 = sadd.s32 %s113, 1
      %p117 = scmp.eq.s32.totalorder %s16, 3
      %p118 = scmp.ne.s32.totalorder %s113, %s115
      %p119 = scmp.eq.s32.totalorder %s16, 0
      %p120 = por %p118, %p119
      %p121 = scmp.ne.s32.totalorder %s113, %s115
      %p122 = scmp.eq.s32.totalorder %s21, 3
      %p123 = por %p121, %p122
      %p124 = scmp.ne.s32.totalorder %s115, %s116
      %p125 = scmp.eq.s32.totalorder %s21, 0
      %p126 = por %p124, %p125
      %p127 = scmp.ne.s32.totalorder %s115, %s116
      %p128 = scmp.eq.s32.totalorder %s22, 3
      %p129 = por %p127, %p128
      %p131 = scmp.ne.s32.totalorder %s116, %s130
      %p132 = scmp.eq.s32.totalorder %s22, 0
      %p133 = por %p131, %p132
      %s135 = sadd.s32 %s134, 1
      %p138 = scmp.eq.s32.totalorder %s16, 3
      %p139 = scmp.ne.s32.totalorder %s134, %s136
      %p140 = scmp.eq.s32.totalorder %s16, 0
      %p141 = por %p139, %p140
      %p142 = scmp.ne.s32.totalorder %s134, %s136
      %p143 = scmp.eq.s32.totalorder %s21, 3
      %p144 = por %p142, %p143
      %p145 = scmp.ne.s32.totalorder %s136, %s137
      %p146 = scmp.eq.s32.totalorder %s21, 0
      %p147 = por %p145, %p146
      %p148 = scmp.ne.s32.totalorder %s136, %s137
      %p149 = scmp.eq.s32.totalorder %s22, 3
      %p150 = por %p148, %p149
      %p152 = scmp.ne.s32.totalorder %s137, %s151
      %p153 = scmp.eq.s32.totalorder %s22, 0
      %p154 = por %p152, %p153
      %s156 = sadd.s32 %s155, 1
      %p159 = scmp.eq.s32.totalorder %s16, 3
      %p160 = scmp.ne.s32.totalorder %s155, %s157
      %p161 = scmp.eq.s32.totalorder %s16, 0
      %p162 = por %p160, %p161
      %p163 = scmp.ne.s32.totalorder %s155, %s157
      %p164 = scmp.eq.s32.totalorder %s21, 3
      %p165 = por %p163, %p164
      %p166 = scmp.ne.s32.totalorder %s157, %s158
      %p167 = scmp.eq.s32.totalorder %s21, 0
      %p168 = por %p166, %p167
      %p169 = scmp.ne.s32.totalorder %s157, %s158
      %p170 = scmp.eq.s32.totalorder %s22, 3
      %p171 = por %p169, %p170
      %p173 = scmp.ne.s32.totalorder %s158, %s172
      %p174 = scmp.eq.s32.totalorder %s22, 0
      %p175 = por %p173, %p174
      %s177 = sadd.s32 %s176, 1
      %p180 = scmp.eq.s32.totalorder %s16, 3
      %p181 = scmp.ne.s32.totalorder %s176, %s178
      %p182 = scmp.eq.s32.totalorder %s16, 0
      %p183 = por %p181, %p182
      %p184 = scmp.ne.s32.totalorder %s176, %s178
      %p185 = scmp.eq.s32.totalorder %s21, 3
      %p186 = por %p184, %p185
      %p187 = scmp.ne.s32.totalorder %s178, %s179
      %p188 = scmp.eq.s32.totalorder %s21, 0
      %p189 = por %p187, %p188
      %p190 = scmp.ne.s32.totalorder %s178, %s179
      %p191 = scmp.eq.s32.totalorder %s22, 3
      %p192 = por %p190, %p191
      %p194 = scmp.ne.s32.totalorder %s179, %s193
      %p195 = scmp.eq.s32.totalorder %s22, 0
      %p196 = por %p194, %p195
      %p197 = scmp.le.s32.totalorder 1, %s16
      %p198 = scmp.lt.s32.totalorder %s16, 5
      %p199 = pnand %p197, %p198
      %p200 = pneg %p199
      // Predicated region
      $region9: #{net_cnn_simp_forward.1} parent=5 // pred_check
        _
      $region10: #{net_cnn_simp_forward.1} parent=5 // pred_check_branch
        %202 = sbr.rel (%p199) target = $region12
      $region11: #{net_cnn_simp_forward.1} parent=5 // pred_region
        %s203 = ssub.s32 %s16, 1
        // Predicated region
        $region13: #{net_cnn_simp_forward.1} parent=11 // pred_check
          %p204 = pneg %p37
        $region14: #{net_cnn_simp_forward.1} parent=11 // pred_check_branch
          %206 = sbr.rel (%p204) target = $region16
        $region15: #{net_cnn_simp_forward.1} parent=11 // pred_region
          _
        $region16: #{net_cnn_simp_forward.1} parent=11 // pred_fallthru
          _
        // Predicated region
        $region17: #{net_cnn_simp_forward.1} parent=11 // pred_check
          %p207 = pneg %p58
        $region18: #{net_cnn_simp_forward.1} parent=11 // pred_check_branch
          %209 = sbr.rel (%p207) target = $region20
        $region19: #{net_cnn_simp_forward.1} parent=11 // pred_region
          %211 = vsyncadd [#allocation6], 0
          %s212 = sshll.u32 %s1, 4
          %s213 = int_to_ptr.hbm [resolvable:$true] %s212
          %s214 = sshll.u32 [#allocation5], 4
          %s215 = int_to_ptr.vmem [resolvable:$true] %s214
          %220 = dma.hbm_to_vmem [thread:$0]  %s213, 256, %s215, [#allocation6], 128, 128, 8
        $region20: #{net_cnn_simp_forward.1} parent=11 // pred_fallthru
          _
        // Predicated region
        $region21: #{net_cnn_simp_forward.1} parent=11 // pred_check
          %p221 = pneg %p79
        $region22: #{net_cnn_simp_forward.1} parent=11 // pred_check_branch
          %223 = sbr.rel (%p221) target = $region24
        $region23: #{net_cnn_simp_forward.1} parent=11 // pred_region
          %225 = vsyncadd [#allocation8], 0
          %s227 = sshll.u32 %s2, 4
          %s228 = int_to_ptr.hbm [resolvable:$true] %s227
          %s229 = sshll.u32 [#allocation7], 4
          %s230 = int_to_ptr.vmem [resolvable:$true] %s229
          %232 = dma.hbm_to_vmem [thread:$0]  %s228, 16, %s230, [#allocation8]
        $region24: #{net_cnn_simp_forward.1} parent=11 // pred_fallthru
          _
        // Predicated region
        $region25: #{net_cnn_simp_forward.1} parent=11 // pred_check
          %p233 = pneg %p126
        $region26: #{net_cnn_simp_forward.1} parent=11 // pred_check_branch
          %235 = sbr.rel (%p233) target = $region28
        $region27: #{net_cnn_simp_forward.1} parent=11 // pred_region
          %237 = vsyncadd [#allocation8], 0
          %s239 = sshll.u32 %s4, 4
          %s240 = int_to_ptr.hbm [resolvable:$true] %s239
          %s241 = sshll.u32 [#allocation10], 4
          %s242 = int_to_ptr.vmem [resolvable:$true] %s241
          %244 = dma.hbm_to_vmem [thread:$0]  %s240, 64, %s242, [#allocation8]
        $region28: #{net_cnn_simp_forward.1} parent=11 // pred_fallthru
          _
        // Predicated region
        $region29: #{net_cnn_simp_forward.1} parent=11 // pred_check
          %p245 = pneg %p147
        $region30: #{net_cnn_simp_forward.1} parent=11 // pred_check_branch
          %247 = sbr.rel (%p245) target = $region32
        $region31: #{net_cnn_simp_forward.1} parent=11 // pred_region
          _
        $region32: #{net_cnn_simp_forward.1} parent=11 // pred_fallthru
          _
        // Predicated region
        $region33: #{net_cnn_simp_forward.1} parent=11 // pred_check
          %p248 = pneg %p168
        $region34: #{net_cnn_simp_forward.1} parent=11 // pred_check_branch
          %250 = sbr.rel (%p248) target = $region36
        $region35: #{net_cnn_simp_forward.1} parent=11 // pred_region
          _
        $region36: #{net_cnn_simp_forward.1} parent=11 // pred_fallthru
          _
      $region12: #{net_cnn_simp_forward.1} parent=5 // pred_fallthru
        _
      %p251 = scmp.lt.s32.totalorder %s16, 4
      // Predicated region
      $region37: #{net_cnn_simp_forward.1} parent=5 // pred_check
        %p252 = pneg %p251
      $region38: #{net_cnn_simp_forward.1} parent=5 // pred_check_branch
        %254 = sbr.rel (%p252) target = $region40
      $region39: #{net_cnn_simp_forward.1} parent=5 // pred_region
        // Predicated region
        $region41: #{net_cnn_simp_forward.1} parent=39 // pred_check
          %p255 = pneg %p99
        $region42: #{net_cnn_simp_forward.1} parent=39 // pred_check_branch
          %257 = sbr.rel (%p255) target = $region44
        $region43: #{net_cnn_simp_forward.1} parent=39 // pred_region
          %s258 = sand.u32 %s16, 1
          %s259 = scalar_lea.sflag [#allocation6], %s258
          %s260 = sand.u32 %s89, 1
          %s261 = smul.addr %s260, 2048
          %s262 = scalar_lea.vmem [#allocation9], %s261
          %s263 = smul.u32 16, %s16
          %265 = vsyncadd %s259, 0
          %s266 = smul.addr %s263, 32
          %s267 = smul.addr %s266, 4
          %s268 = scalar_lea.hbm %s3, %s267
          %s269 = sshll.u32 %s268, 4
          %s270 = int_to_ptr.hbm [resolvable:$true] %s269
          %s271 = sshll.u32 %s262, 4
          %s272 = int_to_ptr.vmem [resolvable:$true] %s271
          %277 = dma.hbm_to_vmem [thread:$0]  %s270, 32768, %s272, %s259, 256, 256, 16
        $region44: #{net_cnn_simp_forward.1} parent=39 // pred_fallthru
          _
      $region40: #{net_cnn_simp_forward.1} parent=5 // pred_fallthru
        _
      %p278 = scmp.le.s32.totalorder 1, %s16
      %p279 = scmp.lt.s32.totalorder %s16, 5
      %p280 = pnand %p278, %p279
      %p281 = pneg %p280
      // Predicated region
      $region45: #{net_cnn_simp_forward.1} parent=5 // pred_check
        _
      $region46: #{net_cnn_simp_forward.1} parent=5 // pred_check_branch
        %283 = sbr.rel (%p280) target = $region48
      $region47: #{net_cnn_simp_forward.1} parent=5 // pred_region
        %s284 = ssub.s32 %s16, 1
        // Predicated region
        $region49: #{net_cnn_simp_forward.1} parent=47 // pred_check
          %p285 = pneg %p58
        $region50: #{net_cnn_simp_forward.1} parent=47 // pred_check_branch
          %287 = sbr.rel (%p285) target = $region52
        $region51: #{net_cnn_simp_forward.1} parent=47 // pred_region
          %289 = dma.done [#allocation6], 256
        $region52: #{net_cnn_simp_forward.1} parent=47 // pred_fallthru
          _
        // Predicated region
        $region53: #{net_cnn_simp_forward.1} parent=47 // pred_check
          %p290 = pneg %p79
        $region54: #{net_cnn_simp_forward.1} parent=47 // pred_check_branch
          %292 = sbr.rel (%p290) target = $region56
        $region55: #{net_cnn_simp_forward.1} parent=47 // pred_region
          %294 = dma.done [#allocation8], 16
        $region56: #{net_cnn_simp_forward.1} parent=47 // pred_fallthru
          _
        %s295 = sand.u32 %s21, 1
        %s296 = scalar_lea.sflag [#allocation6], %s295
        %s297 = sand.u32 %s92, 1
        %s298 = smul.addr %s297, 2048
        %s299 = scalar_lea.vmem [#allocation9], %s298
        // Predicated region
        $region57: #{net_cnn_simp_forward.1} parent=47 // pred_check
          %p300 = pneg %p105
        $region58: #{net_cnn_simp_forward.1} parent=47 // pred_check_branch
          %302 = sbr.rel (%p300) target = $region60
        $region59: #{net_cnn_simp_forward.1} parent=47 // pred_region
          %304 = dma.done %s296, 32768
        $region60: #{net_cnn_simp_forward.1} parent=47 // pred_fallthru
          _
        // Predicated region
        $region61: #{net_cnn_simp_forward.1} parent=47 // pred_check
          %p305 = pneg %p126
        $region62: #{net_cnn_simp_forward.1} parent=47 // pred_check_branch
          %307 = sbr.rel (%p305) target = $region64
        $region63: #{net_cnn_simp_forward.1} parent=47 // pred_region
          %309 = dma.done [#allocation8], 64
        $region64: #{net_cnn_simp_forward.1} parent=47 // pred_fallthru
          _
        %p310 = pneg %p37
        %p311 = pneg %p34
        %p312 = pneg %p58
        %p313 = pneg %p55
        %p314 = pneg %p79
        %p315 = pneg %p76
        %s316 = sand.u32 %s21, 1
        %s317 = scalar_lea.sflag [#allocation6], %s316
        %s318 = sand.u32 %s92, 1
        %s319 = smul.addr %s318, 2048
        %s320 = scalar_lea.vmem [#allocation9], %s319
        %p321 = pneg %p105
        %p322 = pneg %p102
        %p323 = pneg %p126
        %p324 = pneg %p123
        %p325 = pneg %p147
        %p326 = pneg %p144
        %p327 = pneg %p168
        %p328 = pneg %p165
        %p329 = pneg %p189
        %p330 = pneg %p186
        %s331 = smul.u32 16, %s21
        %p333 = scmp.eq.s32.totalorder %s21, 0
        // Predicated region
        $region65: #{net_cnn_simp_forward.1} parent=47 // pred_check
          %p334 = pneg %p333
        $region66: #{net_cnn_simp_forward.1} parent=47 // pred_check_branch
          %336 = sbr.rel (%p334) target = $region68
        $region67: #{net_cnn_simp_forward.1} parent=47 // pred_region
          %v337 = vld [vmem:[%s0] sm:$0xff]
          %v338 = vld [vmem:[%s0 + $0x8] sm:$0xff]
          %v339 = vld [vmem:[%s0 + $0x10] sm:$0xff]
          %v340 = vld [vmem:[%s0 + $0x18] sm:$0xff]
          %v341 = vld [vmem:[%s0 + $0x20] sm:$0xff]
          %v342 = vld [vmem:[%s0 + $0x28] sm:$0xff]
          %v343 = vld [vmem:[%s0 + $0x30] sm:$0xff]
          %v344 = vld [vmem:[%s0 + $0x38] sm:$0xff]
          %v345 = vld [vmem:[%s0 + $0x40] sm:$0xff]
          %v346 = vld [vmem:[%s0 + $0x48] sm:$0xff]
          %v347 = vld [vmem:[%s0 + $0x50] sm:$0xff]
          %v348 = vld [vmem:[%s0 + $0x58] sm:$0xff]
          %v349 = vld [vmem:[%s0 + $0x60] sm:$0xff]
          %v350 = vld [vmem:[%s0 + $0x68] sm:$0xff]
          %v351 = vld [vmem:[%s0 + $0x70] sm:$0xff]
          %v352 = vld [vmem:[%s0 + $0x78] sm:$0xff]
          %v353 = vld [vmem:[#allocation5] sm:$0xff]
          %v354 = vld [vmem:[#allocation5 + $0x8] sm:$0x1]
          %v355 = vld [vmem:[#allocation7] sm:$0x1]
          %v357 = vperm.slane %v355, 0
          %vm359 = vcmask 72704
          %v361 = vsel %vm359, %v337, 0
          %v364 = vsel %vm359, %v338, 0
          %v367 = vsel %vm359, %v339, 0
          %v370 = vsel %vm359, %v340, 0
          %v373 = vsel %vm359, %v341, 0
          %v376 = vsel %vm359, %v342, 0
          %v379 = vsel %vm359, %v343, 0
          %v382 = vsel %vm359, %v344, 0
          %v385 = vsel %vm359, %v345, 0
          %v388 = vsel %vm359, %v346, 0
          %v391 = vsel %vm359, %v347, 0
          %v394 = vsel %vm359, %v348, 0
          %v397 = vsel %vm359, %v349, 0
          %v400 = vsel %vm359, %v350, 0
          %v403 = vsel %vm359, %v351, 0
          %v406 = vsel %vm359, %v352, 0
          %vm408 = vcmask 1040384
          %v410 = vsel %vm408, %v354, 0
          %412 = vmatpush.msra.mxu0 0.0
          %413 = vmatpush.msra.mxu0 0.0
          %414 = vmatpush.msra.mxu0 0.0
          %415 = vmatpush.msra.mxu0 0.0
          %416 = vmatpush.msra.mxu0 0.0
          %417 = vmatpush.msra.mxu0 0.0
          %418 = vmatpush.msra.mxu0 0.0
          %419 = vmatpush.msra.mxu0 0.0
          %420 = vmatpush.msra.mxu0 0.0
          %421 = vmatpush.msra.mxu0 0.0
          %422 = vmatpush.msra.mxu0 0.0
          %423 = vmatpush.msra.mxu0 0.0
          %424 = vmatpush.msra.mxu0 0.0
          %425 = vmatpush.msra.mxu0 0.0
          %426 = vmatpush.msra.mxu0 %v410
          %427 = vmatpush.msra.mxu0 %v353
          %428 = vmatmul.f32.gmra.mxu0 %v361
          %v429 = vpop.f32.mrf.mxu0
          %v430 = vadd.f32 %v357, %v429
          %431 = vmatmul.f32.gmra.mxu0 %v364
          %v432 = vpop.f32.mrf.mxu0
          %v433 = vadd.f32 %v357, %v432
          %434 = vmatmul.f32.gmra.mxu0 %v367
          %v435 = vpop.f32.mrf.mxu0
          %v436 = vadd.f32 %v357, %v435
          %437 = vmatmul.f32.gmra.mxu0 %v370
          %v438 = vpop.f32.mrf.mxu0
          %v439 = vadd.f32 %v357, %v438
          %440 = vmatmul.f32.gmra.mxu0 %v373
          %v441 = vpop.f32.mrf.mxu0
          %v442 = vadd.f32 %v357, %v441
          %443 = vmatmul.f32.gmra.mxu0 %v376
          %v444 = vpop.f32.mrf.mxu0
          %v445 = vadd.f32 %v357, %v444
          %446 = vmatmul.f32.gmra.mxu0 %v379
          %v447 = vpop.f32.mrf.mxu0
          %v448 = vadd.f32 %v357, %v447
          %449 = vmatmul.f32.gmra.mxu0 %v382
          %v450 = vpop.f32.mrf.mxu0
          %v451 = vadd.f32 %v357, %v450
          %452 = vmatmul.f32.gmra.mxu0 %v385
          %v453 = vpop.f32.mrf.mxu0
          %v454 = vadd.f32 %v357, %v453
          %455 = vmatmul.f32.gmra.mxu0 %v388
          %v456 = vpop.f32.mrf.mxu0
          %v457 = vadd.f32 %v357, %v456
          %458 = vmatmul.f32.gmra.mxu0 %v391
          %v459 = vpop.f32.mrf.mxu0
          %v460 = vadd.f32 %v357, %v459
          %461 = vmatmul.f32.gmra.mxu0 %v394
          %v462 = vpop.f32.mrf.mxu0
          %v463 = vadd.f32 %v357, %v462
          %464 = vmatmul.f32.gmra.mxu0 %v397
          %v465 = vpop.f32.mrf.mxu0
          %v466 = vadd.f32 %v357, %v465
          %467 = vmatmul.f32.gmra.mxu0 %v400
          %v468 = vpop.f32.mrf.mxu0
          %v469 = vadd.f32 %v357, %v468
          %470 = vmatmul.f32.gmra.mxu0 %v403
          %v471 = vpop.f32.mrf.mxu0
          %v472 = vadd.f32 %v357, %v471
          %473 = vmatmul.f32.gmra.mxu0 %v406
          %v474 = vpop.f32.mrf.mxu0
          %v475 = vadd.f32 %v357, %v474
          %476 = vdwg.mxu0
          %v477 = vmax.f32 %v430, 0.0
          %v478 = vmax.f32 %v433, 0.0
          %v479 = vmax.f32 %v436, 0.0
          %v480 = vmax.f32 %v439, 0.0
          %v481 = vmax.f32 %v442, 0.0
          %v482 = vmax.f32 %v445, 0.0
          %v483 = vmax.f32 %v448, 0.0
          %v484 = vmax.f32 %v451, 0.0
          %v485 = vmax.f32 %v454, 0.0
          %v486 = vmax.f32 %v457, 0.0
          %v487 = vmax.f32 %v460, 0.0
          %v488 = vmax.f32 %v463, 0.0
          %v489 = vmax.f32 %v466, 0.0
          %v490 = vmax.f32 %v469, 0.0
          %v491 = vmax.f32 %v472, 0.0
          %v492 = vmax.f32 %v475, 0.0
          %v493 = vpack.c.bf16 %v477, %v477
          %v494 = vpack.c.bf16 %v478, %v478
          %v495 = vpack.c.bf16 %v479, %v479
          %v496 = vpack.c.bf16 %v480, %v480
          %v497 = vpack.c.bf16 %v481, %v481
          %v498 = vpack.c.bf16 %v482, %v482
          %v499 = vpack.c.bf16 %v483, %v483
          %v500 = vpack.c.bf16 %v484, %v484
          %v501 = vpack.c.bf16 %v485, %v485
          %v502 = vpack.c.bf16 %v486, %v486
          %v503 = vpack.c.bf16 %v487, %v487
          %v504 = vpack.c.bf16 %v488, %v488
          %v505 = vpack.c.bf16 %v489, %v489
          %v506 = vpack.c.bf16 %v490, %v490
          %v507 = vpack.c.bf16 %v491, %v491
          %v508 = vpack.c.bf16 %v492, %v492
          %vm509 = vcmask 519168
          %510 = vst.msk [vmem:[#allocation2] sm:$0xf] %vm509, %v493
          %511 = vst.msk [vmem:[#allocation2 + $0x4] sm:$0xf] %vm509, %v494
          %512 = vst.msk [vmem:[#allocation2 + $0x8] sm:$0xf] %vm509, %v495
          %513 = vst.msk [vmem:[#allocation2 + $0xc] sm:$0xf] %vm509, %v496
          %514 = vst.msk [vmem:[#allocation2 + $0x10] sm:$0xf] %vm509, %v497
          %515 = vst.msk [vmem:[#allocation2 + $0x14] sm:$0xf] %vm509, %v498
          %516 = vst.msk [vmem:[#allocation2 + $0x18] sm:$0xf] %vm509, %v499
          %517 = vst.msk [vmem:[#allocation2 + $0x1c] sm:$0xf] %vm509, %v500
          %518 = vst.msk [vmem:[#allocation2 + $0x20] sm:$0xf] %vm509, %v501
          %519 = vst.msk [vmem:[#allocation2 + $0x24] sm:$0xf] %vm509, %v502
          %520 = vst.msk [vmem:[#allocation2 + $0x28] sm:$0xf] %vm509, %v503
          %521 = vst.msk [vmem:[#allocation2 + $0x2c] sm:$0xf] %vm509, %v504
          %522 = vst.msk [vmem:[#allocation2 + $0x30] sm:$0xf] %vm509, %v505
          %523 = vst.msk [vmem:[#allocation2 + $0x34] sm:$0xf] %vm509, %v506
          %524 = vst.msk [vmem:[#allocation2 + $0x38] sm:$0xf] %vm509, %v507
          %525 = vst.msk [vmem:[#allocation2 + $0x3c] sm:$0xf] %vm509, %v508
          %526 = vst [vmem:[#allocation3] sm:$0xff] 0.0
        $region68: #{net_cnn_simp_forward.1} parent=47 // pred_fallthru
          _
        %s527 = smul.u32 %s21, 32
        %s528 = sshra.s32 %s527, 3
        %s529 = sand.u32 %s527, 7
        %s530 = smul.addr %s528, 4
        %s531 = scalar_lea.vmem [#allocation2], %s530
        %v532 = vld [vmem:[%s531] sm:$0xf]
        %v533 = vld [vmem:[%s531 + $0x4] sm:$0xf]
        %v534 = vld [vmem:[%s531 + $0x8] sm:$0xf]
        %v535 = vld [vmem:[%s531 + $0xc] sm:$0xf]
        %v536 = vld [vmem:[#allocation3] sm:$0xff]
        %v537 = vld [vmem:[%s299] sm:$0xff]
        %v538 = vld [vmem:[%s299 + $0x8] sm:$0xff]
        %v539 = vld [vmem:[%s299 + $0x10] sm:$0xff]
        %v540 = vld [vmem:[%s299 + $0x18] sm:$0xff]
        %v541 = vld [vmem:[%s299 + $0x20] sm:$0xff]
        %v542 = vld [vmem:[%s299 + $0x28] sm:$0xff]
        %v543 = vld [vmem:[%s299 + $0x30] sm:$0xff]
        %v544 = vld [vmem:[%s299 + $0x38] sm:$0xff]
        %v545 = vld [vmem:[%s299 + $0x40] sm:$0xff]
        %v546 = vld [vmem:[%s299 + $0x48] sm:$0xff]
        %v547 = vld [vmem:[%s299 + $0x50] sm:$0xff]
        %v548 = vld [vmem:[%s299 + $0x58] sm:$0xff]
        %v549 = vld [vmem:[%s299 + $0x60] sm:$0xff]
        %v550 = vld [vmem:[%s299 + $0x68] sm:$0xff]
        %v551 = vld [vmem:[%s299 + $0x70] sm:$0xff]
        %v552 = vld [vmem:[%s299 + $0x78] sm:$0xff]
        %v569 = vunpack.c.l.b16 %v537
        %v570 = vunpack.c.h.b16 %v537
        %v571 = vunpack.c.l.b16 %v538
        %v572 = vunpack.c.h.b16 %v538
        %v573 = vunpack.c.l.b16 %v539
        %v574 = vunpack.c.h.b16 %v539
        %v575 = vunpack.c.l.b16 %v540
        %v576 = vunpack.c.h.b16 %v540
        %v577 = vunpack.c.l.b16 %v541
        %v578 = vunpack.c.h.b16 %v541
        %v579 = vunpack.c.l.b16 %v542
        %v580 = vunpack.c.h.b16 %v542
        %v581 = vunpack.c.l.b16 %v543
        %v582 = vunpack.c.h.b16 %v543
        %v583 = vunpack.c.l.b16 %v544
        %v584 = vunpack.c.h.b16 %v544
        %v585 = vunpack.c.l.b16 %v545
        %v586 = vunpack.c.h.b16 %v545
        %v587 = vunpack.c.l.b16 %v546
        %v588 = vunpack.c.h.b16 %v546
        %v589 = vunpack.c.l.b16 %v547
        %v590 = vunpack.c.h.b16 %v547
        %v591 = vunpack.c.l.b16 %v548
        %v592 = vunpack.c.h.b16 %v548
        %v593 = vunpack.c.l.b16 %v549
        %v594 = vunpack.c.h.b16 %v549
        %v595 = vunpack.c.l.b16 %v550
        %v596 = vunpack.c.h.b16 %v550
        %v597 = vunpack.c.l.b16 %v551
        %v598 = vunpack.c.h.b16 %v551
        %v599 = vunpack.c.l.b16 %v552
        %v600 = vunpack.c.h.b16 %v552
        %v601 = vpack.c.b16 %v573, %v569
        %v602 = vpack.c.b16 %v574, %v570
        %v603 = vpack.c.b16 %v575, %v571
        %v604 = vpack.c.b16 %v576, %v572
        %v605 = vpack.c.b16 %v581, %v577
        %v606 = vpack.c.b16 %v582, %v578
        %v607 = vpack.c.b16 %v583, %v579
        %v608 = vpack.c.b16 %v584, %v580
        %v609 = vpack.c.b16 %v589, %v585
        %v610 = vpack.c.b16 %v590, %v586
        %v611 = vpack.c.b16 %v591, %v587
        %v612 = vpack.c.b16 %v592, %v588
        %v613 = vpack.c.b16 %v597, %v593
        %v614 = vpack.c.b16 %v598, %v594
        %v615 = vpack.c.b16 %v599, %v595
        %v616 = vpack.c.b16 %v600, %v596
        %vm633 = vcmask 523264
        %v635 = vsel %vm633, %v532, 0
        %637 = vmatpush.bf16.msra.mxu0 0
        %638 = vmatpush.bf16.msra.mxu0 0
        %639 = vmatpush.bf16.msra.mxu0 0
        %640 = vmatpush.bf16.msra.mxu0 0
        %641 = vmatpush.bf16.msra.mxu0 %v613
        %642 = vmatpush.bf16.msra.mxu0 %v609
        %643 = vmatpush.bf16.msra.mxu0 %v605
        %644 = vmatpush.bf16.msra.mxu0 %v601
        %645 = vmatmul.bf16.gmra.mxu0 %v635
        %v646 = vpop.f32.mrf.mxu0
        %v647 = vadd.f32 0.0, %v646
        %v648 = vpop.f32.mrf.mxu0
        %649 = vdwg.mxu0
        %650 = vmatpush.bf16.msra.mxu0 0
        %651 = vmatpush.bf16.msra.mxu0 0
        %652 = vmatpush.bf16.msra.mxu0 0
        %653 = vmatpush.bf16.msra.mxu0 0
        %654 = vmatpush.bf16.msra.mxu0 %v614
        %655 = vmatpush.bf16.msra.mxu0 %v610
        %656 = vmatpush.bf16.msra.mxu0 %v606
        %657 = vmatpush.bf16.msra.mxu0 %v602
        %658 = vmatmul.bf16.gmra.mxu0 %v635
        %v659 = vpop.f32.mrf.mxu0
        %v660 = vadd.f32 0.0, %v659
        %v661 = vpop.f32.mrf.mxu0
        %662 = vdwg.mxu0
        %663 = vmatpush.bf16.msra.mxu0 0
        %664 = vmatpush.bf16.msra.mxu0 0
        %665 = vmatpush.bf16.msra.mxu0 0
        %666 = vmatpush.bf16.msra.mxu0 0
        %667 = vmatpush.bf16.msra.mxu0 %v615
        %668 = vmatpush.bf16.msra.mxu0 %v611
        %669 = vmatpush.bf16.msra.mxu0 %v607
        %670 = vmatpush.bf16.msra.mxu0 %v603
        %671 = vmatmul.bf16.gmra.mxu0 %v635
        %v672 = vpop.f32.mrf.mxu0
        %v673 = vadd.f32 0.0, %v672
        %v674 = vpop.f32.mrf.mxu0
        %675 = vdwg.mxu0
        %676 = vmatpush.bf16.msra.mxu0 0
        %677 = vmatpush.bf16.msra.mxu0 0
        %678 = vmatpush.bf16.msra.mxu0 0
        %679 = vmatpush.bf16.msra.mxu0 0
        %680 = vmatpush.bf16.msra.mxu0 %v616
        %681 = vmatpush.bf16.msra.mxu0 %v612
        %682 = vmatpush.bf16.msra.mxu0 %v608
        %683 = vmatpush.bf16.msra.mxu0 %v604
        %684 = vmatmul.bf16.gmra.mxu0 %v635
        %v685 = vpop.f32.mrf.mxu0
        %v686 = vadd.f32 0.0, %v685
        %v687 = vpop.f32.mrf.mxu0
        %688 = vdwg.mxu0
        %v693 = vrot.slane %v660, 6
        %v694 = vrot.slane %v673, 4
        %v695 = vrot.slane %v686, 2
        %vm696 = vcmask 1041408
        %v697 = vsel %vm696, %v647, %v693
        %vm698 = vcmask 1045508
        %v699 = vsel %vm698, %v694, %v695
        %vm700 = vcmask 1043456
        %v701 = vsel %vm700, %v697, %v699
        %v703 = vadd.f32 %v536, %v701
        %s704 = scalar_lea.vmem %s299, 128 [#allocation9]
        %v705 = vld [vmem:[%s704] sm:$0xff]
        %v706 = vld [vmem:[%s704 + $0x8] sm:$0xff]
        %v707 = vld [vmem:[%s704 + $0x10] sm:$0xff]
        %v708 = vld [vmem:[%s704 + $0x18] sm:$0xff]
        %v709 = vld [vmem:[%s704 + $0x20] sm:$0xff]
        %v710 = vld [vmem:[%s704 + $0x28] sm:$0xff]
        %v711 = vld [vmem:[%s704 + $0x30] sm:$0xff]
        %v712 = vld [vmem:[%s704 + $0x38] sm:$0xff]
        %v713 = vld [vmem:[%s704 + $0x40] sm:$0xff]
        %v714 = vld [vmem:[%s704 + $0x48] sm:$0xff]
        %v715 = vld [vmem:[%s704 + $0x50] sm:$0xff]
        %v716 = vld [vmem:[%s704 + $0x58] sm:$0xff]
        %v717 = vld [vmem:[%s704 + $0x60] sm:$0xff]
        %v718 = vld [vmem:[%s704 + $0x68] sm:$0xff]
        %v719 = vld [vmem:[%s704 + $0x70] sm:$0xff]
        %v720 = vld [vmem:[%s704 + $0x78] sm:$0xff]
        %v722 = vunpack.c.l.b16 %v532
        %v723 = vpack.c.b16 %v722, %v722
        %v724 = vrot.slane %v723, 1
        %v741 = vunpack.c.l.b16 %v705
        %v742 = vunpack.c.h.b16 %v705
        %v743 = vunpack.c.l.b16 %v706
        %v744 = vunpack.c.h.b16 %v706
        %v745 = vunpack.c.l.b16 %v707
        %v746 = vunpack.c.h.b16 %v707
        %v747 = vunpack.c.l.b16 %v708
        %v748 = vunpack.c.h.b16 %v708
        %v749 = vunpack.c.l.b16 %v709
        %v750 = vunpack.c.h.b16 %v709
        %v751 = vunpack.c.l.b16 %v710
        %v752 = vunpack.c.h.b16 %v710
        %v753 = vunpack.c.l.b16 %v711
        %v754 = vunpack.c.h.b16 %v711
        %v755 = vunpack.c.l.b16 %v712
        %v756 = vunpack.c.h.b16 %v712
        %v757 = vunpack.c.l.b16 %v713
        %v758 = vunpack.c.h.b16 %v713
        %v759 = vunpack.c.l.b16 %v714
        %v760 = vunpack.c.h.b16 %v714
        %v761 = vunpack.c.l.b16 %v715
        %v762 = vunpack.c.h.b16 %v715
        %v763 = vunpack.c.l.b16 %v716
        %v764 = vunpack.c.h.b16 %v716
        %v765 = vunpack.c.l.b16 %v717
        %v766 = vunpack.c.h.b16 %v717
        %v767 = vunpack.c.l.b16 %v718
        %v768 = vunpack.c.h.b16 %v718
        %v769 = vunpack.c.l.b16 %v719
        %v770 = vunpack.c.h.b16 %v719
        %v771 = vunpack.c.l.b16 %v720
        %v772 = vunpack.c.h.b16 %v720
        %v773 = vpack.c.b16 %v745, %v741
        %v774 = vpack.c.b16 %v746, %v742
        %v775 = vpack.c.b16 %v747, %v743
        %v776 = vpack.c.b16 %v748, %v744
        %v777 = vpack.c.b16 %v753, %v749
        %v778 = vpack.c.b16 %v754, %v750
        %v779 = vpack.c.b16 %v755, %v751
        %v780 = vpack.c.b16 %v756, %v752
        %v781 = vpack.c.b16 %v761, %v757
        %v782 = vpack.c.b16 %v762, %v758
        %v783 = vpack.c.b16 %v763, %v759
        %v784 = vpack.c.b16 %v764, %v760
        %v785 = vpack.c.b16 %v769, %v765
        %v786 = vpack.c.b16 %v770, %v766
        %v787 = vpack.c.b16 %v771, %v767
        %v788 = vpack.c.b16 %v772, %v768
        %v806 = vsel %vm633, %v724, 0
        %808 = vmatpush.bf16.msra.mxu0 0
        %809 = vmatpush.bf16.msra.mxu0 0
        %810 = vmatpush.bf16.msra.mxu0 0
        %811 = vmatpush.bf16.msra.mxu0 0
        %812 = vmatpush.bf16.msra.mxu0 %v785
        %813 = vmatpush.bf16.msra.mxu0 %v781
        %814 = vmatpush.bf16.msra.mxu0 %v777
        %815 = vmatpush.bf16.msra.mxu0 %v773
        %816 = vmatmul.bf16.gmra.mxu0 %v806
        %v817 = vpop.f32.mrf.mxu0
        %v818 = vadd.f32 0.0, %v817
        %v819 = vpop.f32.mrf.mxu0
        %820 = vdwg.mxu0
        %821 = vmatpush.bf16.msra.mxu0 0
        %822 = vmatpush.bf16.msra.mxu0 0
        %823 = vmatpush.bf16.msra.mxu0 0
        %824 = vmatpush.bf16.msra.mxu0 0
        %825 = vmatpush.bf16.msra.mxu0 %v786
        %826 = vmatpush.bf16.msra.mxu0 %v782
        %827 = vmatpush.bf16.msra.mxu0 %v778
        %828 = vmatpush.bf16.msra.mxu0 %v774
        %829 = vmatmul.bf16.gmra.mxu0 %v806
        %v830 = vpop.f32.mrf.mxu0
        %v831 = vadd.f32 0.0, %v830
        %v832 = vpop.f32.mrf.mxu0
        %833 = vdwg.mxu0
        %834 = vmatpush.bf16.msra.mxu0 0
        %835 = vmatpush.bf16.msra.mxu0 0
        %836 = vmatpush.bf16.msra.mxu0 0
        %837 = vmatpush.bf16.msra.mxu0 0
        %838 = vmatpush.bf16.msra.mxu0 %v787
        %839 = vmatpush.bf16.msra.mxu0 %v783
        %840 = vmatpush.bf16.msra.mxu0 %v779
        %841 = vmatpush.bf16.msra.mxu0 %v775
        %842 = vmatmul.bf16.gmra.mxu0 %v806
        %v843 = vpop.f32.mrf.mxu0
        %v844 = vadd.f32 0.0, %v843
        %v845 = vpop.f32.mrf.mxu0
        %846 = vdwg.mxu0
        %847 = vmatpush.bf16.msra.mxu0 0
        %848 = vmatpush.bf16.msra.mxu0 0
        %849 = vmatpush.bf16.msra.mxu0 0
        %850 = vmatpush.bf16.msra.mxu0 0
        %851 = vmatpush.bf16.msra.mxu0 %v788
        %852 = vmatpush.bf16.msra.mxu0 %v784
        %853 = vmatpush.bf16.msra.mxu0 %v780
        %854 = vmatpush.bf16.msra.mxu0 %v776
        %855 = vmatmul.bf16.gmra.mxu0 %v806
        %v856 = vpop.f32.mrf.mxu0
        %v857 = vadd.f32 0.0, %v856
        %v858 = vpop.f32.mrf.mxu0
        %859 = vdwg.mxu0
        %v864 = vrot.slane %v831, 6
        %v865 = vrot.slane %v844, 4
        %v866 = vrot.slane %v857, 2
        %v867 = vsel %vm696, %v818, %v864
        %v868 = vsel %vm698, %v865, %v866
        %v869 = vsel %vm700, %v867, %v868
        %v871 = vadd.f32 %v703, %v869
        %s872 = scalar_lea.vmem %s299, 256 [#allocation9]
        %v873 = vld [vmem:[%s872] sm:$0xff]
        %v874 = vld [vmem:[%s872 + $0x8] sm:$0xff]
        %v875 = vld [vmem:[%s872 + $0x10] sm:$0xff]
        %v876 = vld [vmem:[%s872 + $0x18] sm:$0xff]
        %v877 = vld [vmem:[%s872 + $0x20] sm:$0xff]
        %v878 = vld [vmem:[%s872 + $0x28] sm:$0xff]
        %v879 = vld [vmem:[%s872 + $0x30] sm:$0xff]
        %v880 = vld [vmem:[%s872 + $0x38] sm:$0xff]
        %v881 = vld [vmem:[%s872 + $0x40] sm:$0xff]
        %v882 = vld [vmem:[%s872 + $0x48] sm:$0xff]
        %v883 = vld [vmem:[%s872 + $0x50] sm:$0xff]
        %v884 = vld [vmem:[%s872 + $0x58] sm:$0xff]
        %v885 = vld [vmem:[%s872 + $0x60] sm:$0xff]
        %v886 = vld [vmem:[%s872 + $0x68] sm:$0xff]
        %v887 = vld [vmem:[%s872 + $0x70] sm:$0xff]
        %v888 = vld [vmem:[%s872 + $0x78] sm:$0xff]
        %v889 = vrot.slane %v723, 2
        %v906 = vunpack.c.l.b16 %v873
        %v907 = vunpack.c.h.b16 %v873
        %v908 = vunpack.c.l.b16 %v874
        %v909 = vunpack.c.h.b16 %v874
        %v910 = vunpack.c.l.b16 %v875
        %v911 = vunpack.c.h.b16 %v875
        %v912 = vunpack.c.l.b16 %v876
        %v913 = vunpack.c.h.b16 %v876
        %v914 = vunpack.c.l.b16 %v877
        %v915 = vunpack.c.h.b16 %v877
        %v916 = vunpack.c.l.b16 %v878
        %v917 = vunpack.c.h.b16 %v878
        %v918 = vunpack.c.l.b16 %v879
        %v919 = vunpack.c.h.b16 %v879
        %v920 = vunpack.c.l.b16 %v880
        %v921 = vunpack.c.h.b16 %v880
        %v922 = vunpack.c.l.b16 %v881
        %v923 = vunpack.c.h.b16 %v881
        %v924 = vunpack.c.l.b16 %v882
        %v925 = vunpack.c.h.b16 %v882
        %v926 = vunpack.c.l.b16 %v883
        %v927 = vunpack.c.h.b16 %v883
        %v928 = vunpack.c.l.b16 %v884
        %v929 = vunpack.c.h.b16 %v884
        %v930 = vunpack.c.l.b16 %v885
        %v931 = vunpack.c.h.b16 %v885
        %v932 = vunpack.c.l.b16 %v886
        %v933 = vunpack.c.h.b16 %v886
        %v934 = vunpack.c.l.b16 %v887
        %v935 = vunpack.c.h.b16 %v887
        %v936 = vunpack.c.l.b16 %v888
        %v937 = vunpack.c.h.b16 %v888
        %v938 = vpack.c.b16 %v910, %v906
        %v939 = vpack.c.b16 %v911, %v907
        %v940 = vpack.c.b16 %v912, %v908
        %v941 = vpack.c.b16 %v913, %v909
        %v942 = vpack.c.b16 %v918, %v914
        %v943 = vpack.c.b16 %v919, %v915
        %v944 = vpack.c.b16 %v920, %v916
        %v945 = vpack.c.b16 %v921, %v917
        %v946 = vpack.c.b16 %v926, %v922
        %v947 = vpack.c.b16 %v927, %v923
        %v948 = vpack.c.b16 %v928, %v924
        %v949 = vpack.c.b16 %v929, %v925
        %v950 = vpack.c.b16 %v934, %v930
        %v951 = vpack.c.b16 %v935, %v931
        %v952 = vpack.c.b16 %v936, %v932
        %v953 = vpack.c.b16 %v937, %v933
        %v971 = vsel %vm633, %v889, 0
        %973 = vmatpush.bf16.msra.mxu0 0
        %974 = vmatpush.bf16.msra.mxu0 0
        %975 = vmatpush.bf16.msra.mxu0 0
        %976 = vmatpush.bf16.msra.mxu0 0
        %977 = vmatpush.bf16.msra.mxu0 %v950
        %978 = vmatpush.bf16.msra.mxu0 %v946
        %979 = vmatpush.bf16.msra.mxu0 %v942
        %980 = vmatpush.bf16.msra.mxu0 %v938
        %981 = vmatmul.bf16.gmra.mxu0 %v971
        %v982 = vpop.f32.mrf.mxu0
        %v983 = vadd.f32 0.0, %v982
        %v984 = vpop.f32.mrf.mxu0
        %985 = vdwg.mxu0
        %986 = vmatpush.bf16.msra.mxu0 0
        %987 = vmatpush.bf16.msra.mxu0 0
        %988 = vmatpush.bf16.msra.mxu0 0
        %989 = vmatpush.bf16.msra.mxu0 0
        %990 = vmatpush.bf16.msra.mxu0 %v951
        %991 = vmatpush.bf16.msra.mxu0 %v947
        %992 = vmatpush.bf16.msra.mxu0 %v943
        %993 = vmatpush.bf16.msra.mxu0 %v939
        %994 = vmatmul.bf16.gmra.mxu0 %v971
        %v995 = vpop.f32.mrf.mxu0
        %v996 = vadd.f32 0.0, %v995
        %v997 = vpop.f32.mrf.mxu0
        %998 = vdwg.mxu0
        %999 = vmatpush.bf16.msra.mxu0 0
        %1000 = vmatpush.bf16.msra.mxu0 0
        %1001 = vmatpush.bf16.msra.mxu0 0
        %1002 = vmatpush.bf16.msra.mxu0 0
        %1003 = vmatpush.bf16.msra.mxu0 %v952
        %1004 = vmatpush.bf16.msra.mxu0 %v948
        %1005 = vmatpush.bf16.msra.mxu0 %v944
        %1006 = vmatpush.bf16.msra.mxu0 %v940
        %1007 = vmatmul.bf16.gmra.mxu0 %v971
        %v1008 = vpop.f32.mrf.mxu0
        %v1009 = vadd.f32 0.0, %v1008
        %v1010 = vpop.f32.mrf.mxu0
        %1011 = vdwg.mxu0
        %1012 = vmatpush.bf16.msra.mxu0 0
        %1013 = vmatpush.bf16.msra.mxu0 0
        %1014 = vmatpush.bf16.msra.mxu0 0
        %1015 = vmatpush.bf16.msra.mxu0 0
        %1016 = vmatpush.bf16.msra.mxu0 %v953
        %1017 = vmatpush.bf16.msra.mxu0 %v949
        %1018 = vmatpush.bf16.msra.mxu0 %v945
        %1019 = vmatpush.bf16.msra.mxu0 %v941
        %1020 = vmatmul.bf16.gmra.mxu0 %v971
        %v1021 = vpop.f32.mrf.mxu0
        %v1022 = vadd.f32 0.0, %v1021
        %v1023 = vpop.f32.mrf.mxu0
        %1024 = vdwg.mxu0
        %v1029 = vrot.slane %v996, 6
        %v1030 = vrot.slane %v1009, 4
        %v1031 = vrot.slane %v1022, 2
        %v1032 = vsel %vm696, %v983, %v1029
        %v1033 = vsel %vm698, %v1030, %v1031
        %v1034 = vsel %vm700, %v1032, %v1033
        %v1036 = vadd.f32 %v871, %v1034
        %s1037 = scalar_lea.vmem %s299, 384 [#allocation9]
        %v1038 = vld [vmem:[%s1037] sm:$0xff]
        %v1039 = vld [vmem:[%s1037 + $0x8] sm:$0xff]
        %v1040 = vld [vmem:[%s1037 + $0x10] sm:$0xff]
        %v1041 = vld [vmem:[%s1037 + $0x18] sm:$0xff]
        %v1042 = vld [vmem:[%s1037 + $0x20] sm:$0xff]
        %v1043 = vld [vmem:[%s1037 + $0x28] sm:$0xff]
        %v1044 = vld [vmem:[%s1037 + $0x30] sm:$0xff]
        %v1045 = vld [vmem:[%s1037 + $0x38] sm:$0xff]
        %v1046 = vld [vmem:[%s1037 + $0x40] sm:$0xff]
        %v1047 = vld [vmem:[%s1037 + $0x48] sm:$0xff]
        %v1048 = vld [vmem:[%s1037 + $0x50] sm:$0xff]
        %v1049 = vld [vmem:[%s1037 + $0x58] sm:$0xff]
        %v1050 = vld [vmem:[%s1037 + $0x60] sm:$0xff]
        %v1051 = vld [vmem:[%s1037 + $0x68] sm:$0xff]
        %v1052 = vld [vmem:[%s1037 + $0x70] sm:$0xff]
        %v1053 = vld [vmem:[%s1037 + $0x78] sm:$0xff]
        %v1054 = vrot.slane %v723, 3
        %v1071 = vunpack.c.l.b16 %v1038
        %v1072 = vunpack.c.h.b16 %v1038
        %v1073 = vunpack.c.l.b16 %v1039
        %v1074 = vunpack.c.h.b16 %v1039
        %v1075 = vunpack.c.l.b16 %v1040
        %v1076 = vunpack.c.h.b16 %v1040
        %v1077 = vunpack.c.l.b16 %v1041
        %v1078 = vunpack.c.h.b16 %v1041
        %v1079 = vunpack.c.l.b16 %v1042
        %v1080 = vunpack.c.h.b16 %v1042
        %v1081 = vunpack.c.l.b16 %v1043
        %v1082 = vunpack.c.h.b16 %v1043
        %v1083 = vunpack.c.l.b16 %v1044
        %v1084 = vunpack.c.h.b16 %v1044
        %v1085 = vunpack.c.l.b16 %v1045
        %v1086 = vunpack.c.h.b16 %v1045
        %v1087 = vunpack.c.l.b16 %v1046
        %v1088 = vunpack.c.h.b16 %v1046
        %v1089 = vunpack.c.l.b16 %v1047
        %v1090 = vunpack.c.h.b16 %v1047
        %v1091 = vunpack.c.l.b16 %v1048
        %v1092 = vunpack.c.h.b16 %v1048
        %v1093 = vunpack.c.l.b16 %v1049
        %v1094 = vunpack.c.h.b16 %v1049
        %v1095 = vunpack.c.l.b16 %v1050
        %v1096 = vunpack.c.h.b16 %v1050
        %v1097 = vunpack.c.l.b16 %v1051
        %v1098 = vunpack.c.h.b16 %v1051
        %v1099 = vunpack.c.l.b16 %v1052
        %v1100 = vunpack.c.h.b16 %v1052
        %v1101 = vunpack.c.l.b16 %v1053
        %v1102 = vunpack.c.h.b16 %v1053
        %v1103 = vpack.c.b16 %v1075, %v1071
        %v1104 = vpack.c.b16 %v1076, %v1072
        %v1105 = vpack.c.b16 %v1077, %v1073
        %v1106 = vpack.c.b16 %v1078, %v1074
        %v1107 = vpack.c.b16 %v1083, %v1079
        %v1108 = vpack.c.b16 %v1084, %v1080
        %v1109 = vpack.c.b16 %v1085, %v1081
        %v1110 = vpack.c.b16 %v1086, %v1082
        %v1111 = vpack.c.b16 %v1091, %v1087
        %v1112 = vpack.c.b16 %v1092, %v1088
        %v1113 = vpack.c.b16 %v1093, %v1089
        %v1114 = vpack.c.b16 %v1094, %v1090
        %v1115 = vpack.c.b16 %v1099, %v1095
        %v1116 = vpack.c.b16 %v1100, %v1096
        %v1117 = vpack.c.b16 %v1101, %v1097
        %v1118 = vpack.c.b16 %v1102, %v1098
        %v1136 = vsel %vm633, %v1054, 0
        %1138 = vmatpush.bf16.msra.mxu0 0
        %1139 = vmatpush.bf16.msra.mxu0 0
        %1140 = vmatpush.bf16.msra.mxu0 0
        %1141 = vmatpush.bf16.msra.mxu0 0
        %1142 = vmatpush.bf16.msra.mxu0 %v1115
        %1143 = vmatpush.bf16.msra.mxu0 %v1111
        %1144 = vmatpush.bf16.msra.mxu0 %v1107
        %1145 = vmatpush.bf16.msra.mxu0 %v1103
        %1146 = vmatmul.bf16.gmra.mxu0 %v1136
        %v1147 = vpop.f32.mrf.mxu0
        %v1148 = vadd.f32 0.0, %v1147
        %v1149 = vpop.f32.mrf.mxu0
        %1150 = vdwg.mxu0
        %1151 = vmatpush.bf16.msra.mxu0 0
        %1152 = vmatpush.bf16.msra.mxu0 0
        %1153 = vmatpush.bf16.msra.mxu0 0
        %1154 = vmatpush.bf16.msra.mxu0 0
        %1155 = vmatpush.bf16.msra.mxu0 %v1116
        %1156 = vmatpush.bf16.msra.mxu0 %v1112
        %1157 = vmatpush.bf16.msra.mxu0 %v1108
        %1158 = vmatpush.bf16.msra.mxu0 %v1104
        %1159 = vmatmul.bf16.gmra.mxu0 %v1136
        %v1160 = vpop.f32.mrf.mxu0
        %v1161 = vadd.f32 0.0, %v1160
        %v1162 = vpop.f32.mrf.mxu0
        %1163 = vdwg.mxu0
        %1164 = vmatpush.bf16.msra.mxu0 0
        %1165 = vmatpush.bf16.msra.mxu0 0
        %1166 = vmatpush.bf16.msra.mxu0 0
        %1167 = vmatpush.bf16.msra.mxu0 0
        %1168 = vmatpush.bf16.msra.mxu0 %v1117
        %1169 = vmatpush.bf16.msra.mxu0 %v1113
        %1170 = vmatpush.bf16.msra.mxu0 %v1109
        %1171 = vmatpush.bf16.msra.mxu0 %v1105
        %1172 = vmatmul.bf16.gmra.mxu0 %v1136
        %v1173 = vpop.f32.mrf.mxu0
        %v1174 = vadd.f32 0.0, %v1173
        %v1175 = vpop.f32.mrf.mxu0
        %1176 = vdwg.mxu0
        %1177 = vmatpush.bf16.msra.mxu0 0
        %1178 = vmatpush.bf16.msra.mxu0 0
        %1179 = vmatpush.bf16.msra.mxu0 0
        %1180 = vmatpush.bf16.msra.mxu0 0
        %1181 = vmatpush.bf16.msra.mxu0 %v1118
        %1182 = vmatpush.bf16.msra.mxu0 %v1114
        %1183 = vmatpush.bf16.msra.mxu0 %v1110
        %1184 = vmatpush.bf16.msra.mxu0 %v1106
        %1185 = vmatmul.bf16.gmra.mxu0 %v1136
        %v1186 = vpop.f32.mrf.mxu0
        %v1187 = vadd.f32 0.0, %v1186
        %v1188 = vpop.f32.mrf.mxu0
        %1189 = vdwg.mxu0
        %v1194 = vrot.slane %v1161, 6
        %v1195 = vrot.slane %v1174, 4
        %v1196 = vrot.slane %v1187, 2
        %v1197 = vsel %vm696, %v1148, %v1194
        %v1198 = vsel %vm698, %v1195, %v1196
        %v1199 = vsel %vm700, %v1197, %v1198
        %v1201 = vadd.f32 %v1036, %v1199
        %s1202 = scalar_lea.vmem %s299, 512 [#allocation9]
        %v1203 = vld [vmem:[%s1202] sm:$0xff]
        %v1204 = vld [vmem:[%s1202 + $0x8] sm:$0xff]
        %v1205 = vld [vmem:[%s1202 + $0x10] sm:$0xff]
        %v1206 = vld [vmem:[%s1202 + $0x18] sm:$0xff]
        %v1207 = vld [vmem:[%s1202 + $0x20] sm:$0xff]
        %v1208 = vld [vmem:[%s1202 + $0x28] sm:$0xff]
        %v1209 = vld [vmem:[%s1202 + $0x30] sm:$0xff]
        %v1210 = vld [vmem:[%s1202 + $0x38] sm:$0xff]
        %v1211 = vld [vmem:[%s1202 + $0x40] sm:$0xff]
        %v1212 = vld [vmem:[%s1202 + $0x48] sm:$0xff]
        %v1213 = vld [vmem:[%s1202 + $0x50] sm:$0xff]
        %v1214 = vld [vmem:[%s1202 + $0x58] sm:$0xff]
        %v1215 = vld [vmem:[%s1202 + $0x60] sm:$0xff]
        %v1216 = vld [vmem:[%s1202 + $0x68] sm:$0xff]
        %v1217 = vld [vmem:[%s1202 + $0x70] sm:$0xff]
        %v1218 = vld [vmem:[%s1202 + $0x78] sm:$0xff]
        %v1235 = vunpack.c.l.b16 %v1203
        %v1236 = vunpack.c.h.b16 %v1203
        %v1237 = vunpack.c.l.b16 %v1204
        %v1238 = vunpack.c.h.b16 %v1204
        %v1239 = vunpack.c.l.b16 %v1205
        %v1240 = vunpack.c.h.b16 %v1205
        %v1241 = vunpack.c.l.b16 %v1206
        %v1242 = vunpack.c.h.b16 %v1206
        %v1243 = vunpack.c.l.b16 %v1207
        %v1244 = vunpack.c.h.b16 %v1207
        %v1245 = vunpack.c.l.b16 %v1208
        %v1246 = vunpack.c.h.b16 %v1208
        %v1247 = vunpack.c.l.b16 %v1209
        %v1248 = vunpack.c.h.b16 %v1209
        %v1249 = vunpack.c.l.b16 %v1210
        %v1250 = vunpack.c.h.b16 %v1210
        %v1251 = vunpack.c.l.b16 %v1211
        %v1252 = vunpack.c.h.b16 %v1211
        %v1253 = vunpack.c.l.b16 %v1212
        %v1254 = vunpack.c.h.b16 %v1212
        %v1255 = vunpack.c.l.b16 %v1213
        %v1256 = vunpack.c.h.b16 %v1213
        %v1257 = vunpack.c.l.b16 %v1214
        %v1258 = vunpack.c.h.b16 %v1214
        %v1259 = vunpack.c.l.b16 %v1215
        %v1260 = vunpack.c.h.b16 %v1215
        %v1261 = vunpack.c.l.b16 %v1216
        %v1262 = vunpack.c.h.b16 %v1216
        %v1263 = vunpack.c.l.b16 %v1217
        %v1264 = vunpack.c.h.b16 %v1217
        %v1265 = vunpack.c.l.b16 %v1218
        %v1266 = vunpack.c.h.b16 %v1218
        %v1267 = vpack.c.b16 %v1239, %v1235
        %v1268 = vpack.c.b16 %v1240, %v1236
        %v1269 = vpack.c.b16 %v1241, %v1237
        %v1270 = vpack.c.b16 %v1242, %v1238
        %v1271 = vpack.c.b16 %v1247, %v1243
        %v1272 = vpack.c.b16 %v1248, %v1244
        %v1273 = vpack.c.b16 %v1249, %v1245
        %v1274 = vpack.c.b16 %v1250, %v1246
        %v1275 = vpack.c.b16 %v1255, %v1251
        %v1276 = vpack.c.b16 %v1256, %v1252
        %v1277 = vpack.c.b16 %v1257, %v1253
        %v1278 = vpack.c.b16 %v1258, %v1254
        %v1279 = vpack.c.b16 %v1263, %v1259
        %v1280 = vpack.c.b16 %v1264, %v1260
        %v1281 = vpack.c.b16 %v1265, %v1261
        %v1282 = vpack.c.b16 %v1266, %v1262
        %v1300 = vsel %vm633, %v533, 0
        %1302 = vmatpush.bf16.msra.mxu0 0
        %1303 = vmatpush.bf16.msra.mxu0 0
        %1304 = vmatpush.bf16.msra.mxu0 0
        %1305 = vmatpush.bf16.msra.mxu0 0
        %1306 = vmatpush.bf16.msra.mxu0 %v1279
        %1307 = vmatpush.bf16.msra.mxu0 %v1275
        %1308 = vmatpush.bf16.msra.mxu0 %v1271
        %1309 = vmatpush.bf16.msra.mxu0 %v1267
        %1310 = vmatmul.bf16.gmra.mxu0 %v1300
        %v1311 = vpop.f32.mrf.mxu0
        %v1312 = vadd.f32 0.0, %v1311
        %v1313 = vpop.f32.mrf.mxu0
        %1314 = vdwg.mxu0
        %1315 = vmatpush.bf16.msra.mxu0 0
        %1316 = vmatpush.bf16.msra.mxu0 0
        %1317 = vmatpush.bf16.msra.mxu0 0
        %1318 = vmatpush.bf16.msra.mxu0 0
        %1319 = vmatpush.bf16.msra.mxu0 %v1280
        %1320 = vmatpush.bf16.msra.mxu0 %v1276
        %1321 = vmatpush.bf16.msra.mxu0 %v1272
        %1322 = vmatpush.bf16.msra.mxu0 %v1268
        %1323 = vmatmul.bf16.gmra.mxu0 %v1300
        %v1324 = vpop.f32.mrf.mxu0
        %v1325 = vadd.f32 0.0, %v1324
        %v1326 = vpop.f32.mrf.mxu0
        %1327 = vdwg.mxu0
        %1328 = vmatpush.bf16.msra.mxu0 0
        %1329 = vmatpush.bf16.msra.mxu0 0
        %1330 = vmatpush.bf16.msra.mxu0 0
        %1331 = vmatpush.bf16.msra.mxu0 0
        %1332 = vmatpush.bf16.msra.mxu0 %v1281
        %1333 = vmatpush.bf16.msra.mxu0 %v1277
        %1334 = vmatpush.bf16.msra.mxu0 %v1273
        %1335 = vmatpush.bf16.msra.mxu0 %v1269
        %1336 = vmatmul.bf16.gmra.mxu0 %v1300
        %v1337 = vpop.f32.mrf.mxu0
        %v1338 = vadd.f32 0.0, %v1337
        %v1339 = vpop.f32.mrf.mxu0
        %1340 = vdwg.mxu0
        %1341 = vmatpush.bf16.msra.mxu0 0
        %1342 = vmatpush.bf16.msra.mxu0 0
        %1343 = vmatpush.bf16.msra.mxu0 0
        %1344 = vmatpush.bf16.msra.mxu0 0
        %1345 = vmatpush.bf16.msra.mxu0 %v1282
        %1346 = vmatpush.bf16.msra.mxu0 %v1278
        %1347 = vmatpush.bf16.msra.mxu0 %v1274
        %1348 = vmatpush.bf16.msra.mxu0 %v1270
        %1349 = vmatmul.bf16.gmra.mxu0 %v1300
        %v1350 = vpop.f32.mrf.mxu0
        %v1351 = vadd.f32 0.0, %v1350
        %v1352 = vpop.f32.mrf.mxu0
        %1353 = vdwg.mxu0
        %v1358 = vrot.slane %v1325, 6
        %v1359 = vrot.slane %v1338, 4
        %v1360 = vrot.slane %v1351, 2
        %v1361 = vsel %vm696, %v1312, %v1358
        %v1362 = vsel %vm698, %v1359, %v1360
        %v1363 = vsel %vm700, %v1361, %v1362
        %v1365 = vadd.f32 %v1201, %v1363
        %s1366 = scalar_lea.vmem %s299, 640 [#allocation9]
        %v1367 = vld [vmem:[%s1366] sm:$0xff]
        %v1368 = vld [vmem:[%s1366 + $0x8] sm:$0xff]
        %v1369 = vld [vmem:[%s1366 + $0x10] sm:$0xff]
        %v1370 = vld [vmem:[%s1366 + $0x18] sm:$0xff]
        %v1371 = vld [vmem:[%s1366 + $0x20] sm:$0xff]
        %v1372 = vld [vmem:[%s1366 + $0x28] sm:$0xff]
        %v1373 = vld [vmem:[%s1366 + $0x30] sm:$0xff]
        %v1374 = vld [vmem:[%s1366 + $0x38] sm:$0xff]
        %v1375 = vld [vmem:[%s1366 + $0x40] sm:$0xff]
        %v1376 = vld [vmem:[%s1366 + $0x48] sm:$0xff]
        %v1377 = vld [vmem:[%s1366 + $0x50] sm:$0xff]
        %v1378 = vld [vmem:[%s1366 + $0x58] sm:$0xff]
        %v1379 = vld [vmem:[%s1366 + $0x60] sm:$0xff]
        %v1380 = vld [vmem:[%s1366 + $0x68] sm:$0xff]
        %v1381 = vld [vmem:[%s1366 + $0x70] sm:$0xff]
        %v1382 = vld [vmem:[%s1366 + $0x78] sm:$0xff]
        %v1384 = vunpack.c.l.b16 %v533
        %v1385 = vpack.c.b16 %v1384, %v1384
        %v1386 = vrot.slane %v1385, 1
        %v1403 = vunpack.c.l.b16 %v1367
        %v1404 = vunpack.c.h.b16 %v1367
        %v1405 = vunpack.c.l.b16 %v1368
        %v1406 = vunpack.c.h.b16 %v1368
        %v1407 = vunpack.c.l.b16 %v1369
        %v1408 = vunpack.c.h.b16 %v1369
        %v1409 = vunpack.c.l.b16 %v1370
        %v1410 = vunpack.c.h.b16 %v1370
        %v1411 = vunpack.c.l.b16 %v1371
        %v1412 = vunpack.c.h.b16 %v1371
        %v1413 = vunpack.c.l.b16 %v1372
        %v1414 = vunpack.c.h.b16 %v1372
        %v1415 = vunpack.c.l.b16 %v1373
        %v1416 = vunpack.c.h.b16 %v1373
        %v1417 = vunpack.c.l.b16 %v1374
        %v1418 = vunpack.c.h.b16 %v1374
        %v1419 = vunpack.c.l.b16 %v1375
        %v1420 = vunpack.c.h.b16 %v1375
        %v1421 = vunpack.c.l.b16 %v1376
        %v1422 = vunpack.c.h.b16 %v1376
        %v1423 = vunpack.c.l.b16 %v1377
        %v1424 = vunpack.c.h.b16 %v1377
        %v1425 = vunpack.c.l.b16 %v1378
        %v1426 = vunpack.c.h.b16 %v1378
        %v1427 = vunpack.c.l.b16 %v1379
        %v1428 = vunpack.c.h.b16 %v1379
        %v1429 = vunpack.c.l.b16 %v1380
        %v1430 = vunpack.c.h.b16 %v1380
        %v1431 = vunpack.c.l.b16 %v1381
        %v1432 = vunpack.c.h.b16 %v1381
        %v1433 = vunpack.c.l.b16 %v1382
        %v1434 = vunpack.c.h.b16 %v1382
        %v1435 = vpack.c.b16 %v1407, %v1403
        %v1436 = vpack.c.b16 %v1408, %v1404
        %v1437 = vpack.c.b16 %v1409, %v1405
        %v1438 = vpack.c.b16 %v1410, %v1406
        %v1439 = vpack.c.b16 %v1415, %v1411
        %v1440 = vpack.c.b16 %v1416, %v1412
        %v1441 = vpack.c.b16 %v1417, %v1413
        %v1442 = vpack.c.b16 %v1418, %v1414
        %v1443 = vpack.c.b16 %v1423, %v1419
        %v1444 = vpack.c.b16 %v1424, %v1420
        %v1445 = vpack.c.b16 %v1425, %v1421
        %v1446 = vpack.c.b16 %v1426, %v1422
        %v1447 = vpack.c.b16 %v1431, %v1427
        %v1448 = vpack.c.b16 %v1432, %v1428
        %v1449 = vpack.c.b16 %v1433, %v1429
        %v1450 = vpack.c.b16 %v1434, %v1430
        %v1468 = vsel %vm633, %v1386, 0
        %1470 = vmatpush.bf16.msra.mxu0 0
        %1471 = vmatpush.bf16.msra.mxu0 0
        %1472 = vmatpush.bf16.msra.mxu0 0
        %1473 = vmatpush.bf16.msra.mxu0 0
        %1474 = vmatpush.bf16.msra.mxu0 %v1447
        %1475 = vmatpush.bf16.msra.mxu0 %v1443
        %1476 = vmatpush.bf16.msra.mxu0 %v1439
        %1477 = vmatpush.bf16.msra.mxu0 %v1435
        %1478 = vmatmul.bf16.gmra.mxu0 %v1468
        %v1479 = vpop.f32.mrf.mxu0
        %v1480 = vadd.f32 0.0, %v1479
        %v1481 = vpop.f32.mrf.mxu0
        %1482 = vdwg.mxu0
        %1483 = vmatpush.bf16.msra.mxu0 0
        %1484 = vmatpush.bf16.msra.mxu0 0
        %1485 = vmatpush.bf16.msra.mxu0 0
        %1486 = vmatpush.bf16.msra.mxu0 0
        %1487 = vmatpush.bf16.msra.mxu0 %v1448
        %1488 = vmatpush.bf16.msra.mxu0 %v1444
        %1489 = vmatpush.bf16.msra.mxu0 %v1440
        %1490 = vmatpush.bf16.msra.mxu0 %v1436
        %1491 = vmatmul.bf16.gmra.mxu0 %v1468
        %v1492 = vpop.f32.mrf.mxu0
        %v1493 = vadd.f32 0.0, %v1492
        %v1494 = vpop.f32.mrf.mxu0
        %1495 = vdwg.mxu0
        %1496 = vmatpush.bf16.msra.mxu0 0
        %1497 = vmatpush.bf16.msra.mxu0 0
        %1498 = vmatpush.bf16.msra.mxu0 0
        %1499 = vmatpush.bf16.msra.mxu0 0
        %1500 = vmatpush.bf16.msra.mxu0 %v1449
        %1501 = vmatpush.bf16.msra.mxu0 %v1445
        %1502 = vmatpush.bf16.msra.mxu0 %v1441
        %1503 = vmatpush.bf16.msra.mxu0 %v1437
        %1504 = vmatmul.bf16.gmra.mxu0 %v1468
        %v1505 = vpop.f32.mrf.mxu0
        %v1506 = vadd.f32 0.0, %v1505
        %v1507 = vpop.f32.mrf.mxu0
        %1508 = vdwg.mxu0
        %1509 = vmatpush.bf16.msra.mxu0 0
        %1510 = vmatpush.bf16.msra.mxu0 0
        %1511 = vmatpush.bf16.msra.mxu0 0
        %1512 = vmatpush.bf16.msra.mxu0 0
        %1513 = vmatpush.bf16.msra.mxu0 %v1450
        %1514 = vmatpush.bf16.msra.mxu0 %v1446
        %1515 = vmatpush.bf16.msra.mxu0 %v1442
        %1516 = vmatpush.bf16.msra.mxu0 %v1438
        %1517 = vmatmul.bf16.gmra.mxu0 %v1468
        %v1518 = vpop.f32.mrf.mxu0
        %v1519 = vadd.f32 0.0, %v1518
        %v1520 = vpop.f32.mrf.mxu0
        %1521 = vdwg.mxu0
        %v1526 = vrot.slane %v1493, 6
        %v1527 = vrot.slane %v1506, 4
        %v1528 = vrot.slane %v1519, 2
        %v1529 = vsel %vm696, %v1480, %v1526
        %v1530 = vsel %vm698, %v1527, %v1528
        %v1531 = vsel %vm700, %v1529, %v1530
        %v1533 = vadd.f32 %v1365, %v1531
        %s1534 = scalar_lea.vmem %s299, 768 [#allocation9]
        %v1535 = vld [vmem:[%s1534] sm:$0xff]
        %v1536 = vld [vmem:[%s1534 + $0x8] sm:$0xff]
        %v1537 = vld [vmem:[%s1534 + $0x10] sm:$0xff]
        %v1538 = vld [vmem:[%s1534 + $0x18] sm:$0xff]
        %v1539 = vld [vmem:[%s1534 + $0x20] sm:$0xff]
        %v1540 = vld [vmem:[%s1534 + $0x28] sm:$0xff]
        %v1541 = vld [vmem:[%s1534 + $0x30] sm:$0xff]
        %v1542 = vld [vmem:[%s1534 + $0x38] sm:$0xff]
        %v1543 = vld [vmem:[%s1534 + $0x40] sm:$0xff]
        %v1544 = vld [vmem:[%s1534 + $0x48] sm:$0xff]
        %v1545 = vld [vmem:[%s1534 + $0x50] sm:$0xff]
        %v1546 = vld [vmem:[%s1534 + $0x58] sm:$0xff]
        %v1547 = vld [vmem:[%s1534 + $0x60] sm:$0xff]
        %v1548 = vld [vmem:[%s1534 + $0x68] sm:$0xff]
        %v1549 = vld [vmem:[%s1534 + $0x70] sm:$0xff]
        %v1550 = vld [vmem:[%s1534 + $0x78] sm:$0xff]
        %v1551 = vrot.slane %v1385, 2
        %v1568 = vunpack.c.l.b16 %v1535
        %v1569 = vunpack.c.h.b16 %v1535
        %v1570 = vunpack.c.l.b16 %v1536
        %v1571 = vunpack.c.h.b16 %v1536
        %v1572 = vunpack.c.l.b16 %v1537
        %v1573 = vunpack.c.h.b16 %v1537
        %v1574 = vunpack.c.l.b16 %v1538
        %v1575 = vunpack.c.h.b16 %v1538
        %v1576 = vunpack.c.l.b16 %v1539
        %v1577 = vunpack.c.h.b16 %v1539
        %v1578 = vunpack.c.l.b16 %v1540
        %v1579 = vunpack.c.h.b16 %v1540
        %v1580 = vunpack.c.l.b16 %v1541
        %v1581 = vunpack.c.h.b16 %v1541
        %v1582 = vunpack.c.l.b16 %v1542
        %v1583 = vunpack.c.h.b16 %v1542
        %v1584 = vunpack.c.l.b16 %v1543
        %v1585 = vunpack.c.h.b16 %v1543
        %v1586 = vunpack.c.l.b16 %v1544
        %v1587 = vunpack.c.h.b16 %v1544
        %v1588 = vunpack.c.l.b16 %v1545
        %v1589 = vunpack.c.h.b16 %v1545
        %v1590 = vunpack.c.l.b16 %v1546
        %v1591 = vunpack.c.h.b16 %v1546
        %v1592 = vunpack.c.l.b16 %v1547
        %v1593 = vunpack.c.h.b16 %v1547
        %v1594 = vunpack.c.l.b16 %v1548
        %v1595 = vunpack.c.h.b16 %v1548
        %v1596 = vunpack.c.l.b16 %v1549
        %v1597 = vunpack.c.h.b16 %v1549
        %v1598 = vunpack.c.l.b16 %v1550
        %v1599 = vunpack.c.h.b16 %v1550
        %v1600 = vpack.c.b16 %v1572, %v1568
        %v1601 = vpack.c.b16 %v1573, %v1569
        %v1602 = vpack.c.b16 %v1574, %v1570
        %v1603 = vpack.c.b16 %v1575, %v1571
        %v1604 = vpack.c.b16 %v1580, %v1576
        %v1605 = vpack.c.b16 %v1581, %v1577
        %v1606 = vpack.c.b16 %v1582, %v1578
        %v1607 = vpack.c.b16 %v1583, %v1579
        %v1608 = vpack.c.b16 %v1588, %v1584
        %v1609 = vpack.c.b16 %v1589, %v1585
        %v1610 = vpack.c.b16 %v1590, %v1586
        %v1611 = vpack.c.b16 %v1591, %v1587
        %v1612 = vpack.c.b16 %v1596, %v1592
        %v1613 = vpack.c.b16 %v1597, %v1593
        %v1614 = vpack.c.b16 %v1598, %v1594
        %v1615 = vpack.c.b16 %v1599, %v1595
        %v1633 = vsel %vm633, %v1551, 0
        %1635 = vmatpush.bf16.msra.mxu0 0
        %1636 = vmatpush.bf16.msra.mxu0 0
        %1637 = vmatpush.bf16.msra.mxu0 0
        %1638 = vmatpush.bf16.msra.mxu0 0
        %1639 = vmatpush.bf16.msra.mxu0 %v1612
        %1640 = vmatpush.bf16.msra.mxu0 %v1608
        %1641 = vmatpush.bf16.msra.mxu0 %v1604
        %1642 = vmatpush.bf16.msra.mxu0 %v1600
        %1643 = vmatmul.bf16.gmra.mxu0 %v1633
        %v1644 = vpop.f32.mrf.mxu0
        %v1645 = vadd.f32 0.0, %v1644
        %v1646 = vpop.f32.mrf.mxu0
        %1647 = vdwg.mxu0
        %1648 = vmatpush.bf16.msra.mxu0 0
        %1649 = vmatpush.bf16.msra.mxu0 0
        %1650 = vmatpush.bf16.msra.mxu0 0
        %1651 = vmatpush.bf16.msra.mxu0 0
        %1652 = vmatpush.bf16.msra.mxu0 %v1613
        %1653 = vmatpush.bf16.msra.mxu0 %v1609
        %1654 = vmatpush.bf16.msra.mxu0 %v1605
        %1655 = vmatpush.bf16.msra.mxu0 %v1601
        %1656 = vmatmul.bf16.gmra.mxu0 %v1633
        %v1657 = vpop.f32.mrf.mxu0
        %v1658 = vadd.f32 0.0, %v1657
        %v1659 = vpop.f32.mrf.mxu0
        %1660 = vdwg.mxu0
        %1661 = vmatpush.bf16.msra.mxu0 0
        %1662 = vmatpush.bf16.msra.mxu0 0
        %1663 = vmatpush.bf16.msra.mxu0 0
        %1664 = vmatpush.bf16.msra.mxu0 0
        %1665 = vmatpush.bf16.msra.mxu0 %v1614
        %1666 = vmatpush.bf16.msra.mxu0 %v1610
        %1667 = vmatpush.bf16.msra.mxu0 %v1606
        %1668 = vmatpush.bf16.msra.mxu0 %v1602
        %1669 = vmatmul.bf16.gmra.mxu0 %v1633
        %v1670 = vpop.f32.mrf.mxu0
        %v1671 = vadd.f32 0.0, %v1670
        %v1672 = vpop.f32.mrf.mxu0
        %1673 = vdwg.mxu0
        %1674 = vmatpush.bf16.msra.mxu0 0
        %1675 = vmatpush.bf16.msra.mxu0 0
        %1676 = vmatpush.bf16.msra.mxu0 0
        %1677 = vmatpush.bf16.msra.mxu0 0
        %1678 = vmatpush.bf16.msra.mxu0 %v1615
        %1679 = vmatpush.bf16.msra.mxu0 %v1611
        %1680 = vmatpush.bf16.msra.mxu0 %v1607
        %1681 = vmatpush.bf16.msra.mxu0 %v1603
        %1682 = vmatmul.bf16.gmra.mxu0 %v1633
        %v1683 = vpop.f32.mrf.mxu0
        %v1684 = vadd.f32 0.0, %v1683
        %v1685 = vpop.f32.mrf.mxu0
        %1686 = vdwg.mxu0
        %v1691 = vrot.slane %v1658, 6
        %v1692 = vrot.slane %v1671, 4
        %v1693 = vrot.slane %v1684, 2
        %v1694 = vsel %vm696, %v1645, %v1691
        %v1695 = vsel %vm698, %v1692, %v1693
        %v1696 = vsel %vm700, %v1694, %v1695
        %v1698 = vadd.f32 %v1533, %v1696
        %s1699 = scalar_lea.vmem %s299, 896 [#allocation9]
        %v1700 = vld [vmem:[%s1699] sm:$0xff]
        %v1701 = vld [vmem:[%s1699 + $0x8] sm:$0xff]
        %v1702 = vld [vmem:[%s1699 + $0x10] sm:$0xff]
        %v1703 = vld [vmem:[%s1699 + $0x18] sm:$0xff]
        %v1704 = vld [vmem:[%s1699 + $0x20] sm:$0xff]
        %v1705 = vld [vmem:[%s1699 + $0x28] sm:$0xff]
        %v1706 = vld [vmem:[%s1699 + $0x30] sm:$0xff]
        %v1707 = vld [vmem:[%s1699 + $0x38] sm:$0xff]
        %v1708 = vld [vmem:[%s1699 + $0x40] sm:$0xff]
        %v1709 = vld [vmem:[%s1699 + $0x48] sm:$0xff]
        %v1710 = vld [vmem:[%s1699 + $0x50] sm:$0xff]
        %v1711 = vld [vmem:[%s1699 + $0x58] sm:$0xff]
        %v1712 = vld [vmem:[%s1699 + $0x60] sm:$0xff]
        %v1713 = vld [vmem:[%s1699 + $0x68] sm:$0xff]
        %v1714 = vld [vmem:[%s1699 + $0x70] sm:$0xff]
        %v1715 = vld [vmem:[%s1699 + $0x78] sm:$0xff]
        %v1716 = vrot.slane %v1385, 3
        %v1733 = vunpack.c.l.b16 %v1700
        %v1734 = vunpack.c.h.b16 %v1700
        %v1735 = vunpack.c.l.b16 %v1701
        %v1736 = vunpack.c.h.b16 %v1701
        %v1737 = vunpack.c.l.b16 %v1702
        %v1738 = vunpack.c.h.b16 %v1702
        %v1739 = vunpack.c.l.b16 %v1703
        %v1740 = vunpack.c.h.b16 %v1703
        %v1741 = vunpack.c.l.b16 %v1704
        %v1742 = vunpack.c.h.b16 %v1704
        %v1743 = vunpack.c.l.b16 %v1705
        %v1744 = vunpack.c.h.b16 %v1705
        %v1745 = vunpack.c.l.b16 %v1706
        %v1746 = vunpack.c.h.b16 %v1706
        %v1747 = vunpack.c.l.b16 %v1707
        %v1748 = vunpack.c.h.b16 %v1707
        %v1749 = vunpack.c.l.b16 %v1708
        %v1750 = vunpack.c.h.b16 %v1708
        %v1751 = vunpack.c.l.b16 %v1709
        %v1752 = vunpack.c.h.b16 %v1709
        %v1753 = vunpack.c.l.b16 %v1710
        %v1754 = vunpack.c.h.b16 %v1710
        %v1755 = vunpack.c.l.b16 %v1711
        %v1756 = vunpack.c.h.b16 %v1711
        %v1757 = vunpack.c.l.b16 %v1712
        %v1758 = vunpack.c.h.b16 %v1712
        %v1759 = vunpack.c.l.b16 %v1713
        %v1760 = vunpack.c.h.b16 %v1713
        %v1761 = vunpack.c.l.b16 %v1714
        %v1762 = vunpack.c.h.b16 %v1714
        %v1763 = vunpack.c.l.b16 %v1715
        %v1764 = vunpack.c.h.b16 %v1715
        %v1765 = vpack.c.b16 %v1737, %v1733
        %v1766 = vpack.c.b16 %v1738, %v1734
        %v1767 = vpack.c.b16 %v1739, %v1735
        %v1768 = vpack.c.b16 %v1740, %v1736
        %v1769 = vpack.c.b16 %v1745, %v1741
        %v1770 = vpack.c.b16 %v1746, %v1742
        %v1771 = vpack.c.b16 %v1747, %v1743
        %v1772 = vpack.c.b16 %v1748, %v1744
        %v1773 = vpack.c.b16 %v1753, %v1749
        %v1774 = vpack.c.b16 %v1754, %v1750
        %v1775 = vpack.c.b16 %v1755, %v1751
        %v1776 = vpack.c.b16 %v1756, %v1752
        %v1777 = vpack.c.b16 %v1761, %v1757
        %v1778 = vpack.c.b16 %v1762, %v1758
        %v1779 = vpack.c.b16 %v1763, %v1759
        %v1780 = vpack.c.b16 %v1764, %v1760
        %v1798 = vsel %vm633, %v1716, 0
        %1800 = vmatpush.bf16.msra.mxu0 0
        %1801 = vmatpush.bf16.msra.mxu0 0
        %1802 = vmatpush.bf16.msra.mxu0 0
        %1803 = vmatpush.bf16.msra.mxu0 0
        %1804 = vmatpush.bf16.msra.mxu0 %v1777
        %1805 = vmatpush.bf16.msra.mxu0 %v1773
        %1806 = vmatpush.bf16.msra.mxu0 %v1769
        %1807 = vmatpush.bf16.msra.mxu0 %v1765
        %1808 = vmatmul.bf16.gmra.mxu0 %v1798
        %v1809 = vpop.f32.mrf.mxu0
        %v1810 = vadd.f32 0.0, %v1809
        %v1811 = vpop.f32.mrf.mxu0
        %1812 = vdwg.mxu0
        %1813 = vmatpush.bf16.msra.mxu0 0
        %1814 = vmatpush.bf16.msra.mxu0 0
        %1815 = vmatpush.bf16.msra.mxu0 0
        %1816 = vmatpush.bf16.msra.mxu0 0
        %1817 = vmatpush.bf16.msra.mxu0 %v1778
        %1818 = vmatpush.bf16.msra.mxu0 %v1774
        %1819 = vmatpush.bf16.msra.mxu0 %v1770
        %1820 = vmatpush.bf16.msra.mxu0 %v1766
        %1821 = vmatmul.bf16.gmra.mxu0 %v1798
        %v1822 = vpop.f32.mrf.mxu0
        %v1823 = vadd.f32 0.0, %v1822
        %v1824 = vpop.f32.mrf.mxu0
        %1825 = vdwg.mxu0
        %1826 = vmatpush.bf16.msra.mxu0 0
        %1827 = vmatpush.bf16.msra.mxu0 0
        %1828 = vmatpush.bf16.msra.mxu0 0
        %1829 = vmatpush.bf16.msra.mxu0 0
        %1830 = vmatpush.bf16.msra.mxu0 %v1779
        %1831 = vmatpush.bf16.msra.mxu0 %v1775
        %1832 = vmatpush.bf16.msra.mxu0 %v1771
        %1833 = vmatpush.bf16.msra.mxu0 %v1767
        %1834 = vmatmul.bf16.gmra.mxu0 %v1798
        %v1835 = vpop.f32.mrf.mxu0
        %v1836 = vadd.f32 0.0, %v1835
        %v1837 = vpop.f32.mrf.mxu0
        %1838 = vdwg.mxu0
        %1839 = vmatpush.bf16.msra.mxu0 0
        %1840 = vmatpush.bf16.msra.mxu0 0
        %1841 = vmatpush.bf16.msra.mxu0 0
        %1842 = vmatpush.bf16.msra.mxu0 0
        %1843 = vmatpush.bf16.msra.mxu0 %v1780
        %1844 = vmatpush.bf16.msra.mxu0 %v1776
        %1845 = vmatpush.bf16.msra.mxu0 %v1772
        %1846 = vmatpush.bf16.msra.mxu0 %v1768
        %1847 = vmatmul.bf16.gmra.mxu0 %v1798
        %v1848 = vpop.f32.mrf.mxu0
        %v1849 = vadd.f32 0.0, %v1848
        %v1850 = vpop.f32.mrf.mxu0
        %1851 = vdwg.mxu0
        %v1856 = vrot.slane %v1823, 6
        %v1857 = vrot.slane %v1836, 4
        %v1858 = vrot.slane %v1849, 2
        %v1859 = vsel %vm696, %v1810, %v1856
        %v1860 = vsel %vm698, %v1857, %v1858
        %v1861 = vsel %vm700, %v1859, %v1860
        %v1863 = vadd.f32 %v1698, %v1861
        %s1864 = scalar_lea.vmem %s299, 1024 [#allocation9]
        %v1865 = vld [vmem:[%s1864] sm:$0xff]
        %v1866 = vld [vmem:[%s1864 + $0x8] sm:$0xff]
        %v1867 = vld [vmem:[%s1864 + $0x10] sm:$0xff]
        %v1868 = vld [vmem:[%s1864 + $0x18] sm:$0xff]
        %v1869 = vld [vmem:[%s1864 + $0x20] sm:$0xff]
        %v1870 = vld [vmem:[%s1864 + $0x28] sm:$0xff]
        %v1871 = vld [vmem:[%s1864 + $0x30] sm:$0xff]
        %v1872 = vld [vmem:[%s1864 + $0x38] sm:$0xff]
        %v1873 = vld [vmem:[%s1864 + $0x40] sm:$0xff]
        %v1874 = vld [vmem:[%s1864 + $0x48] sm:$0xff]
        %v1875 = vld [vmem:[%s1864 + $0x50] sm:$0xff]
        %v1876 = vld [vmem:[%s1864 + $0x58] sm:$0xff]
        %v1877 = vld [vmem:[%s1864 + $0x60] sm:$0xff]
        %v1878 = vld [vmem:[%s1864 + $0x68] sm:$0xff]
        %v1879 = vld [vmem:[%s1864 + $0x70] sm:$0xff]
        %v1880 = vld [vmem:[%s1864 + $0x78] sm:$0xff]
        %v1897 = vunpack.c.l.b16 %v1865
        %v1898 = vunpack.c.h.b16 %v1865
        %v1899 = vunpack.c.l.b16 %v1866
        %v1900 = vunpack.c.h.b16 %v1866
        %v1901 = vunpack.c.l.b16 %v1867
        %v1902 = vunpack.c.h.b16 %v1867
        %v1903 = vunpack.c.l.b16 %v1868
        %v1904 = vunpack.c.h.b16 %v1868
        %v1905 = vunpack.c.l.b16 %v1869
        %v1906 = vunpack.c.h.b16 %v1869
        %v1907 = vunpack.c.l.b16 %v1870
        %v1908 = vunpack.c.h.b16 %v1870
        %v1909 = vunpack.c.l.b16 %v1871
        %v1910 = vunpack.c.h.b16 %v1871
        %v1911 = vunpack.c.l.b16 %v1872
        %v1912 = vunpack.c.h.b16 %v1872
        %v1913 = vunpack.c.l.b16 %v1873
        %v1914 = vunpack.c.h.b16 %v1873
        %v1915 = vunpack.c.l.b16 %v1874
        %v1916 = vunpack.c.h.b16 %v1874
        %v1917 = vunpack.c.l.b16 %v1875
        %v1918 = vunpack.c.h.b16 %v1875
        %v1919 = vunpack.c.l.b16 %v1876
        %v1920 = vunpack.c.h.b16 %v1876
        %v1921 = vunpack.c.l.b16 %v1877
        %v1922 = vunpack.c.h.b16 %v1877
        %v1923 = vunpack.c.l.b16 %v1878
        %v1924 = vunpack.c.h.b16 %v1878
        %v1925 = vunpack.c.l.b16 %v1879
        %v1926 = vunpack.c.h.b16 %v1879
        %v1927 = vunpack.c.l.b16 %v1880
        %v1928 = vunpack.c.h.b16 %v1880
        %v1929 = vpack.c.b16 %v1901, %v1897
        %v1930 = vpack.c.b16 %v1902, %v1898
        %v1931 = vpack.c.b16 %v1903, %v1899
        %v1932 = vpack.c.b16 %v1904, %v1900
        %v1933 = vpack.c.b16 %v1909, %v1905
        %v1934 = vpack.c.b16 %v1910, %v1906
        %v1935 = vpack.c.b16 %v1911, %v1907
        %v1936 = vpack.c.b16 %v1912, %v1908
        %v1937 = vpack.c.b16 %v1917, %v1913
        %v1938 = vpack.c.b16 %v1918, %v1914
        %v1939 = vpack.c.b16 %v1919, %v1915
        %v1940 = vpack.c.b16 %v1920, %v1916
        %v1941 = vpack.c.b16 %v1925, %v1921
        %v1942 = vpack.c.b16 %v1926, %v1922
        %v1943 = vpack.c.b16 %v1927, %v1923
        %v1944 = vpack.c.b16 %v1928, %v1924
        %v1962 = vsel %vm633, %v534, 0
        %1964 = vmatpush.bf16.msra.mxu0 0
        %1965 = vmatpush.bf16.msra.mxu0 0
        %1966 = vmatpush.bf16.msra.mxu0 0
        %1967 = vmatpush.bf16.msra.mxu0 0
        %1968 = vmatpush.bf16.msra.mxu0 %v1941
        %1969 = vmatpush.bf16.msra.mxu0 %v1937
        %1970 = vmatpush.bf16.msra.mxu0 %v1933
        %1971 = vmatpush.bf16.msra.mxu0 %v1929
        %1972 = vmatmul.bf16.gmra.mxu0 %v1962
        %v1973 = vpop.f32.mrf.mxu0
        %v1974 = vadd.f32 0.0, %v1973
        %v1975 = vpop.f32.mrf.mxu0
        %1976 = vdwg.mxu0
        %1977 = vmatpush.bf16.msra.mxu0 0
        %1978 = vmatpush.bf16.msra.mxu0 0
        %1979 = vmatpush.bf16.msra.mxu0 0
        %1980 = vmatpush.bf16.msra.mxu0 0
        %1981 = vmatpush.bf16.msra.mxu0 %v1942
        %1982 = vmatpush.bf16.msra.mxu0 %v1938
        %1983 = vmatpush.bf16.msra.mxu0 %v1934
        %1984 = vmatpush.bf16.msra.mxu0 %v1930
        %1985 = vmatmul.bf16.gmra.mxu0 %v1962
        %v1986 = vpop.f32.mrf.mxu0
        %v1987 = vadd.f32 0.0, %v1986
        %v1988 = vpop.f32.mrf.mxu0
        %1989 = vdwg.mxu0
        %1990 = vmatpush.bf16.msra.mxu0 0
        %1991 = vmatpush.bf16.msra.mxu0 0
        %1992 = vmatpush.bf16.msra.mxu0 0
        %1993 = vmatpush.bf16.msra.mxu0 0
        %1994 = vmatpush.bf16.msra.mxu0 %v1943
        %1995 = vmatpush.bf16.msra.mxu0 %v1939
        %1996 = vmatpush.bf16.msra.mxu0 %v1935
        %1997 = vmatpush.bf16.msra.mxu0 %v1931
        %1998 = vmatmul.bf16.gmra.mxu0 %v1962
        %v1999 = vpop.f32.mrf.mxu0
        %v2000 = vadd.f32 0.0, %v1999
        %v2001 = vpop.f32.mrf.mxu0
        %2002 = vdwg.mxu0
        %2003 = vmatpush.bf16.msra.mxu0 0
        %2004 = vmatpush.bf16.msra.mxu0 0
        %2005 = vmatpush.bf16.msra.mxu0 0
        %2006 = vmatpush.bf16.msra.mxu0 0
        %2007 = vmatpush.bf16.msra.mxu0 %v1944
        %2008 = vmatpush.bf16.msra.mxu0 %v1940
        %2009 = vmatpush.bf16.msra.mxu0 %v1936
        %2010 = vmatpush.bf16.msra.mxu0 %v1932
        %2011 = vmatmul.bf16.gmra.mxu0 %v1962
        %v2012 = vpop.f32.mrf.mxu0
        %v2013 = vadd.f32 0.0, %v2012
        %v2014 = vpop.f32.mrf.mxu0
        %2015 = vdwg.mxu0
        %v2020 = vrot.slane %v1987, 6
        %v2021 = vrot.slane %v2000, 4
        %v2022 = vrot.slane %v2013, 2
        %v2023 = vsel %vm696, %v1974, %v2020
        %v2024 = vsel %vm698, %v2021, %v2022
        %v2025 = vsel %vm700, %v2023, %v2024
        %v2027 = vadd.f32 %v1863, %v2025
        %s2028 = scalar_lea.vmem %s299, 1152 [#allocation9]
        %v2029 = vld [vmem:[%s2028] sm:$0xff]
        %v2030 = vld [vmem:[%s2028 + $0x8] sm:$0xff]
        %v2031 = vld [vmem:[%s2028 + $0x10] sm:$0xff]
        %v2032 = vld [vmem:[%s2028 + $0x18] sm:$0xff]
        %v2033 = vld [vmem:[%s2028 + $0x20] sm:$0xff]
        %v2034 = vld [vmem:[%s2028 + $0x28] sm:$0xff]
        %v2035 = vld [vmem:[%s2028 + $0x30] sm:$0xff]
        %v2036 = vld [vmem:[%s2028 + $0x38] sm:$0xff]
        %v2037 = vld [vmem:[%s2028 + $0x40] sm:$0xff]
        %v2038 = vld [vmem:[%s2028 + $0x48] sm:$0xff]
        %v2039 = vld [vmem:[%s2028 + $0x50] sm:$0xff]
        %v2040 = vld [vmem:[%s2028 + $0x58] sm:$0xff]
        %v2041 = vld [vmem:[%s2028 + $0x60] sm:$0xff]
        %v2042 = vld [vmem:[%s2028 + $0x68] sm:$0xff]
        %v2043 = vld [vmem:[%s2028 + $0x70] sm:$0xff]
        %v2044 = vld [vmem:[%s2028 + $0x78] sm:$0xff]
        %v2046 = vunpack.c.l.b16 %v534
        %v2047 = vpack.c.b16 %v2046, %v2046
        %v2048 = vrot.slane %v2047, 1
        %v2065 = vunpack.c.l.b16 %v2029
        %v2066 = vunpack.c.h.b16 %v2029
        %v2067 = vunpack.c.l.b16 %v2030
        %v2068 = vunpack.c.h.b16 %v2030
        %v2069 = vunpack.c.l.b16 %v2031
        %v2070 = vunpack.c.h.b16 %v2031
        %v2071 = vunpack.c.l.b16 %v2032
        %v2072 = vunpack.c.h.b16 %v2032
        %v2073 = vunpack.c.l.b16 %v2033
        %v2074 = vunpack.c.h.b16 %v2033
        %v2075 = vunpack.c.l.b16 %v2034
        %v2076 = vunpack.c.h.b16 %v2034
        %v2077 = vunpack.c.l.b16 %v2035
        %v2078 = vunpack.c.h.b16 %v2035
        %v2079 = vunpack.c.l.b16 %v2036
        %v2080 = vunpack.c.h.b16 %v2036
        %v2081 = vunpack.c.l.b16 %v2037
        %v2082 = vunpack.c.h.b16 %v2037
        %v2083 = vunpack.c.l.b16 %v2038
        %v2084 = vunpack.c.h.b16 %v2038
        %v2085 = vunpack.c.l.b16 %v2039
        %v2086 = vunpack.c.h.b16 %v2039
        %v2087 = vunpack.c.l.b16 %v2040
        %v2088 = vunpack.c.h.b16 %v2040
        %v2089 = vunpack.c.l.b16 %v2041
        %v2090 = vunpack.c.h.b16 %v2041
        %v2091 = vunpack.c.l.b16 %v2042
        %v2092 = vunpack.c.h.b16 %v2042
        %v2093 = vunpack.c.l.b16 %v2043
        %v2094 = vunpack.c.h.b16 %v2043
        %v2095 = vunpack.c.l.b16 %v2044
        %v2096 = vunpack.c.h.b16 %v2044
        %v2097 = vpack.c.b16 %v2069, %v2065
        %v2098 = vpack.c.b16 %v2070, %v2066
        %v2099 = vpack.c.b16 %v2071, %v2067
        %v2100 = vpack.c.b16 %v2072, %v2068
        %v2101 = vpack.c.b16 %v2077, %v2073
        %v2102 = vpack.c.b16 %v2078, %v2074
        %v2103 = vpack.c.b16 %v2079, %v2075
        %v2104 = vpack.c.b16 %v2080, %v2076
        %v2105 = vpack.c.b16 %v2085, %v2081
        %v2106 = vpack.c.b16 %v2086, %v2082
        %v2107 = vpack.c.b16 %v2087, %v2083
        %v2108 = vpack.c.b16 %v2088, %v2084
        %v2109 = vpack.c.b16 %v2093, %v2089
        %v2110 = vpack.c.b16 %v2094, %v2090
        %v2111 = vpack.c.b16 %v2095, %v2091
        %v2112 = vpack.c.b16 %v2096, %v2092
        %v2130 = vsel %vm633, %v2048, 0
        %2132 = vmatpush.bf16.msra.mxu0 0
        %2133 = vmatpush.bf16.msra.mxu0 0
        %2134 = vmatpush.bf16.msra.mxu0 0
        %2135 = vmatpush.bf16.msra.mxu0 0
        %2136 = vmatpush.bf16.msra.mxu0 %v2109
        %2137 = vmatpush.bf16.msra.mxu0 %v2105
        %2138 = vmatpush.bf16.msra.mxu0 %v2101
        %2139 = vmatpush.bf16.msra.mxu0 %v2097
        %2140 = vmatmul.bf16.gmra.mxu0 %v2130
        %v2141 = vpop.f32.mrf.mxu0
        %v2142 = vadd.f32 0.0, %v2141
        %v2143 = vpop.f32.mrf.mxu0
        %2144 = vdwg.mxu0
        %2145 = vmatpush.bf16.msra.mxu0 0
        %2146 = vmatpush.bf16.msra.mxu0 0
        %2147 = vmatpush.bf16.msra.mxu0 0
        %2148 = vmatpush.bf16.msra.mxu0 0
        %2149 = vmatpush.bf16.msra.mxu0 %v2110
        %2150 = vmatpush.bf16.msra.mxu0 %v2106
        %2151 = vmatpush.bf16.msra.mxu0 %v2102
        %2152 = vmatpush.bf16.msra.mxu0 %v2098
        %2153 = vmatmul.bf16.gmra.mxu0 %v2130
        %v2154 = vpop.f32.mrf.mxu0
        %v2155 = vadd.f32 0.0, %v2154
        %v2156 = vpop.f32.mrf.mxu0
        %2157 = vdwg.mxu0
        %2158 = vmatpush.bf16.msra.mxu0 0
        %2159 = vmatpush.bf16.msra.mxu0 0
        %2160 = vmatpush.bf16.msra.mxu0 0
        %2161 = vmatpush.bf16.msra.mxu0 0
        %2162 = vmatpush.bf16.msra.mxu0 %v2111
        %2163 = vmatpush.bf16.msra.mxu0 %v2107
        %2164 = vmatpush.bf16.msra.mxu0 %v2103
        %2165 = vmatpush.bf16.msra.mxu0 %v2099
        %2166 = vmatmul.bf16.gmra.mxu0 %v2130
        %v2167 = vpop.f32.mrf.mxu0
        %v2168 = vadd.f32 0.0, %v2167
        %v2169 = vpop.f32.mrf.mxu0
        %2170 = vdwg.mxu0
        %2171 = vmatpush.bf16.msra.mxu0 0
        %2172 = vmatpush.bf16.msra.mxu0 0
        %2173 = vmatpush.bf16.msra.mxu0 0
        %2174 = vmatpush.bf16.msra.mxu0 0
        %2175 = vmatpush.bf16.msra.mxu0 %v2112
        %2176 = vmatpush.bf16.msra.mxu0 %v2108
        %2177 = vmatpush.bf16.msra.mxu0 %v2104
        %2178 = vmatpush.bf16.msra.mxu0 %v2100
        %2179 = vmatmul.bf16.gmra.mxu0 %v2130
        %v2180 = vpop.f32.mrf.mxu0
        %v2181 = vadd.f32 0.0, %v2180
        %v2182 = vpop.f32.mrf.mxu0
        %2183 = vdwg.mxu0
        %v2188 = vrot.slane %v2155, 6
        %v2189 = vrot.slane %v2168, 4
        %v2190 = vrot.slane %v2181, 2
        %v2191 = vsel %vm696, %v2142, %v2188
        %v2192 = vsel %vm698, %v2189, %v2190
        %v2193 = vsel %vm700, %v2191, %v2192
        %v2195 = vadd.f32 %v2027, %v2193
        %s2196 = scalar_lea.vmem %s299, 1280 [#allocation9]
        %v2197 = vld [vmem:[%s2196] sm:$0xff]
        %v2198 = vld [vmem:[%s2196 + $0x8] sm:$0xff]
        %v2199 = vld [vmem:[%s2196 + $0x10] sm:$0xff]
        %v2200 = vld [vmem:[%s2196 + $0x18] sm:$0xff]
        %v2201 = vld [vmem:[%s2196 + $0x20] sm:$0xff]
        %v2202 = vld [vmem:[%s2196 + $0x28] sm:$0xff]
        %v2203 = vld [vmem:[%s2196 + $0x30] sm:$0xff]
        %v2204 = vld [vmem:[%s2196 + $0x38] sm:$0xff]
        %v2205 = vld [vmem:[%s2196 + $0x40] sm:$0xff]
        %v2206 = vld [vmem:[%s2196 + $0x48] sm:$0xff]
        %v2207 = vld [vmem:[%s2196 + $0x50] sm:$0xff]
        %v2208 = vld [vmem:[%s2196 + $0x58] sm:$0xff]
        %v2209 = vld [vmem:[%s2196 + $0x60] sm:$0xff]
        %v2210 = vld [vmem:[%s2196 + $0x68] sm:$0xff]
        %v2211 = vld [vmem:[%s2196 + $0x70] sm:$0xff]
        %v2212 = vld [vmem:[%s2196 + $0x78] sm:$0xff]
        %v2213 = vrot.slane %v2047, 2
        %v2230 = vunpack.c.l.b16 %v2197
        %v2231 = vunpack.c.h.b16 %v2197
        %v2232 = vunpack.c.l.b16 %v2198
        %v2233 = vunpack.c.h.b16 %v2198
        %v2234 = vunpack.c.l.b16 %v2199
        %v2235 = vunpack.c.h.b16 %v2199
        %v2236 = vunpack.c.l.b16 %v2200
        %v2237 = vunpack.c.h.b16 %v2200
        %v2238 = vunpack.c.l.b16 %v2201
        %v2239 = vunpack.c.h.b16 %v2201
        %v2240 = vunpack.c.l.b16 %v2202
        %v2241 = vunpack.c.h.b16 %v2202
        %v2242 = vunpack.c.l.b16 %v2203
        %v2243 = vunpack.c.h.b16 %v2203
        %v2244 = vunpack.c.l.b16 %v2204
        %v2245 = vunpack.c.h.b16 %v2204
        %v2246 = vunpack.c.l.b16 %v2205
        %v2247 = vunpack.c.h.b16 %v2205
        %v2248 = vunpack.c.l.b16 %v2206
        %v2249 = vunpack.c.h.b16 %v2206
        %v2250 = vunpack.c.l.b16 %v2207
        %v2251 = vunpack.c.h.b16 %v2207
        %v2252 = vunpack.c.l.b16 %v2208
        %v2253 = vunpack.c.h.b16 %v2208
        %v2254 = vunpack.c.l.b16 %v2209
        %v2255 = vunpack.c.h.b16 %v2209
        %v2256 = vunpack.c.l.b16 %v2210
        %v2257 = vunpack.c.h.b16 %v2210
        %v2258 = vunpack.c.l.b16 %v2211
        %v2259 = vunpack.c.h.b16 %v2211
        %v2260 = vunpack.c.l.b16 %v2212
        %v2261 = vunpack.c.h.b16 %v2212
        %v2262 = vpack.c.b16 %v2234, %v2230
        %v2263 = vpack.c.b16 %v2235, %v2231
        %v2264 = vpack.c.b16 %v2236, %v2232
        %v2265 = vpack.c.b16 %v2237, %v2233
        %v2266 = vpack.c.b16 %v2242, %v2238
        %v2267 = vpack.c.b16 %v2243, %v2239
        %v2268 = vpack.c.b16 %v2244, %v2240
        %v2269 = vpack.c.b16 %v2245, %v2241
        %v2270 = vpack.c.b16 %v2250, %v2246
        %v2271 = vpack.c.b16 %v2251, %v2247
        %v2272 = vpack.c.b16 %v2252, %v2248
        %v2273 = vpack.c.b16 %v2253, %v2249
        %v2274 = vpack.c.b16 %v2258, %v2254
        %v2275 = vpack.c.b16 %v2259, %v2255
        %v2276 = vpack.c.b16 %v2260, %v2256
        %v2277 = vpack.c.b16 %v2261, %v2257
        %v2295 = vsel %vm633, %v2213, 0
        %2297 = vmatpush.bf16.msra.mxu0 0
        %2298 = vmatpush.bf16.msra.mxu0 0
        %2299 = vmatpush.bf16.msra.mxu0 0
        %2300 = vmatpush.bf16.msra.mxu0 0
        %2301 = vmatpush.bf16.msra.mxu0 %v2274
        %2302 = vmatpush.bf16.msra.mxu0 %v2270
        %2303 = vmatpush.bf16.msra.mxu0 %v2266
        %2304 = vmatpush.bf16.msra.mxu0 %v2262
        %2305 = vmatmul.bf16.gmra.mxu0 %v2295
        %v2306 = vpop.f32.mrf.mxu0
        %v2307 = vadd.f32 0.0, %v2306
        %v2308 = vpop.f32.mrf.mxu0
        %2309 = vdwg.mxu0
        %2310 = vmatpush.bf16.msra.mxu0 0
        %2311 = vmatpush.bf16.msra.mxu0 0
        %2312 = vmatpush.bf16.msra.mxu0 0
        %2313 = vmatpush.bf16.msra.mxu0 0
        %2314 = vmatpush.bf16.msra.mxu0 %v2275
        %2315 = vmatpush.bf16.msra.mxu0 %v2271
        %2316 = vmatpush.bf16.msra.mxu0 %v2267
        %2317 = vmatpush.bf16.msra.mxu0 %v2263
        %2318 = vmatmul.bf16.gmra.mxu0 %v2295
        %v2319 = vpop.f32.mrf.mxu0
        %v2320 = vadd.f32 0.0, %v2319
        %v2321 = vpop.f32.mrf.mxu0
        %2322 = vdwg.mxu0
        %2323 = vmatpush.bf16.msra.mxu0 0
        %2324 = vmatpush.bf16.msra.mxu0 0
        %2325 = vmatpush.bf16.msra.mxu0 0
        %2326 = vmatpush.bf16.msra.mxu0 0
        %2327 = vmatpush.bf16.msra.mxu0 %v2276
        %2328 = vmatpush.bf16.msra.mxu0 %v2272
        %2329 = vmatpush.bf16.msra.mxu0 %v2268
        %2330 = vmatpush.bf16.msra.mxu0 %v2264
        %2331 = vmatmul.bf16.gmra.mxu0 %v2295
        %v2332 = vpop.f32.mrf.mxu0
        %v2333 = vadd.f32 0.0, %v2332
        %v2334 = vpop.f32.mrf.mxu0
        %2335 = vdwg.mxu0
        %2336 = vmatpush.bf16.msra.mxu0 0
        %2337 = vmatpush.bf16.msra.mxu0 0
        %2338 = vmatpush.bf16.msra.mxu0 0
        %2339 = vmatpush.bf16.msra.mxu0 0
        %2340 = vmatpush.bf16.msra.mxu0 %v2277
        %2341 = vmatpush.bf16.msra.mxu0 %v2273
        %2342 = vmatpush.bf16.msra.mxu0 %v2269
        %2343 = vmatpush.bf16.msra.mxu0 %v2265
        %2344 = vmatmul.bf16.gmra.mxu0 %v2295
        %v2345 = vpop.f32.mrf.mxu0
        %v2346 = vadd.f32 0.0, %v2345
        %v2347 = vpop.f32.mrf.mxu0
        %2348 = vdwg.mxu0
        %v2353 = vrot.slane %v2320, 6
        %v2354 = vrot.slane %v2333, 4
        %v2355 = vrot.slane %v2346, 2
        %v2356 = vsel %vm696, %v2307, %v2353
        %v2357 = vsel %vm698, %v2354, %v2355
        %v2358 = vsel %vm700, %v2356, %v2357
        %v2360 = vadd.f32 %v2195, %v2358
        %s2361 = scalar_lea.vmem %s299, 1408 [#allocation9]
        %v2362 = vld [vmem:[%s2361] sm:$0xff]
        %v2363 = vld [vmem:[%s2361 + $0x8] sm:$0xff]
        %v2364 = vld [vmem:[%s2361 + $0x10] sm:$0xff]
        %v2365 = vld [vmem:[%s2361 + $0x18] sm:$0xff]
        %v2366 = vld [vmem:[%s2361 + $0x20] sm:$0xff]
        %v2367 = vld [vmem:[%s2361 + $0x28] sm:$0xff]
        %v2368 = vld [vmem:[%s2361 + $0x30] sm:$0xff]
        %v2369 = vld [vmem:[%s2361 + $0x38] sm:$0xff]
        %v2370 = vld [vmem:[%s2361 + $0x40] sm:$0xff]
        %v2371 = vld [vmem:[%s2361 + $0x48] sm:$0xff]
        %v2372 = vld [vmem:[%s2361 + $0x50] sm:$0xff]
        %v2373 = vld [vmem:[%s2361 + $0x58] sm:$0xff]
        %v2374 = vld [vmem:[%s2361 + $0x60] sm:$0xff]
        %v2375 = vld [vmem:[%s2361 + $0x68] sm:$0xff]
        %v2376 = vld [vmem:[%s2361 + $0x70] sm:$0xff]
        %v2377 = vld [vmem:[%s2361 + $0x78] sm:$0xff]
        %v2378 = vrot.slane %v2047, 3
        %v2395 = vunpack.c.l.b16 %v2362
        %v2396 = vunpack.c.h.b16 %v2362
        %v2397 = vunpack.c.l.b16 %v2363
        %v2398 = vunpack.c.h.b16 %v2363
        %v2399 = vunpack.c.l.b16 %v2364
        %v2400 = vunpack.c.h.b16 %v2364
        %v2401 = vunpack.c.l.b16 %v2365
        %v2402 = vunpack.c.h.b16 %v2365
        %v2403 = vunpack.c.l.b16 %v2366
        %v2404 = vunpack.c.h.b16 %v2366
        %v2405 = vunpack.c.l.b16 %v2367
        %v2406 = vunpack.c.h.b16 %v2367
        %v2407 = vunpack.c.l.b16 %v2368
        %v2408 = vunpack.c.h.b16 %v2368
        %v2409 = vunpack.c.l.b16 %v2369
        %v2410 = vunpack.c.h.b16 %v2369
        %v2411 = vunpack.c.l.b16 %v2370
        %v2412 = vunpack.c.h.b16 %v2370
        %v2413 = vunpack.c.l.b16 %v2371
        %v2414 = vunpack.c.h.b16 %v2371
        %v2415 = vunpack.c.l.b16 %v2372
        %v2416 = vunpack.c.h.b16 %v2372
        %v2417 = vunpack.c.l.b16 %v2373
        %v2418 = vunpack.c.h.b16 %v2373
        %v2419 = vunpack.c.l.b16 %v2374
        %v2420 = vunpack.c.h.b16 %v2374
        %v2421 = vunpack.c.l.b16 %v2375
        %v2422 = vunpack.c.h.b16 %v2375
        %v2423 = vunpack.c.l.b16 %v2376
        %v2424 = vunpack.c.h.b16 %v2376
        %v2425 = vunpack.c.l.b16 %v2377
        %v2426 = vunpack.c.h.b16 %v2377
        %v2427 = vpack.c.b16 %v2399, %v2395
        %v2428 = vpack.c.b16 %v2400, %v2396
        %v2429 = vpack.c.b16 %v2401, %v2397
        %v2430 = vpack.c.b16 %v2402, %v2398
        %v2431 = vpack.c.b16 %v2407, %v2403
        %v2432 = vpack.c.b16 %v2408, %v2404
        %v2433 = vpack.c.b16 %v2409, %v2405
        %v2434 = vpack.c.b16 %v2410, %v2406
        %v2435 = vpack.c.b16 %v2415, %v2411
        %v2436 = vpack.c.b16 %v2416, %v2412
        %v2437 = vpack.c.b16 %v2417, %v2413
        %v2438 = vpack.c.b16 %v2418, %v2414
        %v2439 = vpack.c.b16 %v2423, %v2419
        %v2440 = vpack.c.b16 %v2424, %v2420
        %v2441 = vpack.c.b16 %v2425, %v2421
        %v2442 = vpack.c.b16 %v2426, %v2422
        %v2460 = vsel %vm633, %v2378, 0
        %2462 = vmatpush.bf16.msra.mxu0 0
        %2463 = vmatpush.bf16.msra.mxu0 0
        %2464 = vmatpush.bf16.msra.mxu0 0
        %2465 = vmatpush.bf16.msra.mxu0 0
        %2466 = vmatpush.bf16.msra.mxu0 %v2439
        %2467 = vmatpush.bf16.msra.mxu0 %v2435
        %2468 = vmatpush.bf16.msra.mxu0 %v2431
        %2469 = vmatpush.bf16.msra.mxu0 %v2427
        %2470 = vmatmul.bf16.gmra.mxu0 %v2460
        %v2471 = vpop.f32.mrf.mxu0
        %v2472 = vadd.f32 0.0, %v2471
        %v2473 = vpop.f32.mrf.mxu0
        %2474 = vdwg.mxu0
        %2475 = vmatpush.bf16.msra.mxu0 0
        %2476 = vmatpush.bf16.msra.mxu0 0
        %2477 = vmatpush.bf16.msra.mxu0 0
        %2478 = vmatpush.bf16.msra.mxu0 0
        %2479 = vmatpush.bf16.msra.mxu0 %v2440
        %2480 = vmatpush.bf16.msra.mxu0 %v2436
        %2481 = vmatpush.bf16.msra.mxu0 %v2432
        %2482 = vmatpush.bf16.msra.mxu0 %v2428
        %2483 = vmatmul.bf16.gmra.mxu0 %v2460
        %v2484 = vpop.f32.mrf.mxu0
        %v2485 = vadd.f32 0.0, %v2484
        %v2486 = vpop.f32.mrf.mxu0
        %2487 = vdwg.mxu0
        %2488 = vmatpush.bf16.msra.mxu0 0
        %2489 = vmatpush.bf16.msra.mxu0 0
        %2490 = vmatpush.bf16.msra.mxu0 0
        %2491 = vmatpush.bf16.msra.mxu0 0
        %2492 = vmatpush.bf16.msra.mxu0 %v2441
        %2493 = vmatpush.bf16.msra.mxu0 %v2437
        %2494 = vmatpush.bf16.msra.mxu0 %v2433
        %2495 = vmatpush.bf16.msra.mxu0 %v2429
        %2496 = vmatmul.bf16.gmra.mxu0 %v2460
        %v2497 = vpop.f32.mrf.mxu0
        %v2498 = vadd.f32 0.0, %v2497
        %v2499 = vpop.f32.mrf.mxu0
        %2500 = vdwg.mxu0
        %2501 = vmatpush.bf16.msra.mxu0 0
        %2502 = vmatpush.bf16.msra.mxu0 0
        %2503 = vmatpush.bf16.msra.mxu0 0
        %2504 = vmatpush.bf16.msra.mxu0 0
        %2505 = vmatpush.bf16.msra.mxu0 %v2442
        %2506 = vmatpush.bf16.msra.mxu0 %v2438
        %2507 = vmatpush.bf16.msra.mxu0 %v2434
        %2508 = vmatpush.bf16.msra.mxu0 %v2430
        %2509 = vmatmul.bf16.gmra.mxu0 %v2460
        %v2510 = vpop.f32.mrf.mxu0
        %v2511 = vadd.f32 0.0, %v2510
        %v2512 = vpop.f32.mrf.mxu0
        %2513 = vdwg.mxu0
        %v2518 = vrot.slane %v2485, 6
        %v2519 = vrot.slane %v2498, 4
        %v2520 = vrot.slane %v2511, 2
        %v2521 = vsel %vm696, %v2472, %v2518
        %v2522 = vsel %vm698, %v2519, %v2520
        %v2523 = vsel %vm700, %v2521, %v2522
        %v2525 = vadd.f32 %v2360, %v2523
        %s2526 = scalar_lea.vmem %s299, 1536 [#allocation9]
        %v2527 = vld [vmem:[%s2526] sm:$0xff]
        %v2528 = vld [vmem:[%s2526 + $0x8] sm:$0xff]
        %v2529 = vld [vmem:[%s2526 + $0x10] sm:$0xff]
        %v2530 = vld [vmem:[%s2526 + $0x18] sm:$0xff]
        %v2531 = vld [vmem:[%s2526 + $0x20] sm:$0xff]
        %v2532 = vld [vmem:[%s2526 + $0x28] sm:$0xff]
        %v2533 = vld [vmem:[%s2526 + $0x30] sm:$0xff]
        %v2534 = vld [vmem:[%s2526 + $0x38] sm:$0xff]
        %v2535 = vld [vmem:[%s2526 + $0x40] sm:$0xff]
        %v2536 = vld [vmem:[%s2526 + $0x48] sm:$0xff]
        %v2537 = vld [vmem:[%s2526 + $0x50] sm:$0xff]
        %v2538 = vld [vmem:[%s2526 + $0x58] sm:$0xff]
        %v2539 = vld [vmem:[%s2526 + $0x60] sm:$0xff]
        %v2540 = vld [vmem:[%s2526 + $0x68] sm:$0xff]
        %v2541 = vld [vmem:[%s2526 + $0x70] sm:$0xff]
        %v2542 = vld [vmem:[%s2526 + $0x78] sm:$0xff]
        %v2559 = vunpack.c.l.b16 %v2527
        %v2560 = vunpack.c.h.b16 %v2527
        %v2561 = vunpack.c.l.b16 %v2528
        %v2562 = vunpack.c.h.b16 %v2528
        %v2563 = vunpack.c.l.b16 %v2529
        %v2564 = vunpack.c.h.b16 %v2529
        %v2565 = vunpack.c.l.b16 %v2530
        %v2566 = vunpack.c.h.b16 %v2530
        %v2567 = vunpack.c.l.b16 %v2531
        %v2568 = vunpack.c.h.b16 %v2531
        %v2569 = vunpack.c.l.b16 %v2532
        %v2570 = vunpack.c.h.b16 %v2532
        %v2571 = vunpack.c.l.b16 %v2533
        %v2572 = vunpack.c.h.b16 %v2533
        %v2573 = vunpack.c.l.b16 %v2534
        %v2574 = vunpack.c.h.b16 %v2534
        %v2575 = vunpack.c.l.b16 %v2535
        %v2576 = vunpack.c.h.b16 %v2535
        %v2577 = vunpack.c.l.b16 %v2536
        %v2578 = vunpack.c.h.b16 %v2536
        %v2579 = vunpack.c.l.b16 %v2537
        %v2580 = vunpack.c.h.b16 %v2537
        %v2581 = vunpack.c.l.b16 %v2538
        %v2582 = vunpack.c.h.b16 %v2538
        %v2583 = vunpack.c.l.b16 %v2539
        %v2584 = vunpack.c.h.b16 %v2539
        %v2585 = vunpack.c.l.b16 %v2540
        %v2586 = vunpack.c.h.b16 %v2540
        %v2587 = vunpack.c.l.b16 %v2541
        %v2588 = vunpack.c.h.b16 %v2541
        %v2589 = vunpack.c.l.b16 %v2542
        %v2590 = vunpack.c.h.b16 %v2542
        %v2591 = vpack.c.b16 %v2563, %v2559
        %v2592 = vpack.c.b16 %v2564, %v2560
        %v2593 = vpack.c.b16 %v2565, %v2561
        %v2594 = vpack.c.b16 %v2566, %v2562
        %v2595 = vpack.c.b16 %v2571, %v2567
        %v2596 = vpack.c.b16 %v2572, %v2568
        %v2597 = vpack.c.b16 %v2573, %v2569
        %v2598 = vpack.c.b16 %v2574, %v2570
        %v2599 = vpack.c.b16 %v2579, %v2575
        %v2600 = vpack.c.b16 %v2580, %v2576
        %v2601 = vpack.c.b16 %v2581, %v2577
        %v2602 = vpack.c.b16 %v2582, %v2578
        %v2603 = vpack.c.b16 %v2587, %v2583
        %v2604 = vpack.c.b16 %v2588, %v2584
        %v2605 = vpack.c.b16 %v2589, %v2585
        %v2606 = vpack.c.b16 %v2590, %v2586
        %v2624 = vsel %vm633, %v535, 0
        %2626 = vmatpush.bf16.msra.mxu0 0
        %2627 = vmatpush.bf16.msra.mxu0 0
        %2628 = vmatpush.bf16.msra.mxu0 0
        %2629 = vmatpush.bf16.msra.mxu0 0
        %2630 = vmatpush.bf16.msra.mxu0 %v2603
        %2631 = vmatpush.bf16.msra.mxu0 %v2599
        %2632 = vmatpush.bf16.msra.mxu0 %v2595
        %2633 = vmatpush.bf16.msra.mxu0 %v2591
        %2634 = vmatmul.bf16.gmra.mxu0 %v2624
        %v2635 = vpop.f32.mrf.mxu0
        %v2636 = vadd.f32 0.0, %v2635
        %v2637 = vpop.f32.mrf.mxu0
        %2638 = vdwg.mxu0
        %2639 = vmatpush.bf16.msra.mxu0 0
        %2640 = vmatpush.bf16.msra.mxu0 0
        %2641 = vmatpush.bf16.msra.mxu0 0
        %2642 = vmatpush.bf16.msra.mxu0 0
        %2643 = vmatpush.bf16.msra.mxu0 %v2604
        %2644 = vmatpush.bf16.msra.mxu0 %v2600
        %2645 = vmatpush.bf16.msra.mxu0 %v2596
        %2646 = vmatpush.bf16.msra.mxu0 %v2592
        %2647 = vmatmul.bf16.gmra.mxu0 %v2624
        %v2648 = vpop.f32.mrf.mxu0
        %v2649 = vadd.f32 0.0, %v2648
        %v2650 = vpop.f32.mrf.mxu0
        %2651 = vdwg.mxu0
        %2652 = vmatpush.bf16.msra.mxu0 0
        %2653 = vmatpush.bf16.msra.mxu0 0
        %2654 = vmatpush.bf16.msra.mxu0 0
        %2655 = vmatpush.bf16.msra.mxu0 0
        %2656 = vmatpush.bf16.msra.mxu0 %v2605
        %2657 = vmatpush.bf16.msra.mxu0 %v2601
        %2658 = vmatpush.bf16.msra.mxu0 %v2597
        %2659 = vmatpush.bf16.msra.mxu0 %v2593
        %2660 = vmatmul.bf16.gmra.mxu0 %v2624
        %v2661 = vpop.f32.mrf.mxu0
        %v2662 = vadd.f32 0.0, %v2661
        %v2663 = vpop.f32.mrf.mxu0
        %2664 = vdwg.mxu0
        %2665 = vmatpush.bf16.msra.mxu0 0
        %2666 = vmatpush.bf16.msra.mxu0 0
        %2667 = vmatpush.bf16.msra.mxu0 0
        %2668 = vmatpush.bf16.msra.mxu0 0
        %2669 = vmatpush.bf16.msra.mxu0 %v2606
        %2670 = vmatpush.bf16.msra.mxu0 %v2602
        %2671 = vmatpush.bf16.msra.mxu0 %v2598
        %2672 = vmatpush.bf16.msra.mxu0 %v2594
        %2673 = vmatmul.bf16.gmra.mxu0 %v2624
        %v2674 = vpop.f32.mrf.mxu0
        %v2675 = vadd.f32 0.0, %v2674
        %v2676 = vpop.f32.mrf.mxu0
        %2677 = vdwg.mxu0
        %v2682 = vrot.slane %v2649, 6
        %v2683 = vrot.slane %v2662, 4
        %v2684 = vrot.slane %v2675, 2
        %v2685 = vsel %vm696, %v2636, %v2682
        %v2686 = vsel %vm698, %v2683, %v2684
        %v2687 = vsel %vm700, %v2685, %v2686
        %v2689 = vadd.f32 %v2525, %v2687
        %s2690 = scalar_lea.vmem %s299, 1664 [#allocation9]
        %v2691 = vld [vmem:[%s2690] sm:$0xff]
        %v2692 = vld [vmem:[%s2690 + $0x8] sm:$0xff]
        %v2693 = vld [vmem:[%s2690 + $0x10] sm:$0xff]
        %v2694 = vld [vmem:[%s2690 + $0x18] sm:$0xff]
        %v2695 = vld [vmem:[%s2690 + $0x20] sm:$0xff]
        %v2696 = vld [vmem:[%s2690 + $0x28] sm:$0xff]
        %v2697 = vld [vmem:[%s2690 + $0x30] sm:$0xff]
        %v2698 = vld [vmem:[%s2690 + $0x38] sm:$0xff]
        %v2699 = vld [vmem:[%s2690 + $0x40] sm:$0xff]
        %v2700 = vld [vmem:[%s2690 + $0x48] sm:$0xff]
        %v2701 = vld [vmem:[%s2690 + $0x50] sm:$0xff]
        %v2702 = vld [vmem:[%s2690 + $0x58] sm:$0xff]
        %v2703 = vld [vmem:[%s2690 + $0x60] sm:$0xff]
        %v2704 = vld [vmem:[%s2690 + $0x68] sm:$0xff]
        %v2705 = vld [vmem:[%s2690 + $0x70] sm:$0xff]
        %v2706 = vld [vmem:[%s2690 + $0x78] sm:$0xff]
        %v2708 = vunpack.c.l.b16 %v535
        %v2709 = vpack.c.b16 %v2708, %v2708
        %v2710 = vrot.slane %v2709, 1
        %v2727 = vunpack.c.l.b16 %v2691
        %v2728 = vunpack.c.h.b16 %v2691
        %v2729 = vunpack.c.l.b16 %v2692
        %v2730 = vunpack.c.h.b16 %v2692
        %v2731 = vunpack.c.l.b16 %v2693
        %v2732 = vunpack.c.h.b16 %v2693
        %v2733 = vunpack.c.l.b16 %v2694
        %v2734 = vunpack.c.h.b16 %v2694
        %v2735 = vunpack.c.l.b16 %v2695
        %v2736 = vunpack.c.h.b16 %v2695
        %v2737 = vunpack.c.l.b16 %v2696
        %v2738 = vunpack.c.h.b16 %v2696
        %v2739 = vunpack.c.l.b16 %v2697
        %v2740 = vunpack.c.h.b16 %v2697
        %v2741 = vunpack.c.l.b16 %v2698
        %v2742 = vunpack.c.h.b16 %v2698
        %v2743 = vunpack.c.l.b16 %v2699
        %v2744 = vunpack.c.h.b16 %v2699
        %v2745 = vunpack.c.l.b16 %v2700
        %v2746 = vunpack.c.h.b16 %v2700
        %v2747 = vunpack.c.l.b16 %v2701
        %v2748 = vunpack.c.h.b16 %v2701
        %v2749 = vunpack.c.l.b16 %v2702
        %v2750 = vunpack.c.h.b16 %v2702
        %v2751 = vunpack.c.l.b16 %v2703
        %v2752 = vunpack.c.h.b16 %v2703
        %v2753 = vunpack.c.l.b16 %v2704
        %v2754 = vunpack.c.h.b16 %v2704
        %v2755 = vunpack.c.l.b16 %v2705
        %v2756 = vunpack.c.h.b16 %v2705
        %v2757 = vunpack.c.l.b16 %v2706
        %v2758 = vunpack.c.h.b16 %v2706
        %v2759 = vpack.c.b16 %v2731, %v2727
        %v2760 = vpack.c.b16 %v2732, %v2728
        %v2761 = vpack.c.b16 %v2733, %v2729
        %v2762 = vpack.c.b16 %v2734, %v2730
        %v2763 = vpack.c.b16 %v2739, %v2735
        %v2764 = vpack.c.b16 %v2740, %v2736
        %v2765 = vpack.c.b16 %v2741, %v2737
        %v2766 = vpack.c.b16 %v2742, %v2738
        %v2767 = vpack.c.b16 %v2747, %v2743
        %v2768 = vpack.c.b16 %v2748, %v2744
        %v2769 = vpack.c.b16 %v2749, %v2745
        %v2770 = vpack.c.b16 %v2750, %v2746
        %v2771 = vpack.c.b16 %v2755, %v2751
        %v2772 = vpack.c.b16 %v2756, %v2752
        %v2773 = vpack.c.b16 %v2757, %v2753
        %v2774 = vpack.c.b16 %v2758, %v2754
        %v2792 = vsel %vm633, %v2710, 0
        %2794 = vmatpush.bf16.msra.mxu0 0
        %2795 = vmatpush.bf16.msra.mxu0 0
        %2796 = vmatpush.bf16.msra.mxu0 0
        %2797 = vmatpush.bf16.msra.mxu0 0
        %2798 = vmatpush.bf16.msra.mxu0 %v2771
        %2799 = vmatpush.bf16.msra.mxu0 %v2767
        %2800 = vmatpush.bf16.msra.mxu0 %v2763
        %2801 = vmatpush.bf16.msra.mxu0 %v2759
        %2802 = vmatmul.bf16.gmra.mxu0 %v2792
        %v2803 = vpop.f32.mrf.mxu0
        %v2804 = vadd.f32 0.0, %v2803
        %v2805 = vpop.f32.mrf.mxu0
        %2806 = vdwg.mxu0
        %2807 = vmatpush.bf16.msra.mxu0 0
        %2808 = vmatpush.bf16.msra.mxu0 0
        %2809 = vmatpush.bf16.msra.mxu0 0
        %2810 = vmatpush.bf16.msra.mxu0 0
        %2811 = vmatpush.bf16.msra.mxu0 %v2772
        %2812 = vmatpush.bf16.msra.mxu0 %v2768
        %2813 = vmatpush.bf16.msra.mxu0 %v2764
        %2814 = vmatpush.bf16.msra.mxu0 %v2760
        %2815 = vmatmul.bf16.gmra.mxu0 %v2792
        %v2816 = vpop.f32.mrf.mxu0
        %v2817 = vadd.f32 0.0, %v2816
        %v2818 = vpop.f32.mrf.mxu0
        %2819 = vdwg.mxu0
        %2820 = vmatpush.bf16.msra.mxu0 0
        %2821 = vmatpush.bf16.msra.mxu0 0
        %2822 = vmatpush.bf16.msra.mxu0 0
        %2823 = vmatpush.bf16.msra.mxu0 0
        %2824 = vmatpush.bf16.msra.mxu0 %v2773
        %2825 = vmatpush.bf16.msra.mxu0 %v2769
        %2826 = vmatpush.bf16.msra.mxu0 %v2765
        %2827 = vmatpush.bf16.msra.mxu0 %v2761
        %2828 = vmatmul.bf16.gmra.mxu0 %v2792
        %v2829 = vpop.f32.mrf.mxu0
        %v2830 = vadd.f32 0.0, %v2829
        %v2831 = vpop.f32.mrf.mxu0
        %2832 = vdwg.mxu0
        %2833 = vmatpush.bf16.msra.mxu0 0
        %2834 = vmatpush.bf16.msra.mxu0 0
        %2835 = vmatpush.bf16.msra.mxu0 0
        %2836 = vmatpush.bf16.msra.mxu0 0
        %2837 = vmatpush.bf16.msra.mxu0 %v2774
        %2838 = vmatpush.bf16.msra.mxu0 %v2770
        %2839 = vmatpush.bf16.msra.mxu0 %v2766
        %2840 = vmatpush.bf16.msra.mxu0 %v2762
        %2841 = vmatmul.bf16.gmra.mxu0 %v2792
        %v2842 = vpop.f32.mrf.mxu0
        %v2843 = vadd.f32 0.0, %v2842
        %v2844 = vpop.f32.mrf.mxu0
        %2845 = vdwg.mxu0
        %v2850 = vrot.slane %v2817, 6
        %v2851 = vrot.slane %v2830, 4
        %v2852 = vrot.slane %v2843, 2
        %v2853 = vsel %vm696, %v2804, %v2850
        %v2854 = vsel %vm698, %v2851, %v2852
        %v2855 = vsel %vm700, %v2853, %v2854
        %v2857 = vadd.f32 %v2689, %v2855
        %s2858 = scalar_lea.vmem %s299, 1792 [#allocation9]
        %v2859 = vld [vmem:[%s2858] sm:$0xff]
        %v2860 = vld [vmem:[%s2858 + $0x8] sm:$0xff]
        %v2861 = vld [vmem:[%s2858 + $0x10] sm:$0xff]
        %v2862 = vld [vmem:[%s2858 + $0x18] sm:$0xff]
        %v2863 = vld [vmem:[%s2858 + $0x20] sm:$0xff]
        %v2864 = vld [vmem:[%s2858 + $0x28] sm:$0xff]
        %v2865 = vld [vmem:[%s2858 + $0x30] sm:$0xff]
        %v2866 = vld [vmem:[%s2858 + $0x38] sm:$0xff]
        %v2867 = vld [vmem:[%s2858 + $0x40] sm:$0xff]
        %v2868 = vld [vmem:[%s2858 + $0x48] sm:$0xff]
        %v2869 = vld [vmem:[%s2858 + $0x50] sm:$0xff]
        %v2870 = vld [vmem:[%s2858 + $0x58] sm:$0xff]
        %v2871 = vld [vmem:[%s2858 + $0x60] sm:$0xff]
        %v2872 = vld [vmem:[%s2858 + $0x68] sm:$0xff]
        %v2873 = vld [vmem:[%s2858 + $0x70] sm:$0xff]
        %v2874 = vld [vmem:[%s2858 + $0x78] sm:$0xff]
        %v2875 = vrot.slane %v2709, 2
        %v2892 = vunpack.c.l.b16 %v2859
        %v2893 = vunpack.c.h.b16 %v2859
        %v2894 = vunpack.c.l.b16 %v2860
        %v2895 = vunpack.c.h.b16 %v2860
        %v2896 = vunpack.c.l.b16 %v2861
        %v2897 = vunpack.c.h.b16 %v2861
        %v2898 = vunpack.c.l.b16 %v2862
        %v2899 = vunpack.c.h.b16 %v2862
        %v2900 = vunpack.c.l.b16 %v2863
        %v2901 = vunpack.c.h.b16 %v2863
        %v2902 = vunpack.c.l.b16 %v2864
        %v2903 = vunpack.c.h.b16 %v2864
        %v2904 = vunpack.c.l.b16 %v2865
        %v2905 = vunpack.c.h.b16 %v2865
        %v2906 = vunpack.c.l.b16 %v2866
        %v2907 = vunpack.c.h.b16 %v2866
        %v2908 = vunpack.c.l.b16 %v2867
        %v2909 = vunpack.c.h.b16 %v2867
        %v2910 = vunpack.c.l.b16 %v2868
        %v2911 = vunpack.c.h.b16 %v2868
        %v2912 = vunpack.c.l.b16 %v2869
        %v2913 = vunpack.c.h.b16 %v2869
        %v2914 = vunpack.c.l.b16 %v2870
        %v2915 = vunpack.c.h.b16 %v2870
        %v2916 = vunpack.c.l.b16 %v2871
        %v2917 = vunpack.c.h.b16 %v2871
        %v2918 = vunpack.c.l.b16 %v2872
        %v2919 = vunpack.c.h.b16 %v2872
        %v2920 = vunpack.c.l.b16 %v2873
        %v2921 = vunpack.c.h.b16 %v2873
        %v2922 = vunpack.c.l.b16 %v2874
        %v2923 = vunpack.c.h.b16 %v2874
        %v2924 = vpack.c.b16 %v2896, %v2892
        %v2925 = vpack.c.b16 %v2897, %v2893
        %v2926 = vpack.c.b16 %v2898, %v2894
        %v2927 = vpack.c.b16 %v2899, %v2895
        %v2928 = vpack.c.b16 %v2904, %v2900
        %v2929 = vpack.c.b16 %v2905, %v2901
        %v2930 = vpack.c.b16 %v2906, %v2902
        %v2931 = vpack.c.b16 %v2907, %v2903
        %v2932 = vpack.c.b16 %v2912, %v2908
        %v2933 = vpack.c.b16 %v2913, %v2909
        %v2934 = vpack.c.b16 %v2914, %v2910
        %v2935 = vpack.c.b16 %v2915, %v2911
        %v2936 = vpack.c.b16 %v2920, %v2916
        %v2937 = vpack.c.b16 %v2921, %v2917
        %v2938 = vpack.c.b16 %v2922, %v2918
        %v2939 = vpack.c.b16 %v2923, %v2919
        %v2957 = vsel %vm633, %v2875, 0
        %2959 = vmatpush.bf16.msra.mxu0 0
        %2960 = vmatpush.bf16.msra.mxu0 0
        %2961 = vmatpush.bf16.msra.mxu0 0
        %2962 = vmatpush.bf16.msra.mxu0 0
        %2963 = vmatpush.bf16.msra.mxu0 %v2936
        %2964 = vmatpush.bf16.msra.mxu0 %v2932
        %2965 = vmatpush.bf16.msra.mxu0 %v2928
        %2966 = vmatpush.bf16.msra.mxu0 %v2924
        %2967 = vmatmul.bf16.gmra.mxu0 %v2957
        %v2968 = vpop.f32.mrf.mxu0
        %v2969 = vadd.f32 0.0, %v2968
        %v2970 = vpop.f32.mrf.mxu0
        %2971 = vdwg.mxu0
        %2972 = vmatpush.bf16.msra.mxu0 0
        %2973 = vmatpush.bf16.msra.mxu0 0
        %2974 = vmatpush.bf16.msra.mxu0 0
        %2975 = vmatpush.bf16.msra.mxu0 0
        %2976 = vmatpush.bf16.msra.mxu0 %v2937
        %2977 = vmatpush.bf16.msra.mxu0 %v2933
        %2978 = vmatpush.bf16.msra.mxu0 %v2929
        %2979 = vmatpush.bf16.msra.mxu0 %v2925
        %2980 = vmatmul.bf16.gmra.mxu0 %v2957
        %v2981 = vpop.f32.mrf.mxu0
        %v2982 = vadd.f32 0.0, %v2981
        %v2983 = vpop.f32.mrf.mxu0
        %2984 = vdwg.mxu0
        %2985 = vmatpush.bf16.msra.mxu0 0
        %2986 = vmatpush.bf16.msra.mxu0 0
        %2987 = vmatpush.bf16.msra.mxu0 0
        %2988 = vmatpush.bf16.msra.mxu0 0
        %2989 = vmatpush.bf16.msra.mxu0 %v2938
        %2990 = vmatpush.bf16.msra.mxu0 %v2934
        %2991 = vmatpush.bf16.msra.mxu0 %v2930
        %2992 = vmatpush.bf16.msra.mxu0 %v2926
        %2993 = vmatmul.bf16.gmra.mxu0 %v2957
        %v2994 = vpop.f32.mrf.mxu0
        %v2995 = vadd.f32 0.0, %v2994
        %v2996 = vpop.f32.mrf.mxu0
        %2997 = vdwg.mxu0
        %2998 = vmatpush.bf16.msra.mxu0 0
        %2999 = vmatpush.bf16.msra.mxu0 0
        %3000 = vmatpush.bf16.msra.mxu0 0
        %3001 = vmatpush.bf16.msra.mxu0 0
        %3002 = vmatpush.bf16.msra.mxu0 %v2939
        %3003 = vmatpush.bf16.msra.mxu0 %v2935
        %3004 = vmatpush.bf16.msra.mxu0 %v2931
        %3005 = vmatpush.bf16.msra.mxu0 %v2927
        %3006 = vmatmul.bf16.gmra.mxu0 %v2957
        %v3007 = vpop.f32.mrf.mxu0
        %v3008 = vadd.f32 0.0, %v3007
        %v3009 = vpop.f32.mrf.mxu0
        %3010 = vdwg.mxu0
        %v3015 = vrot.slane %v2982, 6
        %v3016 = vrot.slane %v2995, 4
        %v3017 = vrot.slane %v3008, 2
        %v3018 = vsel %vm696, %v2969, %v3015
        %v3019 = vsel %vm698, %v3016, %v3017
        %v3020 = vsel %vm700, %v3018, %v3019
        %v3022 = vadd.f32 %v2857, %v3020
        %s3023 = scalar_lea.vmem %s299, 1920 [#allocation9]
        %v3024 = vld [vmem:[%s3023] sm:$0xff]
        %v3025 = vld [vmem:[%s3023 + $0x8] sm:$0xff]
        %v3026 = vld [vmem:[%s3023 + $0x10] sm:$0xff]
        %v3027 = vld [vmem:[%s3023 + $0x18] sm:$0xff]
        %v3028 = vld [vmem:[%s3023 + $0x20] sm:$0xff]
        %v3029 = vld [vmem:[%s3023 + $0x28] sm:$0xff]
        %v3030 = vld [vmem:[%s3023 + $0x30] sm:$0xff]
        %v3031 = vld [vmem:[%s3023 + $0x38] sm:$0xff]
        %v3032 = vld [vmem:[%s3023 + $0x40] sm:$0xff]
        %v3033 = vld [vmem:[%s3023 + $0x48] sm:$0xff]
        %v3034 = vld [vmem:[%s3023 + $0x50] sm:$0xff]
        %v3035 = vld [vmem:[%s3023 + $0x58] sm:$0xff]
        %v3036 = vld [vmem:[%s3023 + $0x60] sm:$0xff]
        %v3037 = vld [vmem:[%s3023 + $0x68] sm:$0xff]
        %v3038 = vld [vmem:[%s3023 + $0x70] sm:$0xff]
        %v3039 = vld [vmem:[%s3023 + $0x78] sm:$0xff]
        %v3040 = vrot.slane %v2709, 3
        %v3057 = vunpack.c.l.b16 %v3024
        %v3058 = vunpack.c.h.b16 %v3024
        %v3059 = vunpack.c.l.b16 %v3025
        %v3060 = vunpack.c.h.b16 %v3025
        %v3061 = vunpack.c.l.b16 %v3026
        %v3062 = vunpack.c.h.b16 %v3026
        %v3063 = vunpack.c.l.b16 %v3027
        %v3064 = vunpack.c.h.b16 %v3027
        %v3065 = vunpack.c.l.b16 %v3028
        %v3066 = vunpack.c.h.b16 %v3028
        %v3067 = vunpack.c.l.b16 %v3029
        %v3068 = vunpack.c.h.b16 %v3029
        %v3069 = vunpack.c.l.b16 %v3030
        %v3070 = vunpack.c.h.b16 %v3030
        %v3071 = vunpack.c.l.b16 %v3031
        %v3072 = vunpack.c.h.b16 %v3031
        %v3073 = vunpack.c.l.b16 %v3032
        %v3074 = vunpack.c.h.b16 %v3032
        %v3075 = vunpack.c.l.b16 %v3033
        %v3076 = vunpack.c.h.b16 %v3033
        %v3077 = vunpack.c.l.b16 %v3034
        %v3078 = vunpack.c.h.b16 %v3034
        %v3079 = vunpack.c.l.b16 %v3035
        %v3080 = vunpack.c.h.b16 %v3035
        %v3081 = vunpack.c.l.b16 %v3036
        %v3082 = vunpack.c.h.b16 %v3036
        %v3083 = vunpack.c.l.b16 %v3037
        %v3084 = vunpack.c.h.b16 %v3037
        %v3085 = vunpack.c.l.b16 %v3038
        %v3086 = vunpack.c.h.b16 %v3038
        %v3087 = vunpack.c.l.b16 %v3039
        %v3088 = vunpack.c.h.b16 %v3039
        %v3089 = vpack.c.b16 %v3061, %v3057
        %v3090 = vpack.c.b16 %v3062, %v3058
        %v3091 = vpack.c.b16 %v3063, %v3059
        %v3092 = vpack.c.b16 %v3064, %v3060
        %v3093 = vpack.c.b16 %v3069, %v3065
        %v3094 = vpack.c.b16 %v3070, %v3066
        %v3095 = vpack.c.b16 %v3071, %v3067
        %v3096 = vpack.c.b16 %v3072, %v3068
        %v3097 = vpack.c.b16 %v3077, %v3073
        %v3098 = vpack.c.b16 %v3078, %v3074
        %v3099 = vpack.c.b16 %v3079, %v3075
        %v3100 = vpack.c.b16 %v3080, %v3076
        %v3101 = vpack.c.b16 %v3085, %v3081
        %v3102 = vpack.c.b16 %v3086, %v3082
        %v3103 = vpack.c.b16 %v3087, %v3083
        %v3104 = vpack.c.b16 %v3088, %v3084
        %v3122 = vsel %vm633, %v3040, 0
        %3124 = vmatpush.bf16.msra.mxu0 0
        %3125 = vmatpush.bf16.msra.mxu0 0
        %3126 = vmatpush.bf16.msra.mxu0 0
        %3127 = vmatpush.bf16.msra.mxu0 0
        %3128 = vmatpush.bf16.msra.mxu0 %v3101
        %3129 = vmatpush.bf16.msra.mxu0 %v3097
        %3130 = vmatpush.bf16.msra.mxu0 %v3093
        %3131 = vmatpush.bf16.msra.mxu0 %v3089
        %3132 = vmatmul.bf16.gmra.mxu0 %v3122
        %v3133 = vpop.f32.mrf.mxu0
        %v3134 = vadd.f32 0.0, %v3133
        %v3135 = vpop.f32.mrf.mxu0
        %3136 = vdwg.mxu0
        %3137 = vmatpush.bf16.msra.mxu0 0
        %3138 = vmatpush.bf16.msra.mxu0 0
        %3139 = vmatpush.bf16.msra.mxu0 0
        %3140 = vmatpush.bf16.msra.mxu0 0
        %3141 = vmatpush.bf16.msra.mxu0 %v3102
        %3142 = vmatpush.bf16.msra.mxu0 %v3098
        %3143 = vmatpush.bf16.msra.mxu0 %v3094
        %3144 = vmatpush.bf16.msra.mxu0 %v3090
        %3145 = vmatmul.bf16.gmra.mxu0 %v3122
        %v3146 = vpop.f32.mrf.mxu0
        %v3147 = vadd.f32 0.0, %v3146
        %v3148 = vpop.f32.mrf.mxu0
        %3149 = vdwg.mxu0
        %3150 = vmatpush.bf16.msra.mxu0 0
        %3151 = vmatpush.bf16.msra.mxu0 0
        %3152 = vmatpush.bf16.msra.mxu0 0
        %3153 = vmatpush.bf16.msra.mxu0 0
        %3154 = vmatpush.bf16.msra.mxu0 %v3103
        %3155 = vmatpush.bf16.msra.mxu0 %v3099
        %3156 = vmatpush.bf16.msra.mxu0 %v3095
        %3157 = vmatpush.bf16.msra.mxu0 %v3091
        %3158 = vmatmul.bf16.gmra.mxu0 %v3122
        %v3159 = vpop.f32.mrf.mxu0
        %v3160 = vadd.f32 0.0, %v3159
        %v3161 = vpop.f32.mrf.mxu0
        %3162 = vdwg.mxu0
        %3163 = vmatpush.bf16.msra.mxu0 0
        %3164 = vmatpush.bf16.msra.mxu0 0
        %3165 = vmatpush.bf16.msra.mxu0 0
        %3166 = vmatpush.bf16.msra.mxu0 0
        %3167 = vmatpush.bf16.msra.mxu0 %v3104
        %3168 = vmatpush.bf16.msra.mxu0 %v3100
        %3169 = vmatpush.bf16.msra.mxu0 %v3096
        %3170 = vmatpush.bf16.msra.mxu0 %v3092
        %3171 = vmatmul.bf16.gmra.mxu0 %v3122
        %v3172 = vpop.f32.mrf.mxu0
        %v3173 = vadd.f32 0.0, %v3172
        %v3174 = vpop.f32.mrf.mxu0
        %3175 = vdwg.mxu0
        %v3180 = vrot.slane %v3147, 6
        %v3181 = vrot.slane %v3160, 4
        %v3182 = vrot.slane %v3173, 2
        %v3183 = vsel %vm696, %v3134, %v3180
        %v3184 = vsel %vm698, %v3181, %v3182
        %v3185 = vsel %vm700, %v3183, %v3184
        %v3187 = vadd.f32 %v3022, %v3185
        %3188 = vst [vmem:[#allocation3] sm:$0xff] %v3187
        %p3189 = scmp.eq.s32.totalorder %s21, 3
        // Predicated region
        $region69: #{net_cnn_simp_forward.1} parent=47 // pred_check
          %p3190 = pneg %p3189
        $region70: #{net_cnn_simp_forward.1} parent=47 // pred_check_branch
          %3192 = sbr.rel (%p3190) target = $region72
        $region71: #{net_cnn_simp_forward.1} parent=47 // pred_region
          %v3193 = vld [vmem:[#allocation10] sm:$0xf]
          %v3195 = vperm.slane %v3193, 0
          %v3196 = vperm.slane %v3193, 1
          %v3197 = vperm.slane %v3193, 2
          %v3198 = vperm.slane %v3193, 3
          %v3199 = vrot.slane %v3196, 6
          %v3200 = vrot.slane %v3197, 4
          %v3201 = vrot.slane %v3198, 2
          %v3202 = vsel %vm696, %v3195, %v3199
          %v3203 = vsel %vm698, %v3200, %v3201
          %v3204 = vsel %vm700, %v3202, %v3203
          %v3206 = vadd.f32 %v3187, %v3204
          %vm3207 = vcmp.ge.f32.partialorder %v3206, 0.0
          %v3208 = vmul.f32 %v3206, 0.01
          %v3209 = vsel %vm3207, %v3206, %v3208
          %v3210 = vld [vmem:[%s5] sm:$0xff]
          %v3211 = vld [vmem:[%s5 + $0x8] sm:$0xff]
          %v3212 = vld [vmem:[%s5 + $0x10] sm:$0xff]
          %v3213 = vld [vmem:[%s5 + $0x18] sm:$0xff]
          %v3214 = vld [vmem:[%s5 + $0x20] sm:$0xff]
          %v3215 = vld [vmem:[%s5 + $0x28] sm:$0xff]
          %v3216 = vld [vmem:[%s5 + $0x30] sm:$0xff]
          %v3217 = vld [vmem:[%s5 + $0x38] sm:$0xff]
          %v3218 = vld [vmem:[%s5 + $0x40] sm:$0xff]
          %v3219 = vld [vmem:[%s5 + $0x48] sm:$0xff]
          %v3220 = vld [vmem:[%s5 + $0x50] sm:$0xff]
          %v3221 = vld [vmem:[%s5 + $0x58] sm:$0xff]
          %v3222 = vld [vmem:[%s5 + $0x60] sm:$0xff]
          %v3223 = vld [vmem:[%s5 + $0x68] sm:$0xff]
          %v3224 = vld [vmem:[%s5 + $0x70] sm:$0xff]
          %v3225 = vld [vmem:[%s5 + $0x78] sm:$0xff]
          %v3226 = vld [vmem:[%s5 + $0x80] sm:$0xff]
          %v3227 = vld [vmem:[%s5 + $0x88] sm:$0xff]
          %v3228 = vld [vmem:[%s5 + $0x90] sm:$0xff]
          %v3229 = vld [vmem:[%s5 + $0x98] sm:$0xff]
          %v3230 = vld [vmem:[%s5 + $0xa0] sm:$0xff]
          %v3231 = vld [vmem:[%s5 + $0xa8] sm:$0xff]
          %v3232 = vld [vmem:[%s5 + $0xb0] sm:$0xff]
          %v3233 = vld [vmem:[%s5 + $0xb8] sm:$0xff]
          %v3234 = vld [vmem:[%s5 + $0xc0] sm:$0xff]
          %v3235 = vld [vmem:[%s5 + $0xc8] sm:$0xff]
          %v3236 = vld [vmem:[%s5 + $0xd0] sm:$0xff]
          %v3237 = vld [vmem:[%s5 + $0xd8] sm:$0xff]
          %v3238 = vld [vmem:[%s5 + $0xe0] sm:$0xff]
          %v3239 = vld [vmem:[%s5 + $0xe8] sm:$0xff]
          %v3240 = vld [vmem:[%s5 + $0xf0] sm:$0xff]
          %v3241 = vld [vmem:[%s5 + $0xf8] sm:$0xff]
          %v3242 = vld [vmem:[%s5 + $0x100] sm:$0xff]
          %v3243 = vld [vmem:[%s5 + $0x108] sm:$0xff]
          %v3244 = vld [vmem:[%s5 + $0x110] sm:$0xff]
          %v3245 = vld [vmem:[%s5 + $0x118] sm:$0xff]
          %v3246 = vld [vmem:[%s5 + $0x120] sm:$0xff]
          %v3247 = vld [vmem:[%s5 + $0x128] sm:$0xff]
          %v3248 = vld [vmem:[%s5 + $0x130] sm:$0xff]
          %v3249 = vld [vmem:[%s5 + $0x138] sm:$0xff]
          %v3250 = vld [vmem:[%s5 + $0x140] sm:$0xff]
          %v3251 = vld [vmem:[%s5 + $0x148] sm:$0xff]
          %v3252 = vld [vmem:[%s5 + $0x150] sm:$0xff]
          %v3253 = vld [vmem:[%s5 + $0x158] sm:$0xff]
          %v3254 = vld [vmem:[%s5 + $0x160] sm:$0xff]
          %v3255 = vld [vmem:[%s5 + $0x168] sm:$0xff]
          %v3256 = vld [vmem:[%s5 + $0x170] sm:$0xff]
          %v3257 = vld [vmem:[%s5 + $0x178] sm:$0xff]
          %v3258 = vld [vmem:[%s5 + $0x180] sm:$0xff]
          %v3259 = vld [vmem:[%s5 + $0x188] sm:$0xff]
          %v3260 = vld [vmem:[%s5 + $0x190] sm:$0xff]
          %v3261 = vld [vmem:[%s5 + $0x198] sm:$0xff]
          %v3262 = vld [vmem:[%s5 + $0x1a0] sm:$0xff]
          %v3263 = vld [vmem:[%s5 + $0x1a8] sm:$0xff]
          %v3264 = vld [vmem:[%s5 + $0x1b0] sm:$0xff]
          %v3265 = vld [vmem:[%s5 + $0x1b8] sm:$0xff]
          %v3266 = vld [vmem:[%s5 + $0x1c0] sm:$0xff]
          %v3267 = vld [vmem:[%s5 + $0x1c8] sm:$0xff]
          %v3268 = vld [vmem:[%s5 + $0x1d0] sm:$0xff]
          %v3269 = vld [vmem:[%s5 + $0x1d8] sm:$0xff]
          %v3270 = vld [vmem:[%s5 + $0x1e0] sm:$0xff]
          %v3271 = vld [vmem:[%s5 + $0x1e8] sm:$0xff]
          %v3272 = vld [vmem:[%s5 + $0x1f0] sm:$0xff]
          %v3273 = vld [vmem:[%s5 + $0x1f8] sm:$0xff]
          %s3274 = sld [smem:[#allocation4]]
          %v3275 = vstv %s3274
          %3277 = vst [vmem:[#allocation1] ss:$4 sm:$0xff] %v3209
          %v3278 = vld.sshfl [vmem:[#allocation1] sm:$0xff pattern:$0x73625140]
          %v3279 = vld.sshfl [vmem:[#allocation1 + $0x8] sm:$0xff pattern:$0x73625140]
          %v3280 = vld.sshfl [vmem:[#allocation1 + $0x10] sm:$0xff pattern:$0x73625140]
          %v3281 = vld.sshfl [vmem:[#allocation1 + $0x18] sm:$0xff pattern:$0x73625140]
          %3286 = vmatpush.msra.mxu0 %v3225
          %3287 = vmatpush.msra.mxu0 %v3224
          %3288 = vmatpush.msra.mxu0 %v3223
          %3289 = vmatpush.msra.mxu0 %v3222
          %3290 = vmatpush.msra.mxu0 %v3221
          %3291 = vmatpush.msra.mxu0 %v3220
          %3292 = vmatpush.msra.mxu0 %v3219
          %3293 = vmatpush.msra.mxu0 %v3218
          %3294 = vmatpush.msra.mxu0 %v3217
          %3295 = vmatpush.msra.mxu0 %v3216
          %3296 = vmatpush.msra.mxu0 %v3215
          %3297 = vmatpush.msra.mxu0 %v3214
          %3298 = vmatpush.msra.mxu0 %v3213
          %3299 = vmatpush.msra.mxu0 %v3212
          %3300 = vmatpush.msra.mxu0 %v3211
          %3301 = vmatpush.msra.mxu0 %v3210
          %3302 = vmatmul.f32.gmra.mxu0 %v3278
          %v3303 = vpop.f32.mrf.mxu0
          %v3304 = vadd.f32 %v3275, %v3303
          %3305 = vdwg.mxu0
          %3306 = vmatpush.msra.mxu0 %v3241
          %3307 = vmatpush.msra.mxu0 %v3240
          %3308 = vmatpush.msra.mxu0 %v3239
          %3309 = vmatpush.msra.mxu0 %v3238
          %3310 = vmatpush.msra.mxu0 %v3237
          %3311 = vmatpush.msra.mxu0 %v3236
          %3312 = vmatpush.msra.mxu0 %v3235
          %3313 = vmatpush.msra.mxu0 %v3234
          %3314 = vmatpush.msra.mxu0 %v3233
          %3315 = vmatpush.msra.mxu0 %v3232
          %3316 = vmatpush.msra.mxu0 %v3231
          %3317 = vmatpush.msra.mxu0 %v3230
          %3318 = vmatpush.msra.mxu0 %v3229
          %3319 = vmatpush.msra.mxu0 %v3228
          %3320 = vmatpush.msra.mxu0 %v3227
          %3321 = vmatpush.msra.mxu0 %v3226
          %3322 = vmatmul.f32.gmra.mxu0 %v3279
          %v3323 = vpop.f32.mrf.mxu0
          %v3324 = vadd.f32 %v3304, %v3323
          %3325 = vdwg.mxu0
          %3326 = vmatpush.msra.mxu0 %v3257
          %3327 = vmatpush.msra.mxu0 %v3256
          %3328 = vmatpush.msra.mxu0 %v3255
          %3329 = vmatpush.msra.mxu0 %v3254
          %3330 = vmatpush.msra.mxu0 %v3253
          %3331 = vmatpush.msra.mxu0 %v3252
          %3332 = vmatpush.msra.mxu0 %v3251
          %3333 = vmatpush.msra.mxu0 %v3250
          %3334 = vmatpush.msra.mxu0 %v3249
          %3335 = vmatpush.msra.mxu0 %v3248
          %3336 = vmatpush.msra.mxu0 %v3247
          %3337 = vmatpush.msra.mxu0 %v3246
          %3338 = vmatpush.msra.mxu0 %v3245
          %3339 = vmatpush.msra.mxu0 %v3244
          %3340 = vmatpush.msra.mxu0 %v3243
          %3341 = vmatpush.msra.mxu0 %v3242
          %3342 = vmatmul.f32.gmra.mxu0 %v3280
          %v3343 = vpop.f32.mrf.mxu0
          %v3344 = vadd.f32 %v3324, %v3343
          %3345 = vdwg.mxu0
          %3346 = vmatpush.msra.mxu0 %v3273
          %3347 = vmatpush.msra.mxu0 %v3272
          %3348 = vmatpush.msra.mxu0 %v3271
          %3349 = vmatpush.msra.mxu0 %v3270
          %3350 = vmatpush.msra.mxu0 %v3269
          %3351 = vmatpush.msra.mxu0 %v3268
          %3352 = vmatpush.msra.mxu0 %v3267
          %3353 = vmatpush.msra.mxu0 %v3266
          %3354 = vmatpush.msra.mxu0 %v3265
          %3355 = vmatpush.msra.mxu0 %v3264
          %3356 = vmatpush.msra.mxu0 %v3263
          %3357 = vmatpush.msra.mxu0 %v3262
          %3358 = vmatpush.msra.mxu0 %v3261
          %3359 = vmatpush.msra.mxu0 %v3260
          %3360 = vmatpush.msra.mxu0 %v3259
          %3361 = vmatpush.msra.mxu0 %v3258
          %3362 = vmatmul.f32.gmra.mxu0 %v3281
          %v3363 = vpop.f32.mrf.mxu0
          %v3364 = vadd.f32 %v3344, %v3363
          %3365 = vdwg.mxu0
          %vm3366 = vcmask 1024
          %3367 = vst.msk [vmem:[%s7] sm:$0x3] %vm3366, %v3364
        $region72: #{net_cnn_simp_forward.1} parent=47 // pred_fallthru
          _
        // Predicated region
        $region73: #{net_cnn_simp_forward.1} parent=47 // pred_check
          %p3368 = pneg %p186
        $region74: #{net_cnn_simp_forward.1} parent=47 // pred_check_branch
          %3370 = sbr.rel (%p3368) target = $region76
        $region75: #{net_cnn_simp_forward.1} parent=47 // pred_region
          _
        $region76: #{net_cnn_simp_forward.1} parent=47 // pred_fallthru
          _
        // Predicated region
        $region77: #{net_cnn_simp_forward.1} parent=47 // pred_check
          %p3371 = pneg %p186
        $region78: #{net_cnn_simp_forward.1} parent=47 // pred_check_branch
          %3373 = sbr.rel (%p3371) target = $region80
        $region79: #{net_cnn_simp_forward.1} parent=47 // pred_region
          _
        $region80: #{net_cnn_simp_forward.1} parent=47 // pred_fallthru
          _
      $region48: #{net_cnn_simp_forward.1} parent=5 // pred_fallthru
        _
      %p3374 = scmp.le.s32.totalorder 2, %s16
      // Predicated region
      $region81: #{net_cnn_simp_forward.1} parent=5 // pred_check
        %p3375 = pneg %p3374
      $region82: #{net_cnn_simp_forward.1} parent=5 // pred_check_branch
        %3377 = sbr.rel (%p3375) target = $region84
      $region83: #{net_cnn_simp_forward.1} parent=5 // pred_region
        %s3378 = ssub.s32 %s16, 2
      $region84: #{net_cnn_simp_forward.1} parent=5 // pred_fallthru
        _
    $region6: #{net_cnn_simp_forward.1} parent=1 // loop_footer
      %s20 = sadd.s32 1, %s16
    $region7: #{net_cnn_simp_forward.1} parent=1 // loop_footer_branch
      %15 = sbr.rel target = $region3
    $region8: #{net_cnn_simp_forward.1} parent=1 // loop_exit
      _
    %3379 = vsyncpa [#allocation6], 1
    %s3380 = scalar_lea.sflag [#allocation6], 1
    %3381 = vsyncpa %s3380, 1
    %3382 = vsyncpa [#allocation8], 1

</llo_original>
